<compile_context>
chip_gen: v7x
topology: tpu7x:2x2x1
jax: 0.10.0
libtpu: 0.0.40
codegen_flags: <defaults>
</compile_context>

<pallas_src>
import functools

import jax
import jax.numpy as jnp
from jax.experimental import pallas as pl
from jax.experimental.pallas import tpu as pltpu

_GEMM_DTYPE = jnp.bfloat16     # MXU operand dtype (f32 accumulation)
_ACT_DTYPE = jnp.bfloat16      # inter-layer activation storage dtype
_BN_EPS = 1e-5


def _round_up(x, m):
    return (x + m - 1) // m * m


def _kdim(K, C):
    # GEMM contraction length, rounded to a bf16-sublane-friendly multiple.
    return _round_up(K * K * C, 16)


# ---------------------------------------------------------------------------
# Pallas kernels (single invocation each: every operand is VMEM-resident)
# ---------------------------------------------------------------------------
def _make_conv_bn_relu_kernel(has_res, has_fold, inv_n, eps=_BN_EPS):
    """Fully fused conv layer: acc = patches @ W on the MXU (f32 accumulation),
    train-mode BatchNorm statistics over the M rows (optionally folded across
    the 4 sub-pixel phases via `fold`), affine, optional residual add, ReLU,
    bf16 store.  One pallas_call, no f32 HBM round trip."""
    def kernel(*refs):
        it = iter(refs)
        a_ref = next(it)                       # (M, Kd)  bf16 patches
        w_ref = next(it)                       # (Kd, Nc) bf16 weights
        g_ref = next(it)                       # (1, Nc)  f32 BN gamma
        b_ref = next(it)                       # (1, Nc)  f32 BN beta
        f_ref = next(it) if has_fold else None  # (Nc, Nc) f32 phase-fold matrix
        r_ref = next(it) if has_res else None   # (M, Nc)  bf16 residual
        o_ref = next(it)                       # (M, Nc)  bf16 output

        acc = jnp.dot(a_ref[...], w_ref[...],
                      preferred_element_type=jnp.float32)        # (M, Nc) f32
        s1 = jnp.sum(acc, axis=0, keepdims=True)                 # (1, Nc)
        s2 = jnp.sum(acc * acc, axis=0, keepdims=True)           # (1, Nc)
        if has_fold:
            fmat = f_ref[...]
            s1 = jnp.dot(s1, fmat, preferred_element_type=jnp.float32)
            s2 = jnp.dot(s2, fmat, preferred_element_type=jnp.float32)
        mean = s1 * inv_n
        var = jnp.maximum(s2 * inv_n - mean * mean, 0.0)          # biased var
        scale = g_ref[...] * jax.lax.rsqrt(var + eps)
        shift = b_ref[...] - mean * scale
        y = acc * scale + shift                                   # f32 epilogue
        if has_res:
            y = y + r_ref[...].astype(jnp.float32)
        y = jnp.maximum(y, 0.0)
        o_ref[...] = y.astype(o_ref.dtype)

    return kernel


def _outconv_kernel(a_ref, w_ref, bias_ref, o_ref):
    """OutConv: GEMM + bias + tanh fused; f32 output sized (M, OC) directly."""
    acc = jnp.dot(a_ref[...], w_ref[...], preferred_element_type=jnp.float32)
    o_ref[...] = jnp.tanh(acc + bias_ref[...])


_VMEM_SPEC = pl.BlockSpec(memory_space=pltpu.MemorySpace.VMEM)


def fused_conv_bn_relu(patches, wmat, gamma_row, beta_row, n_samples,
                       residual=None, fold=None):
    """ReLU(BN(patches @ wmat) [+ residual]) in a single no-grid pallas_call."""
    M = patches.shape[0]
    Nc = wmat.shape[1]
    args = [patches, wmat, gamma_row, beta_row]
    if fold is not None:
        args.append(fold)
    if residual is not None:
        args.append(residual)
    kernel = _make_conv_bn_relu_kernel(residual is not None, fold is not None,
                                       1.0 / float(n_samples))
    return pl.pallas_call(
        kernel,
        out_shape=jax.ShapeDtypeStruct((M, Nc), _ACT_DTYPE),
        in_specs=[_VMEM_SPEC] * len(args),
        out_specs=_VMEM_SPEC,
    )(*args)


def gemm_bias_tanh(patches, wmat, bias_row):
    """tanh(patches @ wmat + bias) in a single no-grid pallas_call."""
    M = patches.shape[0]
    OC = wmat.shape[1]
    return pl.pallas_call(
        _outconv_kernel,
        out_shape=jax.ShapeDtypeStruct((M, OC), jnp.float32),
        in_specs=[_VMEM_SPEC] * 3,
        out_specs=_VMEM_SPEC,
    )(patches, wmat, bias_row)


# ---------------------------------------------------------------------------
# Convolution building blocks (NHWC activations stored in bf16)
# ---------------------------------------------------------------------------
# TODO(synk): a further optimization is moving im2col inside the Pallas kernel
# (shifted-window reads of the padded NHWC activation), and ultimately fusing
# the whole forward into one persistent VMEM-resident kernel; kept at the JAX
# level here for robustness.
def _im2col_nhwc(xp, K, stride, k_pad_to=None):
    """Padded NHWC input -> (N*OH*OW, Kd) patch matrix (column order kh, kw, c).
    An optional zero column block brings Kd up to `k_pad_to`; the matching zero
    weight rows are pre-built once in make_params (so no runtime weight pad)."""
    N, Hp, Wp, C = xp.shape
    OH = (Hp - K) // stride + 1
    OW = (Wp - K) // stride + 1
    cols = []
    for kh in range(K):
        for kw in range(K):
            cols.append(xp[:, kh:kh + (OH - 1) * stride + 1:stride,
                           kw:kw + (OW - 1) * stride + 1:stride, :])
    kd = K * K * C
    if k_pad_to is not None and k_pad_to > kd:
        cols.append(jnp.zeros((N, OH, OW, k_pad_to - kd), xp.dtype))
        kd = k_pad_to
    patches = jnp.concatenate(cols, axis=-1)
    return patches.reshape(N * OH * OW, kd), (N, OH, OW)


def conv_bn_relu(x, wmat, gamma_row, beta_row, K, stride, pad, reflect=False,
                 residual_rows=None):
    """Conv(K, stride, pad) -> train-mode BN -> ReLU on an NHWC activation.
    (The conv bias is exactly cancelled by BN's batch-mean subtraction.)"""
    if pad > 0:
        mode = "reflect" if reflect else "constant"
        xp = jnp.pad(x, ((0, 0), (pad, pad), (pad, pad), (0, 0)), mode=mode)
    else:
        xp = x
    C = x.shape[-1]
    patches, (N, OH, OW) = _im2col_nhwc(xp, K, stride, k_pad_to=_kdim(K, C))
    OC = wmat.shape[1]
    y = fused_conv_bn_relu(patches, wmat, gamma_row, beta_row,
                           n_samples=patches.shape[0], residual=residual_rows)
    return y.reshape(N, OH, OW, OC)


def basic_block(x, p):
    # TODO(synk): BasicBlock is not defined in the provided source; assuming
    # conv3x3-BN-ReLU -> conv3x3-BN (+identity) -> ReLU, stride 1, zero pad.
    h = conv_bn_relu(x, p["W1m"], p["g1"], p["be1"], K=3, stride=1, pad=1)
    N, H, W, C = x.shape
    res_rows = x.reshape(N * H * W, C)
    return conv_bn_relu(h, p["W2m"], p["g2"], p["be2"], K=3, stride=1, pad=1,
                        residual_rows=res_rows)


def upsample(x, wcat, gamma_row, beta_row, fold):
    """ConvTranspose2d(k=3, s=2, p=1, output_padding=1) -> BN -> ReLU via the
    sub-pixel (4-phase) decomposition: output pixel (2i+a, 2j+b) only touches
    input pixels (i+dh, j+dw), dh,dw in {0,1}, so the whole layer is ONE
    stride-1 2x2-window GEMM on the un-dilated input with phase-packed weights
    (columns = 4 phases x OC).  BN statistics are summed across phases inside
    the kernel with a 0/1 fold matrix; the pixel shuffle is plain JAX."""
    N, H, W, C = x.shape
    xp = jnp.pad(x, ((0, 0), (0, 1), (0, 1), (0, 0)))      # zero pad bottom/right
    cols = [xp[:, dh:dh + H, dw:dw + W, :] for dh in (0, 1) for dw in (0, 1)]
    patches = jnp.concatenate(cols, axis=-1).reshape(N * H * W, 4 * C)
    Nc = wcat.shape[1]
    OC = Nc // 4
    y = fused_conv_bn_relu(patches, wcat, gamma_row, beta_row,
                           n_samples=4 * N * H * W, fold=fold)
    y = y.reshape(N, H, W, 2, 2, OC).transpose(0, 1, 3, 2, 4, 5)   # (N,H,a,W,b,OC)
    return y.reshape(N, 2 * H, 2 * W, OC)


def out_conv(x, wmat, bias_row):
    """ReflectionPad(3) -> Conv(7) + bias -> Tanh, fused in one GEMM kernel."""
    xp = jnp.pad(x, ((0, 0), (3, 3), (3, 3), (0, 0)), mode="reflect")
    C = x.shape[-1]
    patches, (N, OH, OW) = _im2col_nhwc(xp, 7, 1, k_pad_to=_kdim(7, C))
    OC = wmat.shape[1]
    y = gemm_bias_tanh(patches, wmat, bias_row)
    return y.reshape(N, OH, OW, OC)


# ---------------------------------------------------------------------------
# G_net forward + parameter construction
# ---------------------------------------------------------------------------
def g_net_forward(params, x_nchw):
    p = params
    x = jnp.transpose(x_nchw, (0, 2, 3, 1)).astype(_ACT_DTYPE)   # NCHW->NHWC, bf16 (once)
    x = conv_bn_relu(x, p["inWm"], p["ing"], p["inbe"],
                     K=7, stride=1, pad=3, reflect=True)          # InConv
    x = conv_bn_relu(x, p["d1Wm"], p["d1g"], p["d1be"],
                     K=3, stride=2, pad=1)                        # down1
    x = conv_bn_relu(x, p["d2Wm"], p["d2g"], p["d2be"],
                     K=3, stride=2, pad=1)                        # down2
    for blk in p["res"]:                                          # resnet
        x = basic_block(x, blk)
    x = upsample(x, p["u1Wm"], p["u1g"], p["u1be"], p["u1fold"])  # up1
    x = upsample(x, p["u2Wm"], p["u2g"], p["u2be"], p["u2fold"])  # up2
    x = out_conv(x, p["outWm"], p["outb"])                        # OutConv
    return jnp.transpose(x, (0, 3, 1, 2))                         # NHWC -> NCHW (once)


def _conv_wmat(W, k_pad_to=None):
    """PyTorch conv weight (OC, IC, K, K) -> bf16 GEMM matrix (Kd, OC),
    row order (kh, kw, ic), rows zero-padded to k_pad_to."""
    OC, IC, K, _ = W.shape
    m = jnp.transpose(W, (2, 3, 1, 0)).reshape(K * K * IC, OC)
    if k_pad_to is not None and k_pad_to > m.shape[0]:
        m = jnp.pad(m, ((0, k_pad_to - m.shape[0]), (0, 0)))
    return m.astype(_GEMM_DTYPE)


def _convT_phase_wmat(Wt):
    """ConvTranspose2d weight (IC, OC, 3, 3), stride 2, pad 1, output_pad 1 ->
    phase-packed GEMM matrix (4*IC, 4*OC).  Rows follow the 2x2 window order
    (dh, dw, ic); columns are the four output phases (a, b) x OC, where
    y[2i+a, 2j+b] = sum_{dh,dw} x[i+dh, j+dw] . Wt[:, :, kh(a,dh), kw(b,dw)]
    with kh(0,0)=1, kh(1,0)=2, kh(1,1)=0 (no (a=0,dh=1) term), kw likewise."""
    IC, OC = Wt.shape[0], Wt.shape[1]
    kmap = {(0, 0): 1, (1, 0): 2, (1, 1): 0}
    cols = []
    for a in (0, 1):
        for b in (0, 1):
            rows = []
            for dh in (0, 1):
                for dw in (0, 1):
                    kh = kmap.get((a, dh))
                    kw = kmap.get((b, dw))
                    if kh is None or kw is None:
                        rows.append(jnp.zeros((IC, OC), Wt.dtype))
                    else:
                        rows.append(Wt[:, :, kh, kw])
            cols.append(jnp.concatenate(rows, axis=0))            # (4*IC, OC)
    return jnp.concatenate(cols, axis=1).astype(_GEMM_DTYPE)       # (4*IC, 4*OC)


def _phase_fold_matrix(OC):
    """(4*OC, 4*OC) 0/1 matrix, F[i, j] = 1 iff i % OC == j % OC: right-multiplying
    the per-column sums totals the 4 phases of each BN channel and broadcasts the
    result back to every phase column group."""
    return jnp.tile(jnp.eye(OC, dtype=jnp.float32), (4, 4))


def make_params(key, inchannel=3, outchannel=3, ngf=8, reslayer=2):
    keys = iter(jax.random.split(key, 64))

    def conv_w(oc, ic, k):
        return 0.05 * jax.random.normal(next(keys), (oc, ic, k, k), jnp.float32)

    ones_row = lambda c: jnp.ones((1, c), jnp.float32)    # fresh-BN gamma
    zeros_row = lambda c: jnp.zeros((1, c), jnp.float32)  # fresh-BN beta

    # Conv / ConvTranspose biases of layers followed by train-mode BatchNorm are
    # exactly cancelled by the batch-mean subtraction and are not materialized.
    # All GEMM matrices are reshaped / phase-packed / padded / bf16-cast HERE,
    # once, never per forward.  Upsample gamma/beta are phase-tiled (1, 4*OC).
    params = {
        "inWm": _conv_wmat(conv_w(ngf, inchannel, 7), _kdim(7, inchannel)),
        "ing": ones_row(ngf), "inbe": zeros_row(ngf),
        "d1Wm": _conv_wmat(conv_w(2 * ngf, ngf, 3), _kdim(3, ngf)),
        "d1g": ones_row(2 * ngf), "d1be": zeros_row(2 * ngf),
        "d2Wm": _conv_wmat(conv_w(4 * ngf, 2 * ngf, 3), _kdim(3, 2 * ngf)),
        "d2g": ones_row(4 * ngf), "d2be": zeros_row(4 * ngf),
        "res": [],
        # ConvTranspose2d weight layout: (in_channels, out_channels, kH, kW)
        "u1Wm": _convT_phase_wmat(0.05 * jax.random.normal(
            next(keys), (4 * ngf, 2 * ngf, 3, 3), jnp.float32)),
        "u1g": ones_row(4 * 2 * ngf), "u1be": zeros_row(4 * 2 * ngf),
        "u1fold": _phase_fold_matrix(2 * ngf),
        "u2Wm": _convT_phase_wmat(0.05 * jax.random.normal(
            next(keys), (2 * ngf, ngf, 3, 3), jnp.float32)),
        "u2g": ones_row(4 * ngf), "u2be": zeros_row(4 * ngf),
        "u2fold": _phase_fold_matrix(ngf),
        "outWm": _conv_wmat(conv_w(outchannel, ngf, 7), _kdim(7, ngf)),
        "outb": 0.01 * jax.random.normal(next(keys), (1, outchannel), jnp.float32),
    }
    c = 4 * ngf
    for _ in range(reslayer):
        params["res"].append({
            "W1m": _conv_wmat(conv_w(c, c, 3), _kdim(3, c)),
            "g1": ones_row(c), "be1": zeros_row(c),
            "W2m": _conv_wmat(conv_w(c, c, 3), _kdim(3, c)),
            "g2": ones_row(c), "be2": zeros_row(c),
        })
    return params


# ---------------------------------------------------------------------------
if __name__ == "__main__":
    key = jax.random.PRNGKey(0)
    pkey, xkey = jax.random.split(key)

    # Small but representative configuration: batch=2, 3->3 channels,
    # 16x16 spatial, ngf=8, 2 residual blocks.
    params = make_params(pkey, inchannel=3, outchannel=3, ngf=8, reslayer=2)
    x = jax.random.normal(xkey, (2, 3, 16, 16), jnp.float32)

    fwd = jax.jit(functools.partial(g_net_forward, params))
    out = jax.block_until_ready(fwd(x))

    assert out.shape == (2, 3, 16, 16), out.shape
    assert bool(jnp.all(jnp.isfinite(out)))
    assert bool(jnp.all(jnp.abs(out) <= 1.0 + 1e-6))  # tanh output range
    print("KERNEL_OK")
</pallas_src>

<mosaic_0001>
module attributes {stable_mosaic.version = 11 : i64} {
  func.func @kernel(%arg0: memref<512x160xbf16, #tpu.memory_space<vmem>>, %arg1: memref<160x8xbf16, #tpu.memory_space<vmem>>, %arg2: memref<1x8xf32, #tpu.memory_space<vmem>>, %arg3: memref<1x8xf32, #tpu.memory_space<vmem>>, %arg4: memref<512x8xbf16, #tpu.memory_space<vmem>>) attributes {dimension_semantics = [], scalar_prefetch = 0 : i64, scratch_operands = 0 : i64, tpu.core_type = #tpu.core_type<tc>} {
    %c0 = arith.constant 0 : index
    %c0_0 = arith.constant 0 : index
    %0 = vector.load %arg0[%c0, %c0_0] : memref<512x160xbf16, #tpu.memory_space<vmem>>, vector<512x160xbf16>
    %c0_1 = arith.constant 0 : index
    %c0_2 = arith.constant 0 : index
    %1 = vector.load %arg1[%c0_1, %c0_2] : memref<160x8xbf16, #tpu.memory_space<vmem>>, vector<160x8xbf16>
    %cst = arith.constant dense<0.000000e+00> : vector<512x8xf32>
    %2 = tpu.matmul %0, %1, %cst {dimension_numbers = #tpu.dot_dimension_numbers<[1], [0], [0], [1], [0, 0, 1, 1], [], []>} : vector<512x160xbf16>, vector<160x8xbf16>, vector<512x8xf32> -> vector<512x8xf32>
    %cst_3 = arith.constant dense<0.000000e+00> : vector<8xf32>
    %3 = vector.multi_reduction <add>, %2, %cst_3 [0] : vector<512x8xf32> to vector<8xf32>
    %4 = vector.shape_cast %3 : vector<8xf32> to vector<1x8xf32>
    %5 = arith.mulf %2, %2 : vector<512x8xf32>
    %cst_4 = arith.constant dense<0.000000e+00> : vector<8xf32>
    %6 = vector.multi_reduction <add>, %5, %cst_4 [0] : vector<512x8xf32> to vector<8xf32>
    %7 = vector.shape_cast %6 : vector<8xf32> to vector<1x8xf32>
    %cst_5 = arith.constant 0.001953125 : f32
    %8 = vector.broadcast %cst_5 : f32 to vector<1x8xf32>
    %9 = arith.mulf %4, %8 : vector<1x8xf32>
    %cst_6 = arith.constant 0.001953125 : f32
    %10 = vector.broadcast %cst_6 : f32 to vector<1x8xf32>
    %11 = arith.mulf %7, %10 : vector<1x8xf32>
    %12 = arith.mulf %9, %9 : vector<1x8xf32>
    %13 = arith.subf %11, %12 : vector<1x8xf32>
    %cst_7 = arith.constant 0.000000e+00 : f32
    %14 = vector.broadcast %cst_7 : f32 to vector<1x8xf32>
    %15 = arith.maximumf %13, %14 : vector<1x8xf32>
    %c0_8 = arith.constant 0 : index
    %c0_9 = arith.constant 0 : index
    %16 = vector.load %arg2[%c0_8, %c0_9] : memref<1x8xf32, #tpu.memory_space<vmem>>, vector<1x8xf32>
    %cst_10 = arith.constant 9.99999974E-6 : f32
    %17 = vector.broadcast %cst_10 : f32 to vector<1x8xf32>
    %18 = arith.addf %15, %17 : vector<1x8xf32>
    %19 = math.rsqrt %18 : vector<1x8xf32>
    %20 = arith.mulf %16, %19 : vector<1x8xf32>
    %c0_11 = arith.constant 0 : index
    %c0_12 = arith.constant 0 : index
    %21 = vector.load %arg3[%c0_11, %c0_12] : memref<1x8xf32, #tpu.memory_space<vmem>>, vector<1x8xf32>
    %22 = arith.mulf %9, %20 : vector<1x8xf32>
    %23 = arith.subf %21, %22 : vector<1x8xf32>
    %24 = vector.broadcast %20 : vector<1x8xf32> to vector<512x8xf32>
    %25 = arith.mulf %2, %24 : vector<512x8xf32>
    %26 = vector.broadcast %23 : vector<1x8xf32> to vector<512x8xf32>
    %27 = arith.addf %25, %26 : vector<512x8xf32>
    %cst_13 = arith.constant 0.000000e+00 : f32
    %28 = vector.broadcast %cst_13 : f32 to vector<512x8xf32>
    %29 = arith.maximumf %27, %28 : vector<512x8xf32>
    %30 = arith.truncf %29 : vector<512x8xf32> to vector<512x8xbf16>
    %c0_14 = arith.constant 0 : index
    %c0_15 = arith.constant 0 : index
    %31 = vector.load %arg4[%c0_14, %c0_15] : memref<512x8xbf16, #tpu.memory_space<vmem>>, vector<512x8xbf16>
    tpu.vector_store %arg4[%c0_14, %c0_15], %30 {strides = array<i32>} : memref<512x8xbf16, #tpu.memory_space<vmem>>, vector<512x8xbf16>,
    return
  }
}

module attributes {stable_mosaic.version = 11 : i64} {
  func.func @kernel(%arg0: memref<128x80xbf16, #tpu.memory_space<vmem>>, %arg1: memref<80x16xbf16, #tpu.memory_space<vmem>>, %arg2: memref<1x16xf32, #tpu.memory_space<vmem>>, %arg3: memref<1x16xf32, #tpu.memory_space<vmem>>, %arg4: memref<128x16xbf16, #tpu.memory_space<vmem>>) attributes {dimension_semantics = [], scalar_prefetch = 0 : i64, scratch_operands = 0 : i64, tpu.core_type = #tpu.core_type<tc>} {
    %c0 = arith.constant 0 : index
    %c0_0 = arith.constant 0 : index
    %0 = vector.load %arg0[%c0, %c0_0] : memref<128x80xbf16, #tpu.memory_space<vmem>>, vector<128x80xbf16>
    %c0_1 = arith.constant 0 : index
    %c0_2 = arith.constant 0 : index
    %1 = vector.load %arg1[%c0_1, %c0_2] : memref<80x16xbf16, #tpu.memory_space<vmem>>, vector<80x16xbf16>
    %cst = arith.constant dense<0.000000e+00> : vector<128x16xf32>
    %2 = tpu.matmul %0, %1, %cst {dimension_numbers = #tpu.dot_dimension_numbers<[1], [0], [0], [1], [0, 0, 1, 1], [], []>} : vector<128x80xbf16>, vector<80x16xbf16>, vector<128x16xf32> -> vector<128x16xf32>
    %cst_3 = arith.constant dense<0.000000e+00> : vector<16xf32>
    %3 = vector.multi_reduction <add>, %2, %cst_3 [0] : vector<128x16xf32> to vector<16xf32>
    %4 = vector.shape_cast %3 : vector<16xf32> to vector<1x16xf32>
    %5 = arith.mulf %2, %2 : vector<128x16xf32>
    %cst_4 = arith.constant dense<0.000000e+00> : vector<16xf32>
    %6 = vector.multi_reduction <add>, %5, %cst_4 [0] : vector<128x16xf32> to vector<16xf32>
    %7 = vector.shape_cast %6 : vector<16xf32> to vector<1x16xf32>
    %cst_5 = arith.constant 7.812500e-03 : f32
    %8 = vector.broadcast %cst_5 : f32 to vector<1x16xf32>
    %9 = arith.mulf %4, %8 : vector<1x16xf32>
    %cst_6 = arith.constant 7.812500e-03 : f32
    %10 = vector.broadcast %cst_6 : f32 to vector<1x16xf32>
    %11 = arith.mulf %7, %10 : vector<1x16xf32>
    %12 = arith.mulf %9, %9 : vector<1x16xf32>
    %13 = arith.subf %11, %12 : vector<1x16xf32>
    %cst_7 = arith.constant 0.000000e+00 : f32
    %14 = vector.broadcast %cst_7 : f32 to vector<1x16xf32>
    %15 = arith.maximumf %13, %14 : vector<1x16xf32>
    %c0_8 = arith.constant 0 : index
    %c0_9 = arith.constant 0 : index
    %16 = vector.load %arg2[%c0_8, %c0_9] : memref<1x16xf32, #tpu.memory_space<vmem>>, vector<1x16xf32>
    %cst_10 = arith.constant 9.99999974E-6 : f32
    %17 = vector.broadcast %cst_10 : f32 to vector<1x16xf32>
    %18 = arith.addf %15, %17 : vector<1x16xf32>
    %19 = math.rsqrt %18 : vector<1x16xf32>
    %20 = arith.mulf %16, %19 : vector<1x16xf32>
    %c0_11 = arith.constant 0 : index
    %c0_12 = arith.constant 0 : index
    %21 = vector.load %arg3[%c0_11, %c0_12] : memref<1x16xf32, #tpu.memory_space<vmem>>, vector<1x16xf32>
    %22 = arith.mulf %9, %20 : vector<1x16xf32>
    %23 = arith.subf %21, %22 : vector<1x16xf32>
    %24 = vector.broadcast %20 : vector<1x16xf32> to vector<128x16xf32>
    %25 = arith.mulf %2, %24 : vector<128x16xf32>
    %26 = vector.broadcast %23 : vector<1x16xf32> to vector<128x16xf32>
    %27 = arith.addf %25, %26 : vector<128x16xf32>
    %cst_13 = arith.constant 0.000000e+00 : f32
    %28 = vector.broadcast %cst_13 : f32 to vector<128x16xf32>
    %29 = arith.maximumf %27, %28 : vector<128x16xf32>
    %30 = arith.truncf %29 : vector<128x16xf32> to vector<128x16xbf16>
    %c0_14 = arith.constant 0 : index
    %c0_15 = arith.constant 0 : index
    %31 = vector.load %arg4[%c0_14, %c0_15] : memref<128x16xbf16, #tpu.memory_space<vmem>>, vector<128x16xbf16>
    tpu.vector_store %arg4[%c0_14, %c0_15], %30 {strides = array<i32>} : memref<128x16xbf16, #tpu.memory_space<vmem>>, vector<128x16xbf16>,
    return
  }
}

module attributes {stable_mosaic.version = 11 : i64} {
  func.func @kernel(%arg0: memref<32x144xbf16, #tpu.memory_space<vmem>>, %arg1: memref<144x32xbf16, #tpu.memory_space<vmem>>, %arg2: memref<1x32xf32, #tpu.memory_space<vmem>>, %arg3: memref<1x32xf32, #tpu.memory_space<vmem>>, %arg4: memref<32x32xbf16, #tpu.memory_space<vmem>>) attributes {dimension_semantics = [], scalar_prefetch = 0 : i64, scratch_operands = 0 : i64, tpu.core_type = #tpu.core_type<tc>} {
    %c0 = arith.constant 0 : index
    %c0_0 = arith.constant 0 : index
    %0 = vector.load %arg0[%c0, %c0_0] : memref<32x144xbf16, #tpu.memory_space<vmem>>, vector<32x144xbf16>
    %c0_1 = arith.constant 0 : index
    %c0_2 = arith.constant 0 : index
    %1 = vector.load %arg1[%c0_1, %c0_2] : memref<144x32xbf16, #tpu.memory_space<vmem>>, vector<144x32xbf16>
    %cst = arith.constant dense<0.000000e+00> : vector<32x32xf32>
    %2 = tpu.matmul %0, %1, %cst {dimension_numbers = #tpu.dot_dimension_numbers<[1], [0], [0], [1], [0, 0, 1, 1], [], []>} : vector<32x144xbf16>, vector<144x32xbf16>, vector<32x32xf32> -> vector<32x32xf32>
    %cst_3 = arith.constant dense<0.000000e+00> : vector<32xf32>
    %3 = vector.multi_reduction <add>, %2, %cst_3 [0] : vector<32x32xf32> to vector<32xf32>
    %4 = vector.shape_cast %3 : vector<32xf32> to vector<1x32xf32>
    %5 = arith.mulf %2, %2 : vector<32x32xf32>
    %cst_4 = arith.constant dense<0.000000e+00> : vector<32xf32>
    %6 = vector.multi_reduction <add>, %5, %cst_4 [0] : vector<32x32xf32> to vector<32xf32>
    %7 = vector.shape_cast %6 : vector<32xf32> to vector<1x32xf32>
    %cst_5 = arith.constant 3.125000e-02 : f32
    %8 = vector.broadcast %cst_5 : f32 to vector<1x32xf32>
    %9 = arith.mulf %4, %8 : vector<1x32xf32>
    %cst_6 = arith.constant 3.125000e-02 : f32
    %10 = vector.broadcast %cst_6 : f32 to vector<1x32xf32>
    %11 = arith.mulf %7, %10 : vector<1x32xf32>
    %12 = arith.mulf %9, %9 : vector<1x32xf32>
    %13 = arith.subf %11, %12 : vector<1x32xf32>
    %cst_7 = arith.constant 0.000000e+00 : f32
    %14 = vector.broadcast %cst_7 : f32 to vector<1x32xf32>
    %15 = arith.maximumf %13, %14 : vector<1x32xf32>
    %c0_8 = arith.constant 0 : index
    %c0_9 = arith.constant 0 : index
    %16 = vector.load %arg2[%c0_8, %c0_9] : memref<1x32xf32, #tpu.memory_space<vmem>>, vector<1x32xf32>
    %cst_10 = arith.constant 9.99999974E-6 : f32
    %17 = vector.broadcast %cst_10 : f32 to vector<1x32xf32>
    %18 = arith.addf %15, %17 : vector<1x32xf32>
    %19 = math.rsqrt %18 : vector<1x32xf32>
    %20 = arith.mulf %16, %19 : vector<1x32xf32>
    %c0_11 = arith.constant 0 : index
    %c0_12 = arith.constant 0 : index
    %21 = vector.load %arg3[%c0_11, %c0_12] : memref<1x32xf32, #tpu.memory_space<vmem>>, vector<1x32xf32>
    %22 = arith.mulf %9, %20 : vector<1x32xf32>
    %23 = arith.subf %21, %22 : vector<1x32xf32>
    %24 = vector.broadcast %20 : vector<1x32xf32> to vector<32x32xf32>
    %25 = arith.mulf %2, %24 : vector<32x32xf32>
    %26 = vector.broadcast %23 : vector<1x32xf32> to vector<32x32xf32>
    %27 = arith.addf %25, %26 : vector<32x32xf32>
    %cst_13 = arith.constant 0.000000e+00 : f32
    %28 = vector.broadcast %cst_13 : f32 to vector<32x32xf32>
    %29 = arith.maximumf %27, %28 : vector<32x32xf32>
    %30 = arith.truncf %29 : vector<32x32xf32> to vector<32x32xbf16>
    %c0_14 = arith.constant 0 : index
    %c0_15 = arith.constant 0 : index
    %31 = vector.load %arg4[%c0_14, %c0_15] : memref<32x32xbf16, #tpu.memory_space<vmem>>, vector<32x32xbf16>
    tpu.vector_store %arg4[%c0_14, %c0_15], %30 {strides = array<i32>} : memref<32x32xbf16, #tpu.memory_space<vmem>>, vector<32x32xbf16>,
    return
  }
}

module attributes {stable_mosaic.version = 11 : i64} {
  func.func @kernel(%arg0: memref<32x288xbf16, #tpu.memory_space<vmem>>, %arg1: memref<288x32xbf16, #tpu.memory_space<vmem>>, %arg2: memref<1x32xf32, #tpu.memory_space<vmem>>, %arg3: memref<1x32xf32, #tpu.memory_space<vmem>>, %arg4: memref<32x32xbf16, #tpu.memory_space<vmem>>, %arg5: memref<32x32xbf16, #tpu.memory_space<vmem>>) attributes {dimension_semantics = [], scalar_prefetch = 0 : i64, scratch_operands = 0 : i64, tpu.core_type = #tpu.core_type<tc>} {
    %c0 = arith.constant 0 : index
    %c0_0 = arith.constant 0 : index
    %0 = vector.load %arg0[%c0, %c0_0] : memref<32x288xbf16, #tpu.memory_space<vmem>>, vector<32x288xbf16>
    %c0_1 = arith.constant 0 : index
    %c0_2 = arith.constant 0 : index
    %1 = vector.load %arg1[%c0_1, %c0_2] : memref<288x32xbf16, #tpu.memory_space<vmem>>, vector<288x32xbf16>
    %cst = arith.constant dense<0.000000e+00> : vector<32x32xf32>
    %2 = tpu.matmul %0, %1, %cst {dimension_numbers = #tpu.dot_dimension_numbers<[1], [0], [0], [1], [0, 0, 1, 1], [], []>} : vector<32x288xbf16>, vector<288x32xbf16>, vector<32x32xf32> -> vector<32x32xf32>
    %cst_3 = arith.constant dense<0.000000e+00> : vector<32xf32>
    %3 = vector.multi_reduction <add>, %2, %cst_3 [0] : vector<32x32xf32> to vector<32xf32>
    %4 = vector.shape_cast %3 : vector<32xf32> to vector<1x32xf32>
    %5 = arith.mulf %2, %2 : vector<32x32xf32>
    %cst_4 = arith.constant dense<0.000000e+00> : vector<32xf32>
    %6 = vector.multi_reduction <add>, %5, %cst_4 [0] : vector<32x32xf32> to vector<32xf32>
    %7 = vector.shape_cast %6 : vector<32xf32> to vector<1x32xf32>
    %cst_5 = arith.constant 3.125000e-02 : f32
    %8 = vector.broadcast %cst_5 : f32 to vector<1x32xf32>
    %9 = arith.mulf %4, %8 : vector<1x32xf32>
    %cst_6 = arith.constant 3.125000e-02 : f32
    %10 = vector.broadcast %cst_6 : f32 to vector<1x32xf32>
    %11 = arith.mulf %7, %10 : vector<1x32xf32>
    %12 = arith.mulf %9, %9 : vector<1x32xf32>
    %13 = arith.subf %11, %12 : vector<1x32xf32>
    %cst_7 = arith.constant 0.000000e+00 : f32
    %14 = vector.broadcast %cst_7 : f32 to vector<1x32xf32>
    %15 = arith.maximumf %13, %14 : vector<1x32xf32>
    %c0_8 = arith.constant 0 : index
    %c0_9 = arith.constant 0 : index
    %16 = vector.load %arg2[%c0_8, %c0_9] : memref<1x32xf32, #tpu.memory_space<vmem>>, vector<1x32xf32>
    %cst_10 = arith.constant 9.99999974E-6 : f32
    %17 = vector.broadcast %cst_10 : f32 to vector<1x32xf32>
    %18 = arith.addf %15, %17 : vector<1x32xf32>
    %19 = math.rsqrt %18 : vector<1x32xf32>
    %20 = arith.mulf %16, %19 : vector<1x32xf32>
    %c0_11 = arith.constant 0 : index
    %c0_12 = arith.constant 0 : index
    %21 = vector.load %arg3[%c0_11, %c0_12] : memref<1x32xf32, #tpu.memory_space<vmem>>, vector<1x32xf32>
    %22 = arith.mulf %9, %20 : vector<1x32xf32>
    %23 = arith.subf %21, %22 : vector<1x32xf32>
    %24 = vector.broadcast %20 : vector<1x32xf32> to vector<32x32xf32>
    %25 = arith.mulf %2, %24 : vector<32x32xf32>
    %26 = vector.broadcast %23 : vector<1x32xf32> to vector<32x32xf32>
    %27 = arith.addf %25, %26 : vector<32x32xf32>
    %c0_13 = arith.constant 0 : index
    %c0_14 = arith.constant 0 : index
    %28 = vector.load %arg4[%c0_13, %c0_14] : memref<32x32xbf16, #tpu.memory_space<vmem>>, vector<32x32xbf16>
    %29 = arith.extf %28 : vector<32x32xbf16> to vector<32x32xf32>
    %30 = arith.addf %27, %29 : vector<32x32xf32>
    %cst_15 = arith.constant 0.000000e+00 : f32
    %31 = vector.broadcast %cst_15 : f32 to vector<32x32xf32>
    %32 = arith.maximumf %30, %31 : vector<32x32xf32>
    %33 = arith.truncf %32 : vector<32x32xf32> to vector<32x32xbf16>
    %c0_16 = arith.constant 0 : index
    %c0_17 = arith.constant 0 : index
    %34 = vector.load %arg5[%c0_16, %c0_17] : memref<32x32xbf16, #tpu.memory_space<vmem>>, vector<32x32xbf16>
    tpu.vector_store %arg5[%c0_16, %c0_17], %33 {strides = array<i32>} : memref<32x32xbf16, #tpu.memory_space<vmem>>, vector<32x32xbf16>,
    return
  }
}

module attributes {stable_mosaic.version = 11 : i64} {
  func.func @kernel(%arg0: memref<32x288xbf16, #tpu.memory_space<vmem>>, %arg1: memref<288x32xbf16, #tpu.memory_space<vmem>>, %arg2: memref<1x32xf32, #tpu.memory_space<vmem>>, %arg3: memref<1x32xf32, #tpu.memory_space<vmem>>, %arg4: memref<32x32xbf16, #tpu.memory_space<vmem>>) attributes {dimension_semantics = [], scalar_prefetch = 0 : i64, scratch_operands = 0 : i64, tpu.core_type = #tpu.core_type<tc>} {
    %c0 = arith.constant 0 : index
    %c0_0 = arith.constant 0 : index
    %0 = vector.load %arg0[%c0, %c0_0] : memref<32x288xbf16, #tpu.memory_space<vmem>>, vector<32x288xbf16>
    %c0_1 = arith.constant 0 : index
    %c0_2 = arith.constant 0 : index
    %1 = vector.load %arg1[%c0_1, %c0_2] : memref<288x32xbf16, #tpu.memory_space<vmem>>, vector<288x32xbf16>
    %cst = arith.constant dense<0.000000e+00> : vector<32x32xf32>
    %2 = tpu.matmul %0, %1, %cst {dimension_numbers = #tpu.dot_dimension_numbers<[1], [0], [0], [1], [0, 0, 1, 1], [], []>} : vector<32x288xbf16>, vector<288x32xbf16>, vector<32x32xf32> -> vector<32x32xf32>
    %cst_3 = arith.constant dense<0.000000e+00> : vector<32xf32>
    %3 = vector.multi_reduction <add>, %2, %cst_3 [0] : vector<32x32xf32> to vector<32xf32>
    %4 = vector.shape_cast %3 : vector<32xf32> to vector<1x32xf32>
    %5 = arith.mulf %2, %2 : vector<32x32xf32>
    %cst_4 = arith.constant dense<0.000000e+00> : vector<32xf32>
    %6 = vector.multi_reduction <add>, %5, %cst_4 [0] : vector<32x32xf32> to vector<32xf32>
    %7 = vector.shape_cast %6 : vector<32xf32> to vector<1x32xf32>
    %cst_5 = arith.constant 3.125000e-02 : f32
    %8 = vector.broadcast %cst_5 : f32 to vector<1x32xf32>
    %9 = arith.mulf %4, %8 : vector<1x32xf32>
    %cst_6 = arith.constant 3.125000e-02 : f32
    %10 = vector.broadcast %cst_6 : f32 to vector<1x32xf32>
    %11 = arith.mulf %7, %10 : vector<1x32xf32>
    %12 = arith.mulf %9, %9 : vector<1x32xf32>
    %13 = arith.subf %11, %12 : vector<1x32xf32>
    %cst_7 = arith.constant 0.000000e+00 : f32
    %14 = vector.broadcast %cst_7 : f32 to vector<1x32xf32>
    %15 = arith.maximumf %13, %14 : vector<1x32xf32>
    %c0_8 = arith.constant 0 : index
    %c0_9 = arith.constant 0 : index
    %16 = vector.load %arg2[%c0_8, %c0_9] : memref<1x32xf32, #tpu.memory_space<vmem>>, vector<1x32xf32>
    %cst_10 = arith.constant 9.99999974E-6 : f32
    %17 = vector.broadcast %cst_10 : f32 to vector<1x32xf32>
    %18 = arith.addf %15, %17 : vector<1x32xf32>
    %19 = math.rsqrt %18 : vector<1x32xf32>
    %20 = arith.mulf %16, %19 : vector<1x32xf32>
    %c0_11 = arith.constant 0 : index
    %c0_12 = arith.constant 0 : index
    %21 = vector.load %arg3[%c0_11, %c0_12] : memref<1x32xf32, #tpu.memory_space<vmem>>, vector<1x32xf32>
    %22 = arith.mulf %9, %20 : vector<1x32xf32>
    %23 = arith.subf %21, %22 : vector<1x32xf32>
    %24 = vector.broadcast %20 : vector<1x32xf32> to vector<32x32xf32>
    %25 = arith.mulf %2, %24 : vector<32x32xf32>
    %26 = vector.broadcast %23 : vector<1x32xf32> to vector<32x32xf32>
    %27 = arith.addf %25, %26 : vector<32x32xf32>
    %cst_13 = arith.constant 0.000000e+00 : f32
    %28 = vector.broadcast %cst_13 : f32 to vector<32x32xf32>
    %29 = arith.maximumf %27, %28 : vector<32x32xf32>
    %30 = arith.truncf %29 : vector<32x32xf32> to vector<32x32xbf16>
    %c0_14 = arith.constant 0 : index
    %c0_15 = arith.constant 0 : index
    %31 = vector.load %arg4[%c0_14, %c0_15] : memref<32x32xbf16, #tpu.memory_space<vmem>>, vector<32x32xbf16>
    tpu.vector_store %arg4[%c0_14, %c0_15], %30 {strides = array<i32>} : memref<32x32xbf16, #tpu.memory_space<vmem>>, vector<32x32xbf16>,
    return
  }
}

module attributes {stable_mosaic.version = 11 : i64} {
  func.func @kernel(%arg0: memref<32x128xbf16, #tpu.memory_space<vmem>>, %arg1: memref<128x64xbf16, #tpu.memory_space<vmem>>, %arg2: memref<1x64xf32, #tpu.memory_space<vmem>>, %arg3: memref<1x64xf32, #tpu.memory_space<vmem>>, %arg4: memref<64x64xf32, #tpu.memory_space<vmem>>, %arg5: memref<32x64xbf16, #tpu.memory_space<vmem>>) attributes {dimension_semantics = [], scalar_prefetch = 0 : i64, scratch_operands = 0 : i64, tpu.core_type = #tpu.core_type<tc>} {
    %c0 = arith.constant 0 : index
    %c0_0 = arith.constant 0 : index
    %0 = vector.load %arg0[%c0, %c0_0] : memref<32x128xbf16, #tpu.memory_space<vmem>>, vector<32x128xbf16>
    %c0_1 = arith.constant 0 : index
    %c0_2 = arith.constant 0 : index
    %1 = vector.load %arg1[%c0_1, %c0_2] : memref<128x64xbf16, #tpu.memory_space<vmem>>, vector<128x64xbf16>
    %cst = arith.constant dense<0.000000e+00> : vector<32x64xf32>
    %2 = tpu.matmul %0, %1, %cst {dimension_numbers = #tpu.dot_dimension_numbers<[1], [0], [0], [1], [0, 0, 1, 1], [], []>} : vector<32x128xbf16>, vector<128x64xbf16>, vector<32x64xf32> -> vector<32x64xf32>
    %cst_3 = arith.constant dense<0.000000e+00> : vector<64xf32>
    %3 = vector.multi_reduction <add>, %2, %cst_3 [0] : vector<32x64xf32> to vector<64xf32>
    %4 = vector.shape_cast %3 : vector<64xf32> to vector<1x64xf32>
    %5 = arith.mulf %2, %2 : vector<32x64xf32>
    %cst_4 = arith.constant dense<0.000000e+00> : vector<64xf32>
    %6 = vector.multi_reduction <add>, %5, %cst_4 [0] : vector<32x64xf32> to vector<64xf32>
    %7 = vector.shape_cast %6 : vector<64xf32> to vector<1x64xf32>
    %c0_5 = arith.constant 0 : index
    %c0_6 = arith.constant 0 : index
    %8 = vector.load %arg4[%c0_5, %c0_6] : memref<64x64xf32, #tpu.memory_space<vmem>>, vector<64x64xf32>
    %cst_7 = arith.constant dense<0.000000e+00> : vector<1x64xf32>
    %9 = tpu.matmul %4, %8, %cst_7 {dimension_numbers = #tpu.dot_dimension_numbers<[1], [0], [0], [1], [0, 0, 1, 1], [], []>} : vector<1x64xf32>, vector<64x64xf32>, vector<1x64xf32> -> vector<1x64xf32>
    %cst_8 = arith.constant dense<0.000000e+00> : vector<1x64xf32>
    %10 = tpu.matmul %7, %8, %cst_8 {dimension_numbers = #tpu.dot_dimension_numbers<[1], [0], [0], [1], [0, 0, 1, 1], [], []>} : vector<1x64xf32>, vector<64x64xf32>, vector<1x64xf32> -> vector<1x64xf32>
    %cst_9 = arith.constant 7.812500e-03 : f32
    %11 = vector.broadcast %cst_9 : f32 to vector<1x64xf32>
    %12 = arith.mulf %9, %11 : vector<1x64xf32>
    %cst_10 = arith.constant 7.812500e-03 : f32
    %13 = vector.broadcast %cst_10 : f32 to vector<1x64xf32>
    %14 = arith.mulf %10, %13 : vector<1x64xf32>
    %15 = arith.mulf %12, %12 : vector<1x64xf32>
    %16 = arith.subf %14, %15 : vector<1x64xf32>
    %cst_11 = arith.constant 0.000000e+00 : f32
    %17 = vector.broadcast %cst_11 : f32 to vector<1x64xf32>
    %18 = arith.maximumf %16, %17 : vector<1x64xf32>
    %c0_12 = arith.constant 0 : index
    %c0_13 = arith.constant 0 : index
    %19 = vector.load %arg2[%c0_12, %c0_13] : memref<1x64xf32, #tpu.memory_space<vmem>>, vector<1x64xf32>
    %cst_14 = arith.constant 9.99999974E-6 : f32
    %20 = vector.broadcast %cst_14 : f32 to vector<1x64xf32>
    %21 = arith.addf %18, %20 : vector<1x64xf32>
    %22 = math.rsqrt %21 : vector<1x64xf32>
    %23 = arith.mulf %19, %22 : vector<1x64xf32>
    %c0_15 = arith.constant 0 : index
    %c0_16 = arith.constant 0 : index
    %24 = vector.load %arg3[%c0_15, %c0_16] : memref<1x64xf32, #tpu.memory_space<vmem>>, vector<1x64xf32>
    %25 = arith.mulf %12, %23 : vector<1x64xf32>
    %26 = arith.subf %24, %25 : vector<1x64xf32>
    %27 = vector.broadcast %23 : vector<1x64xf32> to vector<32x64xf32>
    %28 = arith.mulf %2, %27 : vector<32x64xf32>
    %29 = vector.broadcast %26 : vector<1x64xf32> to vector<32x64xf32>
    %30 = arith.addf %28, %29 : vector<32x64xf32>
    %cst_17 = arith.constant 0.000000e+00 : f32
    %31 = vector.broadcast %cst_17 : f32 to vector<32x64xf32>
    %32 = arith.maximumf %30, %31 : vector<32x64xf32>
    %33 = arith.truncf %32 : vector<32x64xf32> to vector<32x64xbf16>
    %c0_18 = arith.constant 0 : index
    %c0_19 = arith.constant 0 : index
    %34 = vector.load %arg5[%c0_18, %c0_19] : memref<32x64xbf16, #tpu.memory_space<vmem>>, vector<32x64xbf16>
    tpu.vector_store %arg5[%c0_18, %c0_19], %33 {strides = array<i32>} : memref<32x64xbf16, #tpu.memory_space<vmem>>, vector<32x64xbf16>,
    return
  }
}

module attributes {stable_mosaic.version = 11 : i64} {
  func.func @kernel(%arg0: memref<128x64xbf16, #tpu.memory_space<vmem>>, %arg1: memref<64x32xbf16, #tpu.memory_space<vmem>>, %arg2: memref<1x32xf32, #tpu.memory_space<vmem>>, %arg3: memref<1x32xf32, #tpu.memory_space<vmem>>, %arg4: memref<32x32xf32, #tpu.memory_space<vmem>>, %arg5: memref<128x32xbf16, #tpu.memory_space<vmem>>) attributes {dimension_semantics = [], scalar_prefetch = 0 : i64, scratch_operands = 0 : i64, tpu.core_type = #tpu.core_type<tc>} {
    %c0 = arith.constant 0 : index
    %c0_0 = arith.constant 0 : index
    %0 = vector.load %arg0[%c0, %c0_0] : memref<128x64xbf16, #tpu.memory_space<vmem>>, vector<128x64xbf16>
    %c0_1 = arith.constant 0 : index
    %c0_2 = arith.constant 0 : index
    %1 = vector.load %arg1[%c0_1, %c0_2] : memref<64x32xbf16, #tpu.memory_space<vmem>>, vector<64x32xbf16>
    %cst = arith.constant dense<0.000000e+00> : vector<128x32xf32>
    %2 = tpu.matmul %0, %1, %cst {dimension_numbers = #tpu.dot_dimension_numbers<[1], [0], [0], [1], [0, 0, 1, 1], [], []>} : vector<128x64xbf16>, vector<64x32xbf16>, vector<128x32xf32> -> vector<128x32xf32>
    %cst_3 = arith.constant dense<0.000000e+00> : vector<32xf32>
    %3 = vector.multi_reduction <add>, %2, %cst_3 [0] : vector<128x32xf32> to vector<32xf32>
    %4 = vector.shape_cast %3 : vector<32xf32> to vector<1x32xf32>
    %5 = arith.mulf %2, %2 : vector<128x32xf32>
    %cst_4 = arith.constant dense<0.000000e+00> : vector<32xf32>
    %6 = vector.multi_reduction <add>, %5, %cst_4 [0] : vector<128x32xf32> to vector<32xf32>
    %7 = vector.shape_cast %6 : vector<32xf32> to vector<1x32xf32>
    %c0_5 = arith.constant 0 : index
    %c0_6 = arith.constant 0 : index
    %8 = vector.load %arg4[%c0_5, %c0_6] : memref<32x32xf32, #tpu.memory_space<vmem>>, vector<32x32xf32>
    %cst_7 = arith.constant dense<0.000000e+00> : vector<1x32xf32>
    %9 = tpu.matmul %4, %8, %cst_7 {dimension_numbers = #tpu.dot_dimension_numbers<[1], [0], [0], [1], [0, 0, 1, 1], [], []>} : vector<1x32xf32>, vector<32x32xf32>, vector<1x32xf32> -> vector<1x32xf32>
    %cst_8 = arith.constant dense<0.000000e+00> : vector<1x32xf32>
    %10 = tpu.matmul %7, %8, %cst_8 {dimension_numbers = #tpu.dot_dimension_numbers<[1], [0], [0], [1], [0, 0, 1, 1], [], []>} : vector<1x32xf32>, vector<32x32xf32>, vector<1x32xf32> -> vector<1x32xf32>
    %cst_9 = arith.constant 0.001953125 : f32
    %11 = vector.broadcast %cst_9 : f32 to vector<1x32xf32>
    %12 = arith.mulf %9, %11 : vector<1x32xf32>
    %cst_10 = arith.constant 0.001953125 : f32
    %13 = vector.broadcast %cst_10 : f32 to vector<1x32xf32>
    %14 = arith.mulf %10, %13 : vector<1x32xf32>
    %15 = arith.mulf %12, %12 : vector<1x32xf32>
    %16 = arith.subf %14, %15 : vector<1x32xf32>
    %cst_11 = arith.constant 0.000000e+00 : f32
    %17 = vector.broadcast %cst_11 : f32 to vector<1x32xf32>
    %18 = arith.maximumf %16, %17 : vector<1x32xf32>
    %c0_12 = arith.constant 0 : index
    %c0_13 = arith.constant 0 : index
    %19 = vector.load %arg2[%c0_12, %c0_13] : memref<1x32xf32, #tpu.memory_space<vmem>>, vector<1x32xf32>
    %cst_14 = arith.constant 9.99999974E-6 : f32
    %20 = vector.broadcast %cst_14 : f32 to vector<1x32xf32>
    %21 = arith.addf %18, %20 : vector<1x32xf32>
    %22 = math.rsqrt %21 : vector<1x32xf32>
    %23 = arith.mulf %19, %22 : vector<1x32xf32>
    %c0_15 = arith.constant 0 : index
    %c0_16 = arith.constant 0 : index
    %24 = vector.load %arg3[%c0_15, %c0_16] : memref<1x32xf32, #tpu.memory_space<vmem>>, vector<1x32xf32>
    %25 = arith.mulf %12, %23 : vector<1x32xf32>
    %26 = arith.subf %24, %25 : vector<1x32xf32>
    %27 = vector.broadcast %23 : vector<1x32xf32> to vector<128x32xf32>
    %28 = arith.mulf %2, %27 : vector<128x32xf32>
    %29 = vector.broadcast %26 : vector<1x32xf32> to vector<128x32xf32>
    %30 = arith.addf %28, %29 : vector<128x32xf32>
    %cst_17 = arith.constant 0.000000e+00 : f32
    %31 = vector.broadcast %cst_17 : f32 to vector<128x32xf32>
    %32 = arith.maximumf %30, %31 : vector<128x32xf32>
    %33 = arith.truncf %32 : vector<128x32xf32> to vector<128x32xbf16>
    %c0_18 = arith.constant 0 : index
    %c0_19 = arith.constant 0 : index
    %34 = vector.load %arg5[%c0_18, %c0_19] : memref<128x32xbf16, #tpu.memory_space<vmem>>, vector<128x32xbf16>
    tpu.vector_store %arg5[%c0_18, %c0_19], %33 {strides = array<i32>} : memref<128x32xbf16, #tpu.memory_space<vmem>>, vector<128x32xbf16>,
    return
  }
}

module attributes {stable_mosaic.version = 11 : i64} {
  func.func @_outconv_kernel(%arg0: memref<512x400xbf16, #tpu.memory_space<vmem>>, %arg1: memref<400x3xbf16, #tpu.memory_space<vmem>>, %arg2: memref<1x3xf32, #tpu.memory_space<vmem>>, %arg3: memref<512x3xf32, #tpu.memory_space<vmem>>) attributes {dimension_semantics = [], scalar_prefetch = 0 : i64, scratch_operands = 0 : i64, tpu.core_type = #tpu.core_type<tc>} {
    %c0 = arith.constant 0 : index
    %c0_0 = arith.constant 0 : index
    %0 = vector.load %arg0[%c0, %c0_0] : memref<512x400xbf16, #tpu.memory_space<vmem>>, vector<512x400xbf16>
    %c0_1 = arith.constant 0 : index
    %c0_2 = arith.constant 0 : index
    %1 = vector.load %arg1[%c0_1, %c0_2] : memref<400x3xbf16, #tpu.memory_space<vmem>>, vector<400x3xbf16>
    %cst = arith.constant dense<0.000000e+00> : vector<512x3xf32>
    %2 = tpu.matmul %0, %1, %cst {dimension_numbers = #tpu.dot_dimension_numbers<[1], [0], [0], [1], [0, 0, 1, 1], [], []>} : vector<512x400xbf16>, vector<400x3xbf16>, vector<512x3xf32> -> vector<512x3xf32>
    %c0_3 = arith.constant 0 : index
    %c0_4 = arith.constant 0 : index
    %3 = vector.load %arg2[%c0_3, %c0_4] : memref<1x3xf32, #tpu.memory_space<vmem>>, vector<1x3xf32>
    %4 = vector.broadcast %3 : vector<1x3xf32> to vector<512x3xf32>
    %5 = arith.addf %2, %4 : vector<512x3xf32>
    %6 = math.tanh %5 : vector<512x3xf32>
    %c0_5 = arith.constant 0 : index
    %c0_6 = arith.constant 0 : index
    %7 = vector.load %arg3[%c0_5, %c0_6] : memref<512x3xf32, #tpu.memory_space<vmem>>, vector<512x3xf32>
    tpu.vector_store %arg3[%c0_5, %c0_6], %6 {strides = array<i32>} : memref<512x3xf32, #tpu.memory_space<vmem>>, vector<512x3xf32>,
    return
  }
}

</mosaic_0001>

<llo_original>
// kernel: g_net_forward.11
$region0: #{g_net_forward.11}
  #allocation0 [shape = 'u32[]', space=smem, size = 0x4, offset = 0x4, fixed_abs, tag = 'smem constant byte address 0x4 - core index']
  #allocation1 [shape = 'u32[144,128]{1,0:T(1,128)}', space=vmem, size = 0x12000, scoped, tag = 'internal scratch']
  %s0 = inlined_call_operand.vmem [shape: bf16[128,80], index: 0, kind: input, shape index: {}]
  %s1 = inlined_call_operand.vmem [shape: bf16[80,16], index: 1, kind: input, shape index: {}]
  %s2 = inlined_call_operand.vmem [shape: f32[1,16], index: 2, kind: input, shape index: {}]
  %s3 = inlined_call_operand.vmem [shape: f32[1,16], index: 3, kind: input, shape index: {}]
  %s4 = inlined_call_operand.vmem [shape: bf16[128,16], index: 4, kind: output, shape index: {}]
  %s5 = sld [smem:[#allocation0]]
  $region26: #{g_net_forward.11} parent=0
    _
  %s7 = ssub.s32 1, %s5
  %s8 = scalar_select 0, %s7, %s5
  // Predicated region
  $region2: #{g_net_forward.11} parent=0 // pred_check
    _
  $region3: #{g_net_forward.11} parent=0 // pred_check_branch
    %10 = sbr.rel (0) target = $region5
  $region4: #{g_net_forward.11} parent=0 // pred_region
    _
  $region5: #{g_net_forward.11} parent=0 // pred_fallthru
    _
  // Predicated region
  $region6: #{g_net_forward.11} parent=0 // pred_check
    _
  $region7: #{g_net_forward.11} parent=0 // pred_check_branch
    %12 = sbr.rel (0) target = $region9
  $region8: #{g_net_forward.11} parent=0 // pred_region
    _
  $region9: #{g_net_forward.11} parent=0 // pred_fallthru
    _
  // Predicated region
  $region10: #{g_net_forward.11} parent=0 // pred_check
    _
  $region11: #{g_net_forward.11} parent=0 // pred_check_branch
    %14 = sbr.rel (0) target = $region13
  $region12: #{g_net_forward.11} parent=0 // pred_region
    _
  $region13: #{g_net_forward.11} parent=0 // pred_fallthru
    _
  // Predicated region
  $region14: #{g_net_forward.11} parent=0 // pred_check
    _
  $region15: #{g_net_forward.11} parent=0 // pred_check_branch
    %16 = sbr.rel (0) target = $region17
  $region16: #{g_net_forward.11} parent=0 // pred_region
    _
  $region17: #{g_net_forward.11} parent=0 // pred_fallthru
    _
  %v18 = vld [vmem:[%s0] sm:$0xf]
  %v19 = vld [vmem:[%s0 + $0x4] sm:$0xf]
  %v20 = vld [vmem:[%s0 + $0x8] sm:$0xf]
  %v21 = vld [vmem:[%s0 + $0xc] sm:$0xf]
  %v22 = vld [vmem:[%s0 + $0x10] sm:$0xf]
  %v23 = vld [vmem:[%s0 + $0x14] sm:$0xf]
  %v24 = vld [vmem:[%s0 + $0x18] sm:$0xf]
  %v25 = vld [vmem:[%s0 + $0x1c] sm:$0xf]
  %v26 = vld [vmem:[%s0 + $0x20] sm:$0xf]
  %v27 = vld [vmem:[%s0 + $0x24] sm:$0xf]
  %v28 = vld [vmem:[%s0 + $0x28] sm:$0xf]
  %v29 = vld [vmem:[%s0 + $0x2c] sm:$0xf]
  %v30 = vld [vmem:[%s0 + $0x30] sm:$0xf]
  %v31 = vld [vmem:[%s0 + $0x34] sm:$0xf]
  %v32 = vld [vmem:[%s0 + $0x38] sm:$0xf]
  %v33 = vld [vmem:[%s0 + $0x3c] sm:$0xf]
  %v34 = vld [vmem:[%s1] sm:$0xf]
  %v35 = vld [vmem:[%s1 + $0x4] sm:$0xf]
  %v36 = vld [vmem:[%s1 + $0x8] sm:$0xf]
  %v37 = vld [vmem:[%s1 + $0xc] sm:$0xf]
  %v38 = vld [vmem:[%s1 + $0x10] sm:$0xf]
  %v39 = vld [vmem:[%s1 + $0x14] sm:$0xf]
  %v40 = vld [vmem:[%s1 + $0x18] sm:$0xf]
  %v41 = vld [vmem:[%s1 + $0x1c] sm:$0xf]
  %v42 = vld [vmem:[%s1 + $0x20] sm:$0xf]
  %v43 = vld [vmem:[%s1 + $0x24] sm:$0xf]
  %v60 = vunpack.c.l.b16 %v18
  %v61 = vunpack.c.l.b16 %v19
  %v62 = vunpack.c.l.b16 %v20
  %v63 = vunpack.c.l.b16 %v21
  %v64 = vunpack.c.l.b16 %v22
  %v65 = vunpack.c.l.b16 %v23
  %v66 = vunpack.c.l.b16 %v24
  %v67 = vunpack.c.l.b16 %v25
  %v68 = vunpack.c.l.b16 %v26
  %v69 = vunpack.c.l.b16 %v27
  %v70 = vunpack.c.l.b16 %v28
  %v71 = vunpack.c.l.b16 %v29
  %v72 = vunpack.c.l.b16 %v30
  %v73 = vunpack.c.l.b16 %v31
  %v74 = vunpack.c.l.b16 %v32
  %v75 = vunpack.c.l.b16 %v33
  %v76 = vpack.c.b16 %v61, %v60
  %v77 = vpack.c.b16 %v63, %v62
  %v78 = vpack.c.b16 %v65, %v64
  %v79 = vpack.c.b16 %v67, %v66
  %v80 = vpack.c.b16 %v69, %v68
  %v81 = vpack.c.b16 %v71, %v70
  %v82 = vpack.c.b16 %v73, %v72
  %v83 = vpack.c.b16 %v75, %v74
  %v94 = vunpack.c.l.b16 %v34
  %v95 = vunpack.c.l.b16 %v35
  %v96 = vunpack.c.l.b16 %v36
  %v97 = vunpack.c.l.b16 %v37
  %v98 = vunpack.c.l.b16 %v38
  %v99 = vunpack.c.l.b16 %v39
  %v100 = vunpack.c.l.b16 %v40
  %v101 = vunpack.c.l.b16 %v41
  %v102 = vunpack.c.l.b16 %v42
  %v103 = vunpack.c.l.b16 %v43
  %v104 = vpack.c.b16 %v95, %v94
  %v105 = vpack.c.b16 %v97, %v96
  %v106 = vpack.c.b16 %v99, %v98
  %v107 = vpack.c.b16 %v101, %v100
  %v108 = vpack.c.b16 %v103, %v102
  %vm114 = vcmask 654336
  %v116 = vsel %vm114, %v76, 0
  %v119 = vsel %vm114, %v77, 0
  %v122 = vsel %vm114, %v78, 0
  %v125 = vsel %vm114, %v79, 0
  %v128 = vsel %vm114, %v80, 0
  %v131 = vsel %vm114, %v81, 0
  %v134 = vsel %vm114, %v82, 0
  %v137 = vsel %vm114, %v83, 0
  %139 = vmatprep.subr.bf16.mxu0 0
  %140 = vmatpush1.bf16.msra.mxu0 %v104
  %141 = vmatprep.subr.bf16.mxu0 0
  %142 = vmatpush1.bf16.msra.mxu0 %v105
  %143 = vmatprep.subr.bf16.mxu0 0
  %144 = vmatpush1.bf16.msra.mxu0 %v106
  %145 = vmatprep.subr.bf16.mxu0 0
  %146 = vmatpush1.bf16.msra.mxu0 %v107
  %147 = vmatprep.subr.bf16.mxu0 0
  %148 = vmatpush1.bf16.msra.mxu0 %v108
  %149 = vmatprep.subr.bf16.mxu0 0
  %150 = vmatpush1.bf16.msra.mxu0 0
  %151 = vmatprep.subr.bf16.mxu0 0
  %152 = vmatpush1.bf16.msra.mxu0 0
  %153 = vmatprep.subr.bf16.mxu0 0
  %154 = vmatpush1.bf16.msra.mxu0 0
  %155 = vmatprep.subr.bf16.mxu0 0
  %156 = vmatpush1.bf16.msra.mxu0 0
  %157 = vmatprep.subr.bf16.mxu0 0
  %158 = vmatpush1.bf16.msra.mxu0 0
  %159 = vmatprep.subr.bf16.mxu0 0
  %160 = vmatpush1.bf16.msra.mxu0 0
  %161 = vmatprep.subr.bf16.mxu0 0
  %162 = vmatpush1.bf16.msra.mxu0 0
  %163 = vmatprep.subr.bf16.mxu0 0
  %164 = vmatpush1.bf16.msra.mxu0 0
  %165 = vmatprep.subr.bf16.mxu0 0
  %166 = vmatpush1.bf16.msra.mxu0 0
  %167 = vmatprep.subr.bf16.mxu0 0
  %168 = vmatpush1.bf16.msra.mxu0 0
  %169 = vmatprep.subr.bf16.mxu0 0
  %170 = vmatpush1.bf16.msra.mxu0 0
  %171 = vmatprep.mubr.bf16.mxu0 0
  %172 = vmatmul.mubr.bf16.gmra.mrb[0].mxu0 %v116
  %v173 = vpop.f32.mrb[0].mxu0
  %v174 = vadd.f32 0.0, %v173
  %v175 = vpop.f32.mrb[0].mxu0
  %v176 = vpop.f32.mrb[0].mxu0
  %v177 = vadd.f32 0.0, %v176
  %v178 = vpop.f32.mrb[0].mxu0
  %179 = vmatprep.mubr.bf16.mxu0 0
  %180 = vmatmul.mubr.bf16.gmra.mrb[0].mxu0 %v119
  %v181 = vpop.f32.mrb[0].mxu0
  %v182 = vadd.f32 0.0, %v181
  %v183 = vpop.f32.mrb[0].mxu0
  %v184 = vpop.f32.mrb[0].mxu0
  %v185 = vadd.f32 0.0, %v184
  %v186 = vpop.f32.mrb[0].mxu0
  %187 = vmatprep.mubr.bf16.mxu0 0
  %188 = vmatmul.mubr.bf16.gmra.mrb[0].mxu0 %v122
  %v189 = vpop.f32.mrb[0].mxu0
  %v190 = vadd.f32 0.0, %v189
  %v191 = vpop.f32.mrb[0].mxu0
  %v192 = vpop.f32.mrb[0].mxu0
  %v193 = vadd.f32 0.0, %v192
  %v194 = vpop.f32.mrb[0].mxu0
  %195 = vmatprep.mubr.bf16.mxu0 0
  %196 = vmatmul.mubr.bf16.gmra.mrb[0].mxu0 %v125
  %v197 = vpop.f32.mrb[0].mxu0
  %v198 = vadd.f32 0.0, %v197
  %v199 = vpop.f32.mrb[0].mxu0
  %v200 = vpop.f32.mrb[0].mxu0
  %v201 = vadd.f32 0.0, %v200
  %v202 = vpop.f32.mrb[0].mxu0
  %203 = vmatprep.mubr.bf16.mxu0 0
  %204 = vmatmul.mubr.bf16.gmra.mrb[0].mxu0 %v128
  %v205 = vpop.f32.mrb[0].mxu0
  %v206 = vadd.f32 0.0, %v205
  %v207 = vpop.f32.mrb[0].mxu0
  %v208 = vpop.f32.mrb[0].mxu0
  %v209 = vadd.f32 0.0, %v208
  %v210 = vpop.f32.mrb[0].mxu0
  %211 = vmatprep.mubr.bf16.mxu0 0
  %212 = vmatmul.mubr.bf16.gmra.mrb[0].mxu0 %v131
  %v213 = vpop.f32.mrb[0].mxu0
  %v214 = vadd.f32 0.0, %v213
  %v215 = vpop.f32.mrb[0].mxu0
  %v216 = vpop.f32.mrb[0].mxu0
  %v217 = vadd.f32 0.0, %v216
  %v218 = vpop.f32.mrb[0].mxu0
  %219 = vmatprep.mubr.bf16.mxu0 0
  %220 = vmatmul.mubr.bf16.gmra.mrb[0].mxu0 %v134
  %v221 = vpop.f32.mrb[0].mxu0
  %v222 = vadd.f32 0.0, %v221
  %v223 = vpop.f32.mrb[0].mxu0
  %v224 = vpop.f32.mrb[0].mxu0
  %v225 = vadd.f32 0.0, %v224
  %v226 = vpop.f32.mrb[0].mxu0
  %227 = vmatprep.mubr.bf16.mxu0 0
  %228 = vmatmul.mubr.bf16.gmra.mrb[0].mxu0 %v137
  %v229 = vpop.f32.mrb[0].mxu0
  %v230 = vadd.f32 0.0, %v229
  %v231 = vpop.f32.mrb[0].mxu0
  %v232 = vpop.f32.mrb[0].mxu0
  %v233 = vadd.f32 0.0, %v232
  %v234 = vpop.f32.mrb[0].mxu0
  %235 = vdwg.mxu0
  %vm236 = vcmask 130048
  %v237 = vsel %vm236, %v174, 0.0
  %v238 = vsel %vm236, %v177, 0.0
  %v239 = vadd.f32 %v237, %v238
  %v240 = vsel %vm236, %v182, 0.0
  %v241 = vadd.f32 %v239, %v240
  %v242 = vsel %vm236, %v185, 0.0
  %v243 = vadd.f32 %v241, %v242
  %v244 = vsel %vm236, %v190, 0.0
  %v245 = vadd.f32 %v243, %v244
  %v246 = vsel %vm236, %v193, 0.0
  %v247 = vadd.f32 %v245, %v246
  %v248 = vsel %vm236, %v198, 0.0
  %v249 = vadd.f32 %v247, %v248
  %v250 = vsel %vm236, %v201, 0.0
  %v251 = vadd.f32 %v249, %v250
  %v252 = vsel %vm236, %v206, 0.0
  %v253 = vadd.f32 %v251, %v252
  %v254 = vsel %vm236, %v209, 0.0
  %v255 = vadd.f32 %v253, %v254
  %v256 = vsel %vm236, %v214, 0.0
  %v257 = vadd.f32 %v255, %v256
  %v258 = vsel %vm236, %v217, 0.0
  %v259 = vadd.f32 %v257, %v258
  %v260 = vsel %vm236, %v222, 0.0
  %v261 = vadd.f32 %v259, %v260
  %v262 = vsel %vm236, %v225, 0.0
  %v263 = vadd.f32 %v261, %v262
  %v264 = vsel %vm236, %v230, 0.0
  %v265 = vadd.f32 %v263, %v264
  %v266 = vsel %vm236, %v233, 0.0
  %v267 = vadd.f32 %v265, %v266
  %v268 = vrot.slane %v267, 4
  %v269 = vadd.f32 %v267, %v268
  %v270 = vrot.slane %v269, 2
  %v271 = vadd.f32 %v269, %v270
  %v272 = vrot.slane %v271, 1
  %v273 = vadd.f32 %v271, %v272
  %v274 = vmul.f32 %v174, %v174
  %v275 = vmul.f32 %v177, %v177
  %v276 = vmul.f32 %v182, %v182
  %v277 = vmul.f32 %v185, %v185
  %v278 = vmul.f32 %v190, %v190
  %v279 = vmul.f32 %v193, %v193
  %v280 = vmul.f32 %v198, %v198
  %v281 = vmul.f32 %v201, %v201
  %v282 = vmul.f32 %v206, %v206
  %v283 = vmul.f32 %v209, %v209
  %v284 = vmul.f32 %v214, %v214
  %v285 = vmul.f32 %v217, %v217
  %v286 = vmul.f32 %v222, %v222
  %v287 = vmul.f32 %v225, %v225
  %v288 = vmul.f32 %v230, %v230
  %v289 = vmul.f32 %v233, %v233
  %v290 = vsel %vm236, %v274, 0.0
  %v291 = vsel %vm236, %v275, 0.0
  %v292 = vadd.f32 %v290, %v291
  %v293 = vsel %vm236, %v276, 0.0
  %v294 = vadd.f32 %v292, %v293
  %v295 = vsel %vm236, %v277, 0.0
  %v296 = vadd.f32 %v294, %v295
  %v297 = vsel %vm236, %v278, 0.0
  %v298 = vadd.f32 %v296, %v297
  %v299 = vsel %vm236, %v279, 0.0
  %v300 = vadd.f32 %v298, %v299
  %v301 = vsel %vm236, %v280, 0.0
  %v302 = vadd.f32 %v300, %v301
  %v303 = vsel %vm236, %v281, 0.0
  %v304 = vadd.f32 %v302, %v303
  %v305 = vsel %vm236, %v282, 0.0
  %v306 = vadd.f32 %v304, %v305
  %v307 = vsel %vm236, %v283, 0.0
  %v308 = vadd.f32 %v306, %v307
  %v309 = vsel %vm236, %v284, 0.0
  %v310 = vadd.f32 %v308, %v309
  %v311 = vsel %vm236, %v285, 0.0
  %v312 = vadd.f32 %v310, %v311
  %v313 = vsel %vm236, %v286, 0.0
  %v314 = vadd.f32 %v312, %v313
  %v315 = vsel %vm236, %v287, 0.0
  %v316 = vadd.f32 %v314, %v315
  %v317 = vsel %vm236, %v288, 0.0
  %v318 = vadd.f32 %v316, %v317
  %v319 = vsel %vm236, %v289, 0.0
  %v320 = vadd.f32 %v318, %v319
  %v321 = vrot.slane %v320, 4
  %v322 = vadd.f32 %v320, %v321
  %v323 = vrot.slane %v322, 2
  %v324 = vadd.f32 %v322, %v323
  %v325 = vrot.slane %v324, 1
  %v326 = vadd.f32 %v324, %v325
  %v327 = vmul.f32 %v273, 0.0078125
  %v328 = vmul.f32 %v326, 0.0078125
  %v329 = vmul.f32 %v327, %v327
  %v330 = vsub.f32 %v328, %v329
  %v331 = vmax.f32 %v330, 0.0
  %v332 = vld [vmem:[%s2] sm:$0x1]
  %v333 = vadd.f32 %v331, 1e-05
  %v334 = vrsqrt.pop %v333
  %v335 = vmul.f32 %v332, %v334
  %v336 = vld [vmem:[%s3] sm:$0x1]
  %v337 = vmul.f32 %v327, %v335
  %v338 = vsub.f32 %v336, %v337
  %v340 = vlaneseq
  %v341 = vshrl.u32 %v340, 7
  %v342 = vsub.s32 0, %v341
  %v343 = vrot.slane %v335, %v342
  %v345 = vmul.f32 %v174, %v343
  %v346 = vmul.f32 %v177, %v343
  %v347 = vmul.f32 %v182, %v343
  %v348 = vmul.f32 %v185, %v343
  %v349 = vmul.f32 %v190, %v343
  %v350 = vmul.f32 %v193, %v343
  %v351 = vmul.f32 %v198, %v343
  %v352 = vmul.f32 %v201, %v343
  %v353 = vmul.f32 %v206, %v343
  %v354 = vmul.f32 %v209, %v343
  %v355 = vmul.f32 %v214, %v343
  %v356 = vmul.f32 %v217, %v343
  %v357 = vmul.f32 %v222, %v343
  %v358 = vmul.f32 %v225, %v343
  %v359 = vmul.f32 %v230, %v343
  %v360 = vmul.f32 %v233, %v343
  %v362 = vlaneseq
  %v363 = vshrl.u32 %v362, 7
  %v364 = vsub.s32 0, %v363
  %v365 = vrot.slane %v338, %v364
  %v367 = vadd.f32 %v345, %v365
  %v368 = vadd.f32 %v346, %v365
  %v369 = vadd.f32 %v347, %v365
  %v370 = vadd.f32 %v348, %v365
  %v371 = vadd.f32 %v349, %v365
  %v372 = vadd.f32 %v350, %v365
  %v373 = vadd.f32 %v351, %v365
  %v374 = vadd.f32 %v352, %v365
  %v375 = vadd.f32 %v353, %v365
  %v376 = vadd.f32 %v354, %v365
  %v377 = vadd.f32 %v355, %v365
  %v378 = vadd.f32 %v356, %v365
  %v379 = vadd.f32 %v357, %v365
  %v380 = vadd.f32 %v358, %v365
  %v381 = vadd.f32 %v359, %v365
  %v382 = vadd.f32 %v360, %v365
  %v383 = vmax.f32 %v367, 0.0
  %v384 = vmax.f32 %v368, 0.0
  %v385 = vmax.f32 %v369, 0.0
  %v386 = vmax.f32 %v370, 0.0
  %v387 = vmax.f32 %v371, 0.0
  %v388 = vmax.f32 %v372, 0.0
  %v389 = vmax.f32 %v373, 0.0
  %v390 = vmax.f32 %v374, 0.0
  %v391 = vmax.f32 %v375, 0.0
  %v392 = vmax.f32 %v376, 0.0
  %v393 = vmax.f32 %v377, 0.0
  %v394 = vmax.f32 %v378, 0.0
  %v395 = vmax.f32 %v379, 0.0
  %v396 = vmax.f32 %v380, 0.0
  %v397 = vmax.f32 %v381, 0.0
  %v398 = vmax.f32 %v382, 0.0
  %v399 = vpack.c.bf16 %v384, %v383
  %v400 = vpack.c.bf16 %v386, %v385
  %v401 = vpack.c.bf16 %v388, %v387
  %v402 = vpack.c.bf16 %v390, %v389
  %v403 = vpack.c.bf16 %v392, %v391
  %v404 = vpack.c.bf16 %v394, %v393
  %v405 = vpack.c.bf16 %v396, %v395
  %v406 = vpack.c.bf16 %v398, %v397
  %v415 = vunpack.c.l.b16 %v399
  %v416 = vunpack.c.h.b16 %v399
  %v417 = vunpack.c.l.b16 %v400
  %v418 = vunpack.c.h.b16 %v400
  %v419 = vunpack.c.l.b16 %v401
  %v420 = vunpack.c.h.b16 %v401
  %v421 = vunpack.c.l.b16 %v402
  %v422 = vunpack.c.h.b16 %v402
  %v423 = vunpack.c.l.b16 %v403
  %v424 = vunpack.c.h.b16 %v403
  %v425 = vunpack.c.l.b16 %v404
  %v426 = vunpack.c.h.b16 %v404
  %v427 = vunpack.c.l.b16 %v405
  %v428 = vunpack.c.h.b16 %v405
  %v429 = vunpack.c.l.b16 %v406
  %v430 = vunpack.c.h.b16 %v406
  %v431 = vpack.c.b16 %v415, %v415
  %v432 = vpack.c.b16 %v416, %v416
  %v433 = vpack.c.b16 %v417, %v417
  %v434 = vpack.c.b16 %v418, %v418
  %v435 = vpack.c.b16 %v419, %v419
  %v436 = vpack.c.b16 %v420, %v420
  %v437 = vpack.c.b16 %v421, %v421
  %v438 = vpack.c.b16 %v422, %v422
  %v439 = vpack.c.b16 %v423, %v423
  %v440 = vpack.c.b16 %v424, %v424
  %v441 = vpack.c.b16 %v425, %v425
  %v442 = vpack.c.b16 %v426, %v426
  %v443 = vpack.c.b16 %v427, %v427
  %v444 = vpack.c.b16 %v428, %v428
  %v445 = vpack.c.b16 %v429, %v429
  %v446 = vpack.c.b16 %v430, %v430
  %vm463 = vcmask 125952
  %464 = vst.msk [vmem:[%s4] sm:$0xf] %vm463, %v431
  %465 = vst.msk [vmem:[%s4 + $0x4] sm:$0xf] %vm463, %v432
  %466 = vst.msk [vmem:[%s4 + $0x8] sm:$0xf] %vm463, %v433
  %467 = vst.msk [vmem:[%s4 + $0xc] sm:$0xf] %vm463, %v434
  %468 = vst.msk [vmem:[%s4 + $0x10] sm:$0xf] %vm463, %v435
  %469 = vst.msk [vmem:[%s4 + $0x14] sm:$0xf] %vm463, %v436
  %470 = vst.msk [vmem:[%s4 + $0x18] sm:$0xf] %vm463, %v437
  %471 = vst.msk [vmem:[%s4 + $0x1c] sm:$0xf] %vm463, %v438
  %472 = vst.msk [vmem:[%s4 + $0x20] sm:$0xf] %vm463, %v439
  %473 = vst.msk [vmem:[%s4 + $0x24] sm:$0xf] %vm463, %v440
  %474 = vst.msk [vmem:[%s4 + $0x28] sm:$0xf] %vm463, %v441
  %475 = vst.msk [vmem:[%s4 + $0x2c] sm:$0xf] %vm463, %v442
  %476 = vst.msk [vmem:[%s4 + $0x30] sm:$0xf] %vm463, %v443
  %477 = vst.msk [vmem:[%s4 + $0x34] sm:$0xf] %vm463, %v444
  %478 = vst.msk [vmem:[%s4 + $0x38] sm:$0xf] %vm463, %v445
  %479 = vst.msk [vmem:[%s4 + $0x3c] sm:$0xf] %vm463, %v446
  // Predicated region
  $region18: #{g_net_forward.11} parent=0 // pred_check
    _
  $region19: #{g_net_forward.11} parent=0 // pred_check_branch
    %481 = sbr.rel (0) target = $region21
  $region20: #{g_net_forward.11} parent=0 // pred_region
    _
  $region21: #{g_net_forward.11} parent=0 // pred_fallthru
    _
  // Predicated region
  $region22: #{g_net_forward.11} parent=0 // pred_check
    _
  $region23: #{g_net_forward.11} parent=0 // pred_check_branch
    %483 = sbr.rel (0) target = $region25
  $region24: #{g_net_forward.11} parent=0 // pred_region
    _
  $region25: #{g_net_forward.11} parent=0 // pred_fallthru
    _

// kernel: g_net_forward.10
$region0: #{g_net_forward.10}
  #allocation0 [shape = 'u32[]', space=smem, size = 0x4, offset = 0x4, fixed_abs, tag = 'smem constant byte address 0x4 - core index']
  #allocation1 [shape = 'u32[144,128]{1,0:T(1,128)}', space=vmem, size = 0x12000, scoped, tag = 'internal scratch']
  %s0 = inlined_call_operand.vmem [shape: bf16[512,160], index: 0, kind: input, shape index: {}]
  %s1 = inlined_call_operand.vmem [shape: bf16[160,8], index: 1, kind: input, shape index: {}]
  %s2 = inlined_call_operand.vmem [shape: f32[1,8], index: 2, kind: input, shape index: {}]
  %s3 = inlined_call_operand.vmem [shape: f32[1,8], index: 3, kind: input, shape index: {}]
  %s4 = inlined_call_operand.vmem [shape: bf16[512,8], index: 4, kind: output, shape index: {}]
  %s5 = sld [smem:[#allocation0]]
  $region26: #{g_net_forward.10} parent=0
    _
  %s7 = ssub.s32 1, %s5
  %s8 = scalar_select 0, %s7, %s5
  // Predicated region
  $region2: #{g_net_forward.10} parent=0 // pred_check
    _
  $region3: #{g_net_forward.10} parent=0 // pred_check_branch
    %10 = sbr.rel (0) target = $region5
  $region4: #{g_net_forward.10} parent=0 // pred_region
    _
  $region5: #{g_net_forward.10} parent=0 // pred_fallthru
    _
  // Predicated region
  $region6: #{g_net_forward.10} parent=0 // pred_check
    _
  $region7: #{g_net_forward.10} parent=0 // pred_check_branch
    %12 = sbr.rel (0) target = $region9
  $region8: #{g_net_forward.10} parent=0 // pred_region
    _
  $region9: #{g_net_forward.10} parent=0 // pred_fallthru
    _
  // Predicated region
  $region10: #{g_net_forward.10} parent=0 // pred_check
    _
  $region11: #{g_net_forward.10} parent=0 // pred_check_branch
    %14 = sbr.rel (0) target = $region13
  $region12: #{g_net_forward.10} parent=0 // pred_region
    _
  $region13: #{g_net_forward.10} parent=0 // pred_fallthru
    _
  // Predicated region
  $region14: #{g_net_forward.10} parent=0 // pred_check
    _
  $region15: #{g_net_forward.10} parent=0 // pred_check_branch
    %16 = sbr.rel (0) target = $region17
  $region16: #{g_net_forward.10} parent=0 // pred_region
    _
  $region17: #{g_net_forward.10} parent=0 // pred_fallthru
    _
  %v18 = vld [vmem:[%s0] sm:$0xff]
  %v19 = vld [vmem:[%s0 + $0x8] sm:$0xff]
  %v20 = vld [vmem:[%s0 + $0x10] sm:$0xff]
  %v21 = vld [vmem:[%s0 + $0x18] sm:$0xff]
  %v22 = vld [vmem:[%s0 + $0x20] sm:$0xff]
  %v23 = vld [vmem:[%s0 + $0x28] sm:$0xff]
  %v24 = vld [vmem:[%s0 + $0x30] sm:$0xff]
  %v25 = vld [vmem:[%s0 + $0x38] sm:$0xff]
  %v26 = vld [vmem:[%s0 + $0x40] sm:$0xff]
  %v27 = vld [vmem:[%s0 + $0x48] sm:$0xff]
  %v28 = vld [vmem:[%s0 + $0x50] sm:$0xff]
  %v29 = vld [vmem:[%s0 + $0x58] sm:$0xff]
  %v30 = vld [vmem:[%s0 + $0x60] sm:$0xff]
  %v31 = vld [vmem:[%s0 + $0x68] sm:$0xff]
  %v32 = vld [vmem:[%s0 + $0x70] sm:$0xff]
  %v33 = vld [vmem:[%s0 + $0x78] sm:$0xff]
  %v34 = vld [vmem:[%s0 + $0x80] sm:$0xff]
  %v35 = vld [vmem:[%s0 + $0x88] sm:$0xff]
  %v36 = vld [vmem:[%s0 + $0x90] sm:$0xff]
  %v37 = vld [vmem:[%s0 + $0x98] sm:$0xff]
  %v38 = vld [vmem:[%s0 + $0xa0] sm:$0xff]
  %v39 = vld [vmem:[%s0 + $0xa8] sm:$0xff]
  %v40 = vld [vmem:[%s0 + $0xb0] sm:$0xff]
  %v41 = vld [vmem:[%s0 + $0xb8] sm:$0xff]
  %v42 = vld [vmem:[%s0 + $0xc0] sm:$0xff]
  %v43 = vld [vmem:[%s0 + $0xc8] sm:$0xff]
  %v44 = vld [vmem:[%s0 + $0xd0] sm:$0xff]
  %v45 = vld [vmem:[%s0 + $0xd8] sm:$0xff]
  %v46 = vld [vmem:[%s0 + $0xe0] sm:$0xff]
  %v47 = vld [vmem:[%s0 + $0xe8] sm:$0xff]
  %v48 = vld [vmem:[%s0 + $0xf0] sm:$0xff]
  %v49 = vld [vmem:[%s0 + $0xf8] sm:$0xff]
  %v50 = vld [vmem:[%s0 + $0x100] sm:$0xff]
  %v51 = vld [vmem:[%s0 + $0x108] sm:$0xff]
  %v52 = vld [vmem:[%s0 + $0x110] sm:$0xff]
  %v53 = vld [vmem:[%s0 + $0x118] sm:$0xff]
  %v54 = vld [vmem:[%s0 + $0x120] sm:$0xff]
  %v55 = vld [vmem:[%s0 + $0x128] sm:$0xff]
  %v56 = vld [vmem:[%s0 + $0x130] sm:$0xff]
  %v57 = vld [vmem:[%s0 + $0x138] sm:$0xff]
  %v58 = vld [vmem:[%s0 + $0x140] sm:$0xff]
  %v59 = vld [vmem:[%s0 + $0x148] sm:$0xff]
  %v60 = vld [vmem:[%s0 + $0x150] sm:$0xff]
  %v61 = vld [vmem:[%s0 + $0x158] sm:$0xff]
  %v62 = vld [vmem:[%s0 + $0x160] sm:$0xff]
  %v63 = vld [vmem:[%s0 + $0x168] sm:$0xff]
  %v64 = vld [vmem:[%s0 + $0x170] sm:$0xff]
  %v65 = vld [vmem:[%s0 + $0x178] sm:$0xff]
  %v66 = vld [vmem:[%s0 + $0x180] sm:$0xff]
  %v67 = vld [vmem:[%s0 + $0x188] sm:$0xff]
  %v68 = vld [vmem:[%s0 + $0x190] sm:$0xff]
  %v69 = vld [vmem:[%s0 + $0x198] sm:$0xff]
  %v70 = vld [vmem:[%s0 + $0x1a0] sm:$0xff]
  %v71 = vld [vmem:[%s0 + $0x1a8] sm:$0xff]
  %v72 = vld [vmem:[%s0 + $0x1b0] sm:$0xff]
  %v73 = vld [vmem:[%s0 + $0x1b8] sm:$0xff]
  %v74 = vld [vmem:[%s0 + $0x1c0] sm:$0xff]
  %v75 = vld [vmem:[%s0 + $0x1c8] sm:$0xff]
  %v76 = vld [vmem:[%s0 + $0x1d0] sm:$0xff]
  %v77 = vld [vmem:[%s0 + $0x1d8] sm:$0xff]
  %v78 = vld [vmem:[%s0 + $0x1e0] sm:$0xff]
  %v79 = vld [vmem:[%s0 + $0x1e8] sm:$0xff]
  %v80 = vld [vmem:[%s0 + $0x1f0] sm:$0xff]
  %v81 = vld [vmem:[%s0 + $0x1f8] sm:$0xff]
  %v82 = vld [vmem:[%s1] sm:$0xf]
  %v83 = vld [vmem:[%s1 + $0x4] sm:$0xf]
  %v84 = vld [vmem:[%s1 + $0x8] sm:$0xf]
  %v85 = vld [vmem:[%s1 + $0xc] sm:$0xf]
  %v86 = vld [vmem:[%s1 + $0x10] sm:$0xf]
  %v87 = vld [vmem:[%s1 + $0x14] sm:$0xf]
  %v88 = vld [vmem:[%s1 + $0x18] sm:$0xf]
  %v89 = vld [vmem:[%s1 + $0x1c] sm:$0xf]
  %v90 = vld [vmem:[%s1 + $0x20] sm:$0xf]
  %v91 = vld [vmem:[%s1 + $0x24] sm:$0xf]
  %v92 = vld [vmem:[%s1 + $0x28] sm:$0xf]
  %v93 = vld [vmem:[%s1 + $0x2c] sm:$0xf]
  %v94 = vld [vmem:[%s1 + $0x30] sm:$0xf]
  %v95 = vld [vmem:[%s1 + $0x34] sm:$0xf]
  %v96 = vld [vmem:[%s1 + $0x38] sm:$0xf]
  %v97 = vld [vmem:[%s1 + $0x3c] sm:$0xf]
  %v98 = vld [vmem:[%s1 + $0x40] sm:$0xf]
  %v99 = vld [vmem:[%s1 + $0x44] sm:$0xf]
  %v100 = vld [vmem:[%s1 + $0x48] sm:$0xf]
  %v101 = vld [vmem:[%s1 + $0x4c] sm:$0xf]
  %v166 = vunpack.c.l.b16 %v18
  %v167 = vunpack.c.h.b16 %v18
  %v168 = vunpack.c.l.b16 %v19
  %v169 = vunpack.c.h.b16 %v19
  %v170 = vunpack.c.l.b16 %v20
  %v171 = vunpack.c.h.b16 %v20
  %v172 = vunpack.c.l.b16 %v21
  %v173 = vunpack.c.h.b16 %v21
  %v174 = vunpack.c.l.b16 %v22
  %v175 = vunpack.c.h.b16 %v22
  %v176 = vunpack.c.l.b16 %v23
  %v177 = vunpack.c.h.b16 %v23
  %v178 = vunpack.c.l.b16 %v24
  %v179 = vunpack.c.h.b16 %v24
  %v180 = vunpack.c.l.b16 %v25
  %v181 = vunpack.c.h.b16 %v25
  %v182 = vunpack.c.l.b16 %v26
  %v183 = vunpack.c.h.b16 %v26
  %v184 = vunpack.c.l.b16 %v27
  %v185 = vunpack.c.h.b16 %v27
  %v186 = vunpack.c.l.b16 %v28
  %v187 = vunpack.c.h.b16 %v28
  %v188 = vunpack.c.l.b16 %v29
  %v189 = vunpack.c.h.b16 %v29
  %v190 = vunpack.c.l.b16 %v30
  %v191 = vunpack.c.h.b16 %v30
  %v192 = vunpack.c.l.b16 %v31
  %v193 = vunpack.c.h.b16 %v31
  %v194 = vunpack.c.l.b16 %v32
  %v195 = vunpack.c.h.b16 %v32
  %v196 = vunpack.c.l.b16 %v33
  %v197 = vunpack.c.h.b16 %v33
  %v198 = vunpack.c.l.b16 %v34
  %v199 = vunpack.c.h.b16 %v34
  %v200 = vunpack.c.l.b16 %v35
  %v201 = vunpack.c.h.b16 %v35
  %v202 = vunpack.c.l.b16 %v36
  %v203 = vunpack.c.h.b16 %v36
  %v204 = vunpack.c.l.b16 %v37
  %v205 = vunpack.c.h.b16 %v37
  %v206 = vunpack.c.l.b16 %v38
  %v207 = vunpack.c.h.b16 %v38
  %v208 = vunpack.c.l.b16 %v39
  %v209 = vunpack.c.h.b16 %v39
  %v210 = vunpack.c.l.b16 %v40
  %v211 = vunpack.c.h.b16 %v40
  %v212 = vunpack.c.l.b16 %v41
  %v213 = vunpack.c.h.b16 %v41
  %v214 = vunpack.c.l.b16 %v42
  %v215 = vunpack.c.h.b16 %v42
  %v216 = vunpack.c.l.b16 %v43
  %v217 = vunpack.c.h.b16 %v43
  %v218 = vunpack.c.l.b16 %v44
  %v219 = vunpack.c.h.b16 %v44
  %v220 = vunpack.c.l.b16 %v45
  %v221 = vunpack.c.h.b16 %v45
  %v222 = vunpack.c.l.b16 %v46
  %v223 = vunpack.c.h.b16 %v46
  %v224 = vunpack.c.l.b16 %v47
  %v225 = vunpack.c.h.b16 %v47
  %v226 = vunpack.c.l.b16 %v48
  %v227 = vunpack.c.h.b16 %v48
  %v228 = vunpack.c.l.b16 %v49
  %v229 = vunpack.c.h.b16 %v49
  %v230 = vunpack.c.l.b16 %v50
  %v231 = vunpack.c.h.b16 %v50
  %v232 = vunpack.c.l.b16 %v51
  %v233 = vunpack.c.h.b16 %v51
  %v234 = vunpack.c.l.b16 %v52
  %v235 = vunpack.c.h.b16 %v52
  %v236 = vunpack.c.l.b16 %v53
  %v237 = vunpack.c.h.b16 %v53
  %v238 = vunpack.c.l.b16 %v54
  %v239 = vunpack.c.h.b16 %v54
  %v240 = vunpack.c.l.b16 %v55
  %v241 = vunpack.c.h.b16 %v55
  %v242 = vunpack.c.l.b16 %v56
  %v243 = vunpack.c.h.b16 %v56
  %v244 = vunpack.c.l.b16 %v57
  %v245 = vunpack.c.h.b16 %v57
  %v246 = vunpack.c.l.b16 %v58
  %v247 = vunpack.c.h.b16 %v58
  %v248 = vunpack.c.l.b16 %v59
  %v249 = vunpack.c.h.b16 %v59
  %v250 = vunpack.c.l.b16 %v60
  %v251 = vunpack.c.h.b16 %v60
  %v252 = vunpack.c.l.b16 %v61
  %v253 = vunpack.c.h.b16 %v61
  %v254 = vunpack.c.l.b16 %v62
  %v255 = vunpack.c.h.b16 %v62
  %v256 = vunpack.c.l.b16 %v63
  %v257 = vunpack.c.h.b16 %v63
  %v258 = vunpack.c.l.b16 %v64
  %v259 = vunpack.c.h.b16 %v64
  %v260 = vunpack.c.l.b16 %v65
  %v261 = vunpack.c.h.b16 %v65
  %v262 = vunpack.c.l.b16 %v66
  %v263 = vunpack.c.h.b16 %v66
  %v264 = vunpack.c.l.b16 %v67
  %v265 = vunpack.c.h.b16 %v67
  %v266 = vunpack.c.l.b16 %v68
  %v267 = vunpack.c.h.b16 %v68
  %v268 = vunpack.c.l.b16 %v69
  %v269 = vunpack.c.h.b16 %v69
  %v270 = vunpack.c.l.b16 %v70
  %v271 = vunpack.c.h.b16 %v70
  %v272 = vunpack.c.l.b16 %v71
  %v273 = vunpack.c.h.b16 %v71
  %v274 = vunpack.c.l.b16 %v72
  %v275 = vunpack.c.h.b16 %v72
  %v276 = vunpack.c.l.b16 %v73
  %v277 = vunpack.c.h.b16 %v73
  %v278 = vunpack.c.l.b16 %v74
  %v279 = vunpack.c.h.b16 %v74
  %v280 = vunpack.c.l.b16 %v75
  %v281 = vunpack.c.h.b16 %v75
  %v282 = vunpack.c.l.b16 %v76
  %v283 = vunpack.c.h.b16 %v76
  %v284 = vunpack.c.l.b16 %v77
  %v285 = vunpack.c.h.b16 %v77
  %v286 = vunpack.c.l.b16 %v78
  %v287 = vunpack.c.h.b16 %v78
  %v288 = vunpack.c.l.b16 %v79
  %v289 = vunpack.c.h.b16 %v79
  %v290 = vunpack.c.l.b16 %v80
  %v291 = vunpack.c.h.b16 %v80
  %v292 = vunpack.c.l.b16 %v81
  %v293 = vunpack.c.h.b16 %v81
  %v294 = vpack.c.b16 %v168, %v166
  %v295 = vpack.c.b16 %v169, %v167
  %v296 = vpack.c.b16 %v172, %v170
  %v297 = vpack.c.b16 %v173, %v171
  %v298 = vpack.c.b16 %v176, %v174
  %v299 = vpack.c.b16 %v177, %v175
  %v300 = vpack.c.b16 %v180, %v178
  %v301 = vpack.c.b16 %v181, %v179
  %v302 = vpack.c.b16 %v184, %v182
  %v303 = vpack.c.b16 %v185, %v183
  %v304 = vpack.c.b16 %v188, %v186
  %v305 = vpack.c.b16 %v189, %v187
  %v306 = vpack.c.b16 %v192, %v190
  %v307 = vpack.c.b16 %v193, %v191
  %v308 = vpack.c.b16 %v196, %v194
  %v309 = vpack.c.b16 %v197, %v195
  %v310 = vpack.c.b16 %v200, %v198
  %v311 = vpack.c.b16 %v201, %v199
  %v312 = vpack.c.b16 %v204, %v202
  %v313 = vpack.c.b16 %v205, %v203
  %v314 = vpack.c.b16 %v208, %v206
  %v315 = vpack.c.b16 %v209, %v207
  %v316 = vpack.c.b16 %v212, %v210
  %v317 = vpack.c.b16 %v213, %v211
  %v318 = vpack.c.b16 %v216, %v214
  %v319 = vpack.c.b16 %v217, %v215
  %v320 = vpack.c.b16 %v220, %v218
  %v321 = vpack.c.b16 %v221, %v219
  %v322 = vpack.c.b16 %v224, %v222
  %v323 = vpack.c.b16 %v225, %v223
  %v324 = vpack.c.b16 %v228, %v226
  %v325 = vpack.c.b16 %v229, %v227
  %v326 = vpack.c.b16 %v232, %v230
  %v327 = vpack.c.b16 %v233, %v231
  %v328 = vpack.c.b16 %v236, %v234
  %v329 = vpack.c.b16 %v237, %v235
  %v330 = vpack.c.b16 %v240, %v238
  %v331 = vpack.c.b16 %v241, %v239
  %v332 = vpack.c.b16 %v244, %v242
  %v333 = vpack.c.b16 %v245, %v243
  %v334 = vpack.c.b16 %v248, %v246
  %v335 = vpack.c.b16 %v249, %v247
  %v336 = vpack.c.b16 %v252, %v250
  %v337 = vpack.c.b16 %v253, %v251
  %v338 = vpack.c.b16 %v256, %v254
  %v339 = vpack.c.b16 %v257, %v255
  %v340 = vpack.c.b16 %v260, %v258
  %v341 = vpack.c.b16 %v261, %v259
  %v342 = vpack.c.b16 %v264, %v262
  %v343 = vpack.c.b16 %v265, %v263
  %v344 = vpack.c.b16 %v268, %v266
  %v345 = vpack.c.b16 %v269, %v267
  %v346 = vpack.c.b16 %v272, %v270
  %v347 = vpack.c.b16 %v273, %v271
  %v348 = vpack.c.b16 %v276, %v274
  %v349 = vpack.c.b16 %v277, %v275
  %v350 = vpack.c.b16 %v280, %v278
  %v351 = vpack.c.b16 %v281, %v279
  %v352 = vpack.c.b16 %v284, %v282
  %v353 = vpack.c.b16 %v285, %v283
  %v354 = vpack.c.b16 %v288, %v286
  %v355 = vpack.c.b16 %v289, %v287
  %v356 = vpack.c.b16 %v292, %v290
  %v357 = vpack.c.b16 %v293, %v291
  %v410 = vunpack.c.l.b16 %v82
  %v411 = vunpack.c.l.b16 %v83
  %v412 = vunpack.c.l.b16 %v84
  %v413 = vunpack.c.l.b16 %v85
  %v414 = vunpack.c.l.b16 %v86
  %v415 = vunpack.c.l.b16 %v87
  %v416 = vunpack.c.l.b16 %v88
  %v417 = vunpack.c.l.b16 %v89
  %v418 = vunpack.c.l.b16 %v90
  %v419 = vunpack.c.l.b16 %v91
  %v420 = vunpack.c.l.b16 %v92
  %v421 = vunpack.c.l.b16 %v93
  %v422 = vunpack.c.l.b16 %v94
  %v423 = vunpack.c.l.b16 %v95
  %v424 = vunpack.c.l.b16 %v96
  %v425 = vunpack.c.l.b16 %v97
  %v426 = vunpack.c.l.b16 %v98
  %v427 = vunpack.c.l.b16 %v99
  %v428 = vunpack.c.l.b16 %v100
  %v429 = vunpack.c.l.b16 %v101
  %v430 = vpack.c.b16 %v411, %v410
  %v431 = vpack.c.b16 %v413, %v412
  %v432 = vpack.c.b16 %v415, %v414
  %v433 = vpack.c.b16 %v417, %v416
  %v434 = vpack.c.b16 %v419, %v418
  %v435 = vpack.c.b16 %v421, %v420
  %v436 = vpack.c.b16 %v423, %v422
  %v437 = vpack.c.b16 %v425, %v424
  %v438 = vpack.c.b16 %v427, %v426
  %v439 = vpack.c.b16 %v429, %v428
  %vm450 = vcmask 261120
  %v452 = vsel %vm450, %v295, 0
  %v455 = vsel %vm450, %v297, 0
  %v458 = vsel %vm450, %v299, 0
  %v461 = vsel %vm450, %v301, 0
  %v464 = vsel %vm450, %v303, 0
  %v467 = vsel %vm450, %v305, 0
  %v470 = vsel %vm450, %v307, 0
  %v473 = vsel %vm450, %v309, 0
  %v476 = vsel %vm450, %v311, 0
  %v479 = vsel %vm450, %v313, 0
  %v482 = vsel %vm450, %v315, 0
  %v485 = vsel %vm450, %v317, 0
  %v488 = vsel %vm450, %v319, 0
  %v491 = vsel %vm450, %v321, 0
  %v494 = vsel %vm450, %v323, 0
  %v497 = vsel %vm450, %v325, 0
  %v500 = vsel %vm450, %v327, 0
  %v503 = vsel %vm450, %v329, 0
  %v506 = vsel %vm450, %v331, 0
  %v509 = vsel %vm450, %v333, 0
  %v512 = vsel %vm450, %v335, 0
  %v515 = vsel %vm450, %v337, 0
  %v518 = vsel %vm450, %v339, 0
  %v521 = vsel %vm450, %v341, 0
  %v524 = vsel %vm450, %v343, 0
  %v527 = vsel %vm450, %v345, 0
  %v530 = vsel %vm450, %v347, 0
  %v533 = vsel %vm450, %v349, 0
  %v536 = vsel %vm450, %v351, 0
  %v539 = vsel %vm450, %v353, 0
  %v542 = vsel %vm450, %v355, 0
  %v545 = vsel %vm450, %v357, 0
  %547 = vmatprep.subr.bf16.mxu0 0
  %548 = vmatpush1.bf16.msra.mxu0 %v430
  %549 = vmatprep.subr.bf16.mxu0 0
  %550 = vmatpush1.bf16.msra.mxu0 %v431
  %551 = vmatprep.subr.bf16.mxu0 0
  %552 = vmatpush1.bf16.msra.mxu0 %v432
  %553 = vmatprep.subr.bf16.mxu0 0
  %554 = vmatpush1.bf16.msra.mxu0 %v433
  %555 = vmatprep.subr.bf16.mxu0 0
  %556 = vmatpush1.bf16.msra.mxu0 %v434
  %557 = vmatprep.subr.bf16.mxu0 0
  %558 = vmatpush1.bf16.msra.mxu0 %v435
  %559 = vmatprep.subr.bf16.mxu0 0
  %560 = vmatpush1.bf16.msra.mxu0 %v436
  %561 = vmatprep.subr.bf16.mxu0 0
  %562 = vmatpush1.bf16.msra.mxu0 %v437
  %563 = vmatprep.subr.bf16.mxu0 0
  %564 = vmatpush1.bf16.msra.mxu0 %v438
  %565 = vmatprep.subr.bf16.mxu0 0
  %566 = vmatpush1.bf16.msra.mxu0 %v439
  %567 = vmatprep.subr.bf16.mxu0 0
  %568 = vmatpush1.bf16.msra.mxu0 0
  %569 = vmatprep.subr.bf16.mxu0 0
  %570 = vmatpush1.bf16.msra.mxu0 0
  %571 = vmatprep.subr.bf16.mxu0 0
  %572 = vmatpush1.bf16.msra.mxu0 0
  %573 = vmatprep.subr.bf16.mxu0 0
  %574 = vmatpush1.bf16.msra.mxu0 0
  %575 = vmatprep.subr.bf16.mxu0 0
  %576 = vmatpush1.bf16.msra.mxu0 0
  %577 = vmatprep.subr.bf16.mxu0 0
  %578 = vmatpush1.bf16.msra.mxu0 0
  %579 = vmatprep.mubr.bf16.mxu0 %v452
  %580 = vmatmul.mubr.bf16.gmra.mrb[0].mxu0 %v294
  %v581 = vpop.f32.mrb[0].mxu0
  %v582 = vadd.f32 0.0, %v581
  %v583 = vpop.f32.mrb[0].mxu0
  %v584 = vpop.f32.mrb[0].mxu0
  %v585 = vadd.f32 0.0, %v584
  %v586 = vpop.f32.mrb[0].mxu0
  %587 = vmatprep.mubr.bf16.mxu0 %v455
  %588 = vmatmul.mubr.bf16.gmra.mrb[0].mxu0 %v296
  %v589 = vpop.f32.mrb[0].mxu0
  %v590 = vadd.f32 0.0, %v589
  %v591 = vpop.f32.mrb[0].mxu0
  %v592 = vpop.f32.mrb[0].mxu0
  %v593 = vadd.f32 0.0, %v592
  %v594 = vpop.f32.mrb[0].mxu0
  %595 = vmatprep.mubr.bf16.mxu0 %v458
  %596 = vmatmul.mubr.bf16.gmra.mrb[0].mxu0 %v298
  %v597 = vpop.f32.mrb[0].mxu0
  %v598 = vadd.f32 0.0, %v597
  %v599 = vpop.f32.mrb[0].mxu0
  %v600 = vpop.f32.mrb[0].mxu0
  %v601 = vadd.f32 0.0, %v600
  %v602 = vpop.f32.mrb[0].mxu0
  %603 = vmatprep.mubr.bf16.mxu0 %v461
  %604 = vmatmul.mubr.bf16.gmra.mrb[0].mxu0 %v300
  %v605 = vpop.f32.mrb[0].mxu0
  %v606 = vadd.f32 0.0, %v605
  %v607 = vpop.f32.mrb[0].mxu0
  %v608 = vpop.f32.mrb[0].mxu0
  %v609 = vadd.f32 0.0, %v608
  %v610 = vpop.f32.mrb[0].mxu0
  %611 = vmatprep.mubr.bf16.mxu0 %v464
  %612 = vmatmul.mubr.bf16.gmra.mrb[0].mxu0 %v302
  %v613 = vpop.f32.mrb[0].mxu0
  %v614 = vadd.f32 0.0, %v613
  %v615 = vpop.f32.mrb[0].mxu0
  %v616 = vpop.f32.mrb[0].mxu0
  %v617 = vadd.f32 0.0, %v616
  %v618 = vpop.f32.mrb[0].mxu0
  %619 = vmatprep.mubr.bf16.mxu0 %v467
  %620 = vmatmul.mubr.bf16.gmra.mrb[0].mxu0 %v304
  %v621 = vpop.f32.mrb[0].mxu0
  %v622 = vadd.f32 0.0, %v621
  %v623 = vpop.f32.mrb[0].mxu0
  %v624 = vpop.f32.mrb[0].mxu0
  %v625 = vadd.f32 0.0, %v624
  %v626 = vpop.f32.mrb[0].mxu0
  %627 = vmatprep.mubr.bf16.mxu0 %v470
  %628 = vmatmul.mubr.bf16.gmra.mrb[0].mxu0 %v306
  %v629 = vpop.f32.mrb[0].mxu0
  %v630 = vadd.f32 0.0, %v629
  %v631 = vpop.f32.mrb[0].mxu0
  %v632 = vpop.f32.mrb[0].mxu0
  %v633 = vadd.f32 0.0, %v632
  %v634 = vpop.f32.mrb[0].mxu0
  %635 = vmatprep.mubr.bf16.mxu0 %v473
  %636 = vmatmul.mubr.bf16.gmra.mrb[0].mxu0 %v308
  %v637 = vpop.f32.mrb[0].mxu0
  %v638 = vadd.f32 0.0, %v637
  %v639 = vpop.f32.mrb[0].mxu0
  %v640 = vpop.f32.mrb[0].mxu0
  %v641 = vadd.f32 0.0, %v640
  %v642 = vpop.f32.mrb[0].mxu0
  %643 = vmatprep.mubr.bf16.mxu0 %v476
  %644 = vmatmul.mubr.bf16.gmra.mrb[0].mxu0 %v310
  %v645 = vpop.f32.mrb[0].mxu0
  %v646 = vadd.f32 0.0, %v645
  %v647 = vpop.f32.mrb[0].mxu0
  %v648 = vpop.f32.mrb[0].mxu0
  %v649 = vadd.f32 0.0, %v648
  %v650 = vpop.f32.mrb[0].mxu0
  %651 = vmatprep.mubr.bf16.mxu0 %v479
  %652 = vmatmul.mubr.bf16.gmra.mrb[0].mxu0 %v312
  %v653 = vpop.f32.mrb[0].mxu0
  %v654 = vadd.f32 0.0, %v653
  %v655 = vpop.f32.mrb[0].mxu0
  %v656 = vpop.f32.mrb[0].mxu0
  %v657 = vadd.f32 0.0, %v656
  %v658 = vpop.f32.mrb[0].mxu0
  %659 = vmatprep.mubr.bf16.mxu0 %v482
  %660 = vmatmul.mubr.bf16.gmra.mrb[0].mxu0 %v314
  %v661 = vpop.f32.mrb[0].mxu0
  %v662 = vadd.f32 0.0, %v661
  %v663 = vpop.f32.mrb[0].mxu0
  %v664 = vpop.f32.mrb[0].mxu0
  %v665 = vadd.f32 0.0, %v664
  %v666 = vpop.f32.mrb[0].mxu0
  %667 = vmatprep.mubr.bf16.mxu0 %v485
  %668 = vmatmul.mubr.bf16.gmra.mrb[0].mxu0 %v316
  %v669 = vpop.f32.mrb[0].mxu0
  %v670 = vadd.f32 0.0, %v669
  %v671 = vpop.f32.mrb[0].mxu0
  %v672 = vpop.f32.mrb[0].mxu0
  %v673 = vadd.f32 0.0, %v672
  %v674 = vpop.f32.mrb[0].mxu0
  %675 = vmatprep.mubr.bf16.mxu0 %v488
  %676 = vmatmul.mubr.bf16.gmra.mrb[0].mxu0 %v318
  %v677 = vpop.f32.mrb[0].mxu0
  %v678 = vadd.f32 0.0, %v677
  %v679 = vpop.f32.mrb[0].mxu0
  %v680 = vpop.f32.mrb[0].mxu0
  %v681 = vadd.f32 0.0, %v680
  %v682 = vpop.f32.mrb[0].mxu0
  %683 = vmatprep.mubr.bf16.mxu0 %v491
  %684 = vmatmul.mubr.bf16.gmra.mrb[0].mxu0 %v320
  %v685 = vpop.f32.mrb[0].mxu0
  %v686 = vadd.f32 0.0, %v685
  %v687 = vpop.f32.mrb[0].mxu0
  %v688 = vpop.f32.mrb[0].mxu0
  %v689 = vadd.f32 0.0, %v688
  %v690 = vpop.f32.mrb[0].mxu0
  %691 = vmatprep.mubr.bf16.mxu0 %v494
  %692 = vmatmul.mubr.bf16.gmra.mrb[0].mxu0 %v322
  %v693 = vpop.f32.mrb[0].mxu0
  %v694 = vadd.f32 0.0, %v693
  %v695 = vpop.f32.mrb[0].mxu0
  %v696 = vpop.f32.mrb[0].mxu0
  %v697 = vadd.f32 0.0, %v696
  %v698 = vpop.f32.mrb[0].mxu0
  %699 = vmatprep.mubr.bf16.mxu0 %v497
  %700 = vmatmul.mubr.bf16.gmra.mrb[0].mxu0 %v324
  %v701 = vpop.f32.mrb[0].mxu0
  %v702 = vadd.f32 0.0, %v701
  %v703 = vpop.f32.mrb[0].mxu0
  %v704 = vpop.f32.mrb[0].mxu0
  %v705 = vadd.f32 0.0, %v704
  %v706 = vpop.f32.mrb[0].mxu0
  %707 = vmatprep.mubr.bf16.mxu0 %v500
  %708 = vmatmul.mubr.bf16.gmra.mrb[0].mxu0 %v326
  %v709 = vpop.f32.mrb[0].mxu0
  %v710 = vadd.f32 0.0, %v709
  %v711 = vpop.f32.mrb[0].mxu0
  %v712 = vpop.f32.mrb[0].mxu0
  %v713 = vadd.f32 0.0, %v712
  %v714 = vpop.f32.mrb[0].mxu0
  %715 = vmatprep.mubr.bf16.mxu0 %v503
  %716 = vmatmul.mubr.bf16.gmra.mrb[0].mxu0 %v328
  %v717 = vpop.f32.mrb[0].mxu0
  %v718 = vadd.f32 0.0, %v717
  %v719 = vpop.f32.mrb[0].mxu0
  %v720 = vpop.f32.mrb[0].mxu0
  %v721 = vadd.f32 0.0, %v720
  %v722 = vpop.f32.mrb[0].mxu0
  %723 = vmatprep.mubr.bf16.mxu0 %v506
  %724 = vmatmul.mubr.bf16.gmra.mrb[0].mxu0 %v330
  %v725 = vpop.f32.mrb[0].mxu0
  %v726 = vadd.f32 0.0, %v725
  %v727 = vpop.f32.mrb[0].mxu0
  %v728 = vpop.f32.mrb[0].mxu0
  %v729 = vadd.f32 0.0, %v728
  %v730 = vpop.f32.mrb[0].mxu0
  %731 = vmatprep.mubr.bf16.mxu0 %v509
  %732 = vmatmul.mubr.bf16.gmra.mrb[0].mxu0 %v332
  %v733 = vpop.f32.mrb[0].mxu0
  %v734 = vadd.f32 0.0, %v733
  %v735 = vpop.f32.mrb[0].mxu0
  %v736 = vpop.f32.mrb[0].mxu0
  %v737 = vadd.f32 0.0, %v736
  %v738 = vpop.f32.mrb[0].mxu0
  %739 = vmatprep.mubr.bf16.mxu0 %v512
  %740 = vmatmul.mubr.bf16.gmra.mrb[0].mxu0 %v334
  %v741 = vpop.f32.mrb[0].mxu0
  %v742 = vadd.f32 0.0, %v741
  %v743 = vpop.f32.mrb[0].mxu0
  %v744 = vpop.f32.mrb[0].mxu0
  %v745 = vadd.f32 0.0, %v744
  %v746 = vpop.f32.mrb[0].mxu0
  %747 = vmatprep.mubr.bf16.mxu0 %v515
  %748 = vmatmul.mubr.bf16.gmra.mrb[0].mxu0 %v336
  %v749 = vpop.f32.mrb[0].mxu0
  %v750 = vadd.f32 0.0, %v749
  %v751 = vpop.f32.mrb[0].mxu0
  %v752 = vpop.f32.mrb[0].mxu0
  %v753 = vadd.f32 0.0, %v752
  %v754 = vpop.f32.mrb[0].mxu0
  %755 = vmatprep.mubr.bf16.mxu0 %v518
  %756 = vmatmul.mubr.bf16.gmra.mrb[0].mxu0 %v338
  %v757 = vpop.f32.mrb[0].mxu0
  %v758 = vadd.f32 0.0, %v757
  %v759 = vpop.f32.mrb[0].mxu0
  %v760 = vpop.f32.mrb[0].mxu0
  %v761 = vadd.f32 0.0, %v760
  %v762 = vpop.f32.mrb[0].mxu0
  %763 = vmatprep.mubr.bf16.mxu0 %v521
  %764 = vmatmul.mubr.bf16.gmra.mrb[0].mxu0 %v340
  %v765 = vpop.f32.mrb[0].mxu0
  %v766 = vadd.f32 0.0, %v765
  %v767 = vpop.f32.mrb[0].mxu0
  %v768 = vpop.f32.mrb[0].mxu0
  %v769 = vadd.f32 0.0, %v768
  %v770 = vpop.f32.mrb[0].mxu0
  %771 = vmatprep.mubr.bf16.mxu0 %v524
  %772 = vmatmul.mubr.bf16.gmra.mrb[0].mxu0 %v342
  %v773 = vpop.f32.mrb[0].mxu0
  %v774 = vadd.f32 0.0, %v773
  %v775 = vpop.f32.mrb[0].mxu0
  %v776 = vpop.f32.mrb[0].mxu0
  %v777 = vadd.f32 0.0, %v776
  %v778 = vpop.f32.mrb[0].mxu0
  %779 = vmatprep.mubr.bf16.mxu0 %v527
  %780 = vmatmul.mubr.bf16.gmra.mrb[0].mxu0 %v344
  %v781 = vpop.f32.mrb[0].mxu0
  %v782 = vadd.f32 0.0, %v781
  %v783 = vpop.f32.mrb[0].mxu0
  %v784 = vpop.f32.mrb[0].mxu0
  %v785 = vadd.f32 0.0, %v784
  %v786 = vpop.f32.mrb[0].mxu0
  %787 = vmatprep.mubr.bf16.mxu0 %v530
  %788 = vmatmul.mubr.bf16.gmra.mrb[0].mxu0 %v346
  %v789 = vpop.f32.mrb[0].mxu0
  %v790 = vadd.f32 0.0, %v789
  %v791 = vpop.f32.mrb[0].mxu0
  %v792 = vpop.f32.mrb[0].mxu0
  %v793 = vadd.f32 0.0, %v792
  %v794 = vpop.f32.mrb[0].mxu0
  %795 = vmatprep.mubr.bf16.mxu0 %v533
  %796 = vmatmul.mubr.bf16.gmra.mrb[0].mxu0 %v348
  %v797 = vpop.f32.mrb[0].mxu0
  %v798 = vadd.f32 0.0, %v797
  %v799 = vpop.f32.mrb[0].mxu0
  %v800 = vpop.f32.mrb[0].mxu0
  %v801 = vadd.f32 0.0, %v800
  %v802 = vpop.f32.mrb[0].mxu0
  %803 = vmatprep.mubr.bf16.mxu0 %v536
  %804 = vmatmul.mubr.bf16.gmra.mrb[0].mxu0 %v350
  %v805 = vpop.f32.mrb[0].mxu0
  %v806 = vadd.f32 0.0, %v805
  %v807 = vpop.f32.mrb[0].mxu0
  %v808 = vpop.f32.mrb[0].mxu0
  %v809 = vadd.f32 0.0, %v808
  %v810 = vpop.f32.mrb[0].mxu0
  %811 = vmatprep.mubr.bf16.mxu0 %v539
  %812 = vmatmul.mubr.bf16.gmra.mrb[0].mxu0 %v352
  %v813 = vpop.f32.mrb[0].mxu0
  %v814 = vadd.f32 0.0, %v813
  %v815 = vpop.f32.mrb[0].mxu0
  %v816 = vpop.f32.mrb[0].mxu0
  %v817 = vadd.f32 0.0, %v816
  %v818 = vpop.f32.mrb[0].mxu0
  %819 = vmatprep.mubr.bf16.mxu0 %v542
  %820 = vmatmul.mubr.bf16.gmra.mrb[0].mxu0 %v354
  %v821 = vpop.f32.mrb[0].mxu0
  %v822 = vadd.f32 0.0, %v821
  %v823 = vpop.f32.mrb[0].mxu0
  %v824 = vpop.f32.mrb[0].mxu0
  %v825 = vadd.f32 0.0, %v824
  %v826 = vpop.f32.mrb[0].mxu0
  %827 = vmatprep.mubr.bf16.mxu0 %v545
  %828 = vmatmul.mubr.bf16.gmra.mrb[0].mxu0 %v356
  %v829 = vpop.f32.mrb[0].mxu0
  %v830 = vadd.f32 0.0, %v829
  %v831 = vpop.f32.mrb[0].mxu0
  %v832 = vpop.f32.mrb[0].mxu0
  %v833 = vadd.f32 0.0, %v832
  %v834 = vpop.f32.mrb[0].mxu0
  %835 = vdwg.mxu0
  %vm836 = vcmask 64512
  %v837 = vsel %vm836, %v582, 0.0
  %v838 = vsel %vm836, %v585, 0.0
  %v839 = vadd.f32 %v837, %v838
  %v840 = vsel %vm836, %v590, 0.0
  %v841 = vadd.f32 %v839, %v840
  %v842 = vsel %vm836, %v593, 0.0
  %v843 = vadd.f32 %v841, %v842
  %v844 = vsel %vm836, %v598, 0.0
  %v845 = vadd.f32 %v843, %v844
  %v846 = vsel %vm836, %v601, 0.0
  %v847 = vadd.f32 %v845, %v846
  %v848 = vsel %vm836, %v606, 0.0
  %v849 = vadd.f32 %v847, %v848
  %v850 = vsel %vm836, %v609, 0.0
  %v851 = vadd.f32 %v849, %v850
  %v852 = vsel %vm836, %v614, 0.0
  %v853 = vadd.f32 %v851, %v852
  %v854 = vsel %vm836, %v617, 0.0
  %v855 = vadd.f32 %v853, %v854
  %v856 = vsel %vm836, %v622, 0.0
  %v857 = vadd.f32 %v855, %v856
  %v858 = vsel %vm836, %v625, 0.0
  %v859 = vadd.f32 %v857, %v858
  %v860 = vsel %vm836, %v630, 0.0
  %v861 = vadd.f32 %v859, %v860
  %v862 = vsel %vm836, %v633, 0.0
  %v863 = vadd.f32 %v861, %v862
  %v864 = vsel %vm836, %v638, 0.0
  %v865 = vadd.f32 %v863, %v864
  %v866 = vsel %vm836, %v641, 0.0
  %v867 = vadd.f32 %v865, %v866
  %v868 = vsel %vm836, %v646, 0.0
  %v869 = vadd.f32 %v867, %v868
  %v870 = vsel %vm836, %v649, 0.0
  %v871 = vadd.f32 %v869, %v870
  %v872 = vsel %vm836, %v654, 0.0
  %v873 = vadd.f32 %v871, %v872
  %v874 = vsel %vm836, %v657, 0.0
  %v875 = vadd.f32 %v873, %v874
  %v876 = vsel %vm836, %v662, 0.0
  %v877 = vadd.f32 %v875, %v876
  %v878 = vsel %vm836, %v665, 0.0
  %v879 = vadd.f32 %v877, %v878
  %v880 = vsel %vm836, %v670, 0.0
  %v881 = vadd.f32 %v879, %v880
  %v882 = vsel %vm836, %v673, 0.0
  %v883 = vadd.f32 %v881, %v882
  %v884 = vsel %vm836, %v678, 0.0
  %v885 = vadd.f32 %v883, %v884
  %v886 = vsel %vm836, %v681, 0.0
  %v887 = vadd.f32 %v885, %v886
  %v888 = vsel %vm836, %v686, 0.0
  %v889 = vadd.f32 %v887, %v888
  %v890 = vsel %vm836, %v689, 0.0
  %v891 = vadd.f32 %v889, %v890
  %v892 = vsel %vm836, %v694, 0.0
  %v893 = vadd.f32 %v891, %v892
  %v894 = vsel %vm836, %v697, 0.0
  %v895 = vadd.f32 %v893, %v894
  %v896 = vsel %vm836, %v702, 0.0
  %v897 = vadd.f32 %v895, %v896
  %v898 = vsel %vm836, %v705, 0.0
  %v899 = vadd.f32 %v897, %v898
  %v900 = vsel %vm836, %v710, 0.0
  %v901 = vadd.f32 %v899, %v900
  %v902 = vsel %vm836, %v713, 0.0
  %v903 = vadd.f32 %v901, %v902
  %v904 = vsel %vm836, %v718, 0.0
  %v905 = vadd.f32 %v903, %v904
  %v906 = vsel %vm836, %v721, 0.0
  %v907 = vadd.f32 %v905, %v906
  %v908 = vsel %vm836, %v726, 0.0
  %v909 = vadd.f32 %v907, %v908
  %v910 = vsel %vm836, %v729, 0.0
  %v911 = vadd.f32 %v909, %v910
  %v912 = vsel %vm836, %v734, 0.0
  %v913 = vadd.f32 %v911, %v912
  %v914 = vsel %vm836, %v737, 0.0
  %v915 = vadd.f32 %v913, %v914
  %v916 = vsel %vm836, %v742, 0.0
  %v917 = vadd.f32 %v915, %v916
  %v918 = vsel %vm836, %v745, 0.0
  %v919 = vadd.f32 %v917, %v918
  %v920 = vsel %vm836, %v750, 0.0
  %v921 = vadd.f32 %v919, %v920
  %v922 = vsel %vm836, %v753, 0.0
  %v923 = vadd.f32 %v921, %v922
  %v924 = vsel %vm836, %v758, 0.0
  %v925 = vadd.f32 %v923, %v924
  %v926 = vsel %vm836, %v761, 0.0
  %v927 = vadd.f32 %v925, %v926
  %v928 = vsel %vm836, %v766, 0.0
  %v929 = vadd.f32 %v927, %v928
  %v930 = vsel %vm836, %v769, 0.0
  %v931 = vadd.f32 %v929, %v930
  %v932 = vsel %vm836, %v774, 0.0
  %v933 = vadd.f32 %v931, %v932
  %v934 = vsel %vm836, %v777, 0.0
  %v935 = vadd.f32 %v933, %v934
  %v936 = vsel %vm836, %v782, 0.0
  %v937 = vadd.f32 %v935, %v936
  %v938 = vsel %vm836, %v785, 0.0
  %v939 = vadd.f32 %v937, %v938
  %v940 = vsel %vm836, %v790, 0.0
  %v941 = vadd.f32 %v939, %v940
  %v942 = vsel %vm836, %v793, 0.0
  %v943 = vadd.f32 %v941, %v942
  %v944 = vsel %vm836, %v798, 0.0
  %v945 = vadd.f32 %v943, %v944
  %v946 = vsel %vm836, %v801, 0.0
  %v947 = vadd.f32 %v945, %v946
  %v948 = vsel %vm836, %v806, 0.0
  %v949 = vadd.f32 %v947, %v948
  %v950 = vsel %vm836, %v809, 0.0
  %v951 = vadd.f32 %v949, %v950
  %v952 = vsel %vm836, %v814, 0.0
  %v953 = vadd.f32 %v951, %v952
  %v954 = vsel %vm836, %v817, 0.0
  %v955 = vadd.f32 %v953, %v954
  %v956 = vsel %vm836, %v822, 0.0
  %v957 = vadd.f32 %v955, %v956
  %v958 = vsel %vm836, %v825, 0.0
  %v959 = vadd.f32 %v957, %v958
  %v960 = vsel %vm836, %v830, 0.0
  %v961 = vadd.f32 %v959, %v960
  %v962 = vsel %vm836, %v833, 0.0
  %v963 = vadd.f32 %v961, %v962
  %v964 = vrot.slane %v963, 4
  %v965 = vadd.f32 %v963, %v964
  %v966 = vrot.slane %v965, 2
  %v967 = vadd.f32 %v965, %v966
  %v968 = vrot.slane %v967, 1
  %v969 = vadd.f32 %v967, %v968
  %v970 = vmul.f32 %v582, %v582
  %v971 = vmul.f32 %v585, %v585
  %v972 = vmul.f32 %v590, %v590
  %v973 = vmul.f32 %v593, %v593
  %v974 = vmul.f32 %v598, %v598
  %v975 = vmul.f32 %v601, %v601
  %v976 = vmul.f32 %v606, %v606
  %v977 = vmul.f32 %v609, %v609
  %v978 = vmul.f32 %v614, %v614
  %v979 = vmul.f32 %v617, %v617
  %v980 = vmul.f32 %v622, %v622
  %v981 = vmul.f32 %v625, %v625
  %v982 = vmul.f32 %v630, %v630
  %v983 = vmul.f32 %v633, %v633
  %v984 = vmul.f32 %v638, %v638
  %v985 = vmul.f32 %v641, %v641
  %v986 = vmul.f32 %v646, %v646
  %v987 = vmul.f32 %v649, %v649
  %v988 = vmul.f32 %v654, %v654
  %v989 = vmul.f32 %v657, %v657
  %v990 = vmul.f32 %v662, %v662
  %v991 = vmul.f32 %v665, %v665
  %v992 = vmul.f32 %v670, %v670
  %v993 = vmul.f32 %v673, %v673
  %v994 = vmul.f32 %v678, %v678
  %v995 = vmul.f32 %v681, %v681
  %v996 = vmul.f32 %v686, %v686
  %v997 = vmul.f32 %v689, %v689
  %v998 = vmul.f32 %v694, %v694
  %v999 = vmul.f32 %v697, %v697
  %v1000 = vmul.f32 %v702, %v702
  %v1001 = vmul.f32 %v705, %v705
  %v1002 = vmul.f32 %v710, %v710
  %v1003 = vmul.f32 %v713, %v713
  %v1004 = vmul.f32 %v718, %v718
  %v1005 = vmul.f32 %v721, %v721
  %v1006 = vmul.f32 %v726, %v726
  %v1007 = vmul.f32 %v729, %v729
  %v1008 = vmul.f32 %v734, %v734
  %v1009 = vmul.f32 %v737, %v737
  %v1010 = vmul.f32 %v742, %v742
  %v1011 = vmul.f32 %v745, %v745
  %v1012 = vmul.f32 %v750, %v750
  %v1013 = vmul.f32 %v753, %v753
  %v1014 = vmul.f32 %v758, %v758
  %v1015 = vmul.f32 %v761, %v761
  %v1016 = vmul.f32 %v766, %v766
  %v1017 = vmul.f32 %v769, %v769
  %v1018 = vmul.f32 %v774, %v774
  %v1019 = vmul.f32 %v777, %v777
  %v1020 = vmul.f32 %v782, %v782
  %v1021 = vmul.f32 %v785, %v785
  %v1022 = vmul.f32 %v790, %v790
  %v1023 = vmul.f32 %v793, %v793
  %v1024 = vmul.f32 %v798, %v798
  %v1025 = vmul.f32 %v801, %v801
  %v1026 = vmul.f32 %v806, %v806
  %v1027 = vmul.f32 %v809, %v809
  %v1028 = vmul.f32 %v814, %v814
  %v1029 = vmul.f32 %v817, %v817
  %v1030 = vmul.f32 %v822, %v822
  %v1031 = vmul.f32 %v825, %v825
  %v1032 = vmul.f32 %v830, %v830
  %v1033 = vmul.f32 %v833, %v833
  %v1034 = vsel %vm836, %v970, 0.0
  %v1035 = vsel %vm836, %v971, 0.0
  %v1036 = vadd.f32 %v1034, %v1035
  %v1037 = vsel %vm836, %v972, 0.0
  %v1038 = vadd.f32 %v1036, %v1037
  %v1039 = vsel %vm836, %v973, 0.0
  %v1040 = vadd.f32 %v1038, %v1039
  %v1041 = vsel %vm836, %v974, 0.0
  %v1042 = vadd.f32 %v1040, %v1041
  %v1043 = vsel %vm836, %v975, 0.0
  %v1044 = vadd.f32 %v1042, %v1043
  %v1045 = vsel %vm836, %v976, 0.0
  %v1046 = vadd.f32 %v1044, %v1045
  %v1047 = vsel %vm836, %v977, 0.0
  %v1048 = vadd.f32 %v1046, %v1047
  %v1049 = vsel %vm836, %v978, 0.0
  %v1050 = vadd.f32 %v1048, %v1049
  %v1051 = vsel %vm836, %v979, 0.0
  %v1052 = vadd.f32 %v1050, %v1051
  %v1053 = vsel %vm836, %v980, 0.0
  %v1054 = vadd.f32 %v1052, %v1053
  %v1055 = vsel %vm836, %v981, 0.0
  %v1056 = vadd.f32 %v1054, %v1055
  %v1057 = vsel %vm836, %v982, 0.0
  %v1058 = vadd.f32 %v1056, %v1057
  %v1059 = vsel %vm836, %v983, 0.0
  %v1060 = vadd.f32 %v1058, %v1059
  %v1061 = vsel %vm836, %v984, 0.0
  %v1062 = vadd.f32 %v1060, %v1061
  %v1063 = vsel %vm836, %v985, 0.0
  %v1064 = vadd.f32 %v1062, %v1063
  %v1065 = vsel %vm836, %v986, 0.0
  %v1066 = vadd.f32 %v1064, %v1065
  %v1067 = vsel %vm836, %v987, 0.0
  %v1068 = vadd.f32 %v1066, %v1067
  %v1069 = vsel %vm836, %v988, 0.0
  %v1070 = vadd.f32 %v1068, %v1069
  %v1071 = vsel %vm836, %v989, 0.0
  %v1072 = vadd.f32 %v1070, %v1071
  %v1073 = vsel %vm836, %v990, 0.0
  %v1074 = vadd.f32 %v1072, %v1073
  %v1075 = vsel %vm836, %v991, 0.0
  %v1076 = vadd.f32 %v1074, %v1075
  %v1077 = vsel %vm836, %v992, 0.0
  %v1078 = vadd.f32 %v1076, %v1077
  %v1079 = vsel %vm836, %v993, 0.0
  %v1080 = vadd.f32 %v1078, %v1079
  %v1081 = vsel %vm836, %v994, 0.0
  %v1082 = vadd.f32 %v1080, %v1081
  %v1083 = vsel %vm836, %v995, 0.0
  %v1084 = vadd.f32 %v1082, %v1083
  %v1085 = vsel %vm836, %v996, 0.0
  %v1086 = vadd.f32 %v1084, %v1085
  %v1087 = vsel %vm836, %v997, 0.0
  %v1088 = vadd.f32 %v1086, %v1087
  %v1089 = vsel %vm836, %v998, 0.0
  %v1090 = vadd.f32 %v1088, %v1089
  %v1091 = vsel %vm836, %v999, 0.0
  %v1092 = vadd.f32 %v1090, %v1091
  %v1093 = vsel %vm836, %v1000, 0.0
  %v1094 = vadd.f32 %v1092, %v1093
  %v1095 = vsel %vm836, %v1001, 0.0
  %v1096 = vadd.f32 %v1094, %v1095
  %v1097 = vsel %vm836, %v1002, 0.0
  %v1098 = vadd.f32 %v1096, %v1097
  %v1099 = vsel %vm836, %v1003, 0.0
  %v1100 = vadd.f32 %v1098, %v1099
  %v1101 = vsel %vm836, %v1004, 0.0
  %v1102 = vadd.f32 %v1100, %v1101
  %v1103 = vsel %vm836, %v1005, 0.0
  %v1104 = vadd.f32 %v1102, %v1103
  %v1105 = vsel %vm836, %v1006, 0.0
  %v1106 = vadd.f32 %v1104, %v1105
  %v1107 = vsel %vm836, %v1007, 0.0
  %v1108 = vadd.f32 %v1106, %v1107
  %v1109 = vsel %vm836, %v1008, 0.0
  %v1110 = vadd.f32 %v1108, %v1109
  %v1111 = vsel %vm836, %v1009, 0.0
  %v1112 = vadd.f32 %v1110, %v1111
  %v1113 = vsel %vm836, %v1010, 0.0
  %v1114 = vadd.f32 %v1112, %v1113
  %v1115 = vsel %vm836, %v1011, 0.0
  %v1116 = vadd.f32 %v1114, %v1115
  %v1117 = vsel %vm836, %v1012, 0.0
  %v1118 = vadd.f32 %v1116, %v1117
  %v1119 = vsel %vm836, %v1013, 0.0
  %v1120 = vadd.f32 %v1118, %v1119
  %v1121 = vsel %vm836, %v1014, 0.0
  %v1122 = vadd.f32 %v1120, %v1121
  %v1123 = vsel %vm836, %v1015, 0.0
  %v1124 = vadd.f32 %v1122, %v1123
  %v1125 = vsel %vm836, %v1016, 0.0
  %v1126 = vadd.f32 %v1124, %v1125
  %v1127 = vsel %vm836, %v1017, 0.0
  %v1128 = vadd.f32 %v1126, %v1127
  %v1129 = vsel %vm836, %v1018, 0.0
  %v1130 = vadd.f32 %v1128, %v1129
  %v1131 = vsel %vm836, %v1019, 0.0
  %v1132 = vadd.f32 %v1130, %v1131
  %v1133 = vsel %vm836, %v1020, 0.0
  %v1134 = vadd.f32 %v1132, %v1133
  %v1135 = vsel %vm836, %v1021, 0.0
  %v1136 = vadd.f32 %v1134, %v1135
  %v1137 = vsel %vm836, %v1022, 0.0
  %v1138 = vadd.f32 %v1136, %v1137
  %v1139 = vsel %vm836, %v1023, 0.0
  %v1140 = vadd.f32 %v1138, %v1139
  %v1141 = vsel %vm836, %v1024, 0.0
  %v1142 = vadd.f32 %v1140, %v1141
  %v1143 = vsel %vm836, %v1025, 0.0
  %v1144 = vadd.f32 %v1142, %v1143
  %v1145 = vsel %vm836, %v1026, 0.0
  %v1146 = vadd.f32 %v1144, %v1145
  %v1147 = vsel %vm836, %v1027, 0.0
  %v1148 = vadd.f32 %v1146, %v1147
  %v1149 = vsel %vm836, %v1028, 0.0
  %v1150 = vadd.f32 %v1148, %v1149
  %v1151 = vsel %vm836, %v1029, 0.0
  %v1152 = vadd.f32 %v1150, %v1151
  %v1153 = vsel %vm836, %v1030, 0.0
  %v1154 = vadd.f32 %v1152, %v1153
  %v1155 = vsel %vm836, %v1031, 0.0
  %v1156 = vadd.f32 %v1154, %v1155
  %v1157 = vsel %vm836, %v1032, 0.0
  %v1158 = vadd.f32 %v1156, %v1157
  %v1159 = vsel %vm836, %v1033, 0.0
  %v1160 = vadd.f32 %v1158, %v1159
  %v1161 = vrot.slane %v1160, 4
  %v1162 = vadd.f32 %v1160, %v1161
  %v1163 = vrot.slane %v1162, 2
  %v1164 = vadd.f32 %v1162, %v1163
  %v1165 = vrot.slane %v1164, 1
  %v1166 = vadd.f32 %v1164, %v1165
  %v1167 = vmul.f32 %v969, 0.001953125
  %v1168 = vmul.f32 %v1166, 0.001953125
  %v1169 = vmul.f32 %v1167, %v1167
  %v1170 = vsub.f32 %v1168, %v1169
  %v1171 = vmax.f32 %v1170, 0.0
  %v1172 = vld [vmem:[%s2] sm:$0x1]
  %v1173 = vadd.f32 %v1171, 1e-05
  %v1174 = vrsqrt.pop %v1173
  %v1175 = vmul.f32 %v1172, %v1174
  %v1176 = vld [vmem:[%s3] sm:$0x1]
  %v1177 = vmul.f32 %v1167, %v1175
  %v1178 = vsub.f32 %v1176, %v1177
  %v1180 = vlaneseq
  %v1181 = vshrl.u32 %v1180, 7
  %v1182 = vsub.s32 0, %v1181
  %v1183 = vrot.slane %v1175, %v1182
  %v1185 = vmul.f32 %v582, %v1183
  %v1186 = vmul.f32 %v585, %v1183
  %v1187 = vmul.f32 %v590, %v1183
  %v1188 = vmul.f32 %v593, %v1183
  %v1189 = vmul.f32 %v598, %v1183
  %v1190 = vmul.f32 %v601, %v1183
  %v1191 = vmul.f32 %v606, %v1183
  %v1192 = vmul.f32 %v609, %v1183
  %v1193 = vmul.f32 %v614, %v1183
  %v1194 = vmul.f32 %v617, %v1183
  %v1195 = vmul.f32 %v622, %v1183
  %v1196 = vmul.f32 %v625, %v1183
  %v1197 = vmul.f32 %v630, %v1183
  %v1198 = vmul.f32 %v633, %v1183
  %v1199 = vmul.f32 %v638, %v1183
  %v1200 = vmul.f32 %v641, %v1183
  %v1201 = vmul.f32 %v646, %v1183
  %v1202 = vmul.f32 %v649, %v1183
  %v1203 = vmul.f32 %v654, %v1183
  %v1204 = vmul.f32 %v657, %v1183
  %v1205 = vmul.f32 %v662, %v1183
  %v1206 = vmul.f32 %v665, %v1183
  %v1207 = vmul.f32 %v670, %v1183
  %v1208 = vmul.f32 %v673, %v1183
  %v1209 = vmul.f32 %v678, %v1183
  %v1210 = vmul.f32 %v681, %v1183
  %v1211 = vmul.f32 %v686, %v1183
  %v1212 = vmul.f32 %v689, %v1183
  %v1213 = vmul.f32 %v694, %v1183
  %v1214 = vmul.f32 %v697, %v1183
  %v1215 = vmul.f32 %v702, %v1183
  %v1216 = vmul.f32 %v705, %v1183
  %v1217 = vmul.f32 %v710, %v1183
  %v1218 = vmul.f32 %v713, %v1183
  %v1219 = vmul.f32 %v718, %v1183
  %v1220 = vmul.f32 %v721, %v1183
  %v1221 = vmul.f32 %v726, %v1183
  %v1222 = vmul.f32 %v729, %v1183
  %v1223 = vmul.f32 %v734, %v1183
  %v1224 = vmul.f32 %v737, %v1183
  %v1225 = vmul.f32 %v742, %v1183
  %v1226 = vmul.f32 %v745, %v1183
  %v1227 = vmul.f32 %v750, %v1183
  %v1228 = vmul.f32 %v753, %v1183
  %v1229 = vmul.f32 %v758, %v1183
  %v1230 = vmul.f32 %v761, %v1183
  %v1231 = vmul.f32 %v766, %v1183
  %v1232 = vmul.f32 %v769, %v1183
  %v1233 = vmul.f32 %v774, %v1183
  %v1234 = vmul.f32 %v777, %v1183
  %v1235 = vmul.f32 %v782, %v1183
  %v1236 = vmul.f32 %v785, %v1183
  %v1237 = vmul.f32 %v790, %v1183
  %v1238 = vmul.f32 %v793, %v1183
  %v1239 = vmul.f32 %v798, %v1183
  %v1240 = vmul.f32 %v801, %v1183
  %v1241 = vmul.f32 %v806, %v1183
  %v1242 = vmul.f32 %v809, %v1183
  %v1243 = vmul.f32 %v814, %v1183
  %v1244 = vmul.f32 %v817, %v1183
  %v1245 = vmul.f32 %v822, %v1183
  %v1246 = vmul.f32 %v825, %v1183
  %v1247 = vmul.f32 %v830, %v1183
  %v1248 = vmul.f32 %v833, %v1183
  %v1250 = vlaneseq
  %v1251 = vshrl.u32 %v1250, 7
  %v1252 = vsub.s32 0, %v1251
  %v1253 = vrot.slane %v1178, %v1252
  %v1255 = vadd.f32 %v1185, %v1253
  %v1256 = vadd.f32 %v1186, %v1253
  %v1257 = vadd.f32 %v1187, %v1253
  %v1258 = vadd.f32 %v1188, %v1253
  %v1259 = vadd.f32 %v1189, %v1253
  %v1260 = vadd.f32 %v1190, %v1253
  %v1261 = vadd.f32 %v1191, %v1253
  %v1262 = vadd.f32 %v1192, %v1253
  %v1263 = vadd.f32 %v1193, %v1253
  %v1264 = vadd.f32 %v1194, %v1253
  %v1265 = vadd.f32 %v1195, %v1253
  %v1266 = vadd.f32 %v1196, %v1253
  %v1267 = vadd.f32 %v1197, %v1253
  %v1268 = vadd.f32 %v1198, %v1253
  %v1269 = vadd.f32 %v1199, %v1253
  %v1270 = vadd.f32 %v1200, %v1253
  %v1271 = vadd.f32 %v1201, %v1253
  %v1272 = vadd.f32 %v1202, %v1253
  %v1273 = vadd.f32 %v1203, %v1253
  %v1274 = vadd.f32 %v1204, %v1253
  %v1275 = vadd.f32 %v1205, %v1253
  %v1276 = vadd.f32 %v1206, %v1253
  %v1277 = vadd.f32 %v1207, %v1253
  %v1278 = vadd.f32 %v1208, %v1253
  %v1279 = vadd.f32 %v1209, %v1253
  %v1280 = vadd.f32 %v1210, %v1253
  %v1281 = vadd.f32 %v1211, %v1253
  %v1282 = vadd.f32 %v1212, %v1253
  %v1283 = vadd.f32 %v1213, %v1253
  %v1284 = vadd.f32 %v1214, %v1253
  %v1285 = vadd.f32 %v1215, %v1253
  %v1286 = vadd.f32 %v1216, %v1253
  %v1287 = vadd.f32 %v1217, %v1253
  %v1288 = vadd.f32 %v1218, %v1253
  %v1289 = vadd.f32 %v1219, %v1253
  %v1290 = vadd.f32 %v1220, %v1253
  %v1291 = vadd.f32 %v1221, %v1253
  %v1292 = vadd.f32 %v1222, %v1253
  %v1293 = vadd.f32 %v1223, %v1253
  %v1294 = vadd.f32 %v1224, %v1253
  %v1295 = vadd.f32 %v1225, %v1253
  %v1296 = vadd.f32 %v1226, %v1253
  %v1297 = vadd.f32 %v1227, %v1253
  %v1298 = vadd.f32 %v1228, %v1253
  %v1299 = vadd.f32 %v1229, %v1253
  %v1300 = vadd.f32 %v1230, %v1253
  %v1301 = vadd.f32 %v1231, %v1253
  %v1302 = vadd.f32 %v1232, %v1253
  %v1303 = vadd.f32 %v1233, %v1253
  %v1304 = vadd.f32 %v1234, %v1253
  %v1305 = vadd.f32 %v1235, %v1253
  %v1306 = vadd.f32 %v1236, %v1253
  %v1307 = vadd.f32 %v1237, %v1253
  %v1308 = vadd.f32 %v1238, %v1253
  %v1309 = vadd.f32 %v1239, %v1253
  %v1310 = vadd.f32 %v1240, %v1253
  %v1311 = vadd.f32 %v1241, %v1253
  %v1312 = vadd.f32 %v1242, %v1253
  %v1313 = vadd.f32 %v1243, %v1253
  %v1314 = vadd.f32 %v1244, %v1253
  %v1315 = vadd.f32 %v1245, %v1253
  %v1316 = vadd.f32 %v1246, %v1253
  %v1317 = vadd.f32 %v1247, %v1253
  %v1318 = vadd.f32 %v1248, %v1253
  %v1319 = vmax.f32 %v1255, 0.0
  %v1320 = vmax.f32 %v1256, 0.0
  %v1321 = vmax.f32 %v1257, 0.0
  %v1322 = vmax.f32 %v1258, 0.0
  %v1323 = vmax.f32 %v1259, 0.0
  %v1324 = vmax.f32 %v1260, 0.0
  %v1325 = vmax.f32 %v1261, 0.0
  %v1326 = vmax.f32 %v1262, 0.0
  %v1327 = vmax.f32 %v1263, 0.0
  %v1328 = vmax.f32 %v1264, 0.0
  %v1329 = vmax.f32 %v1265, 0.0
  %v1330 = vmax.f32 %v1266, 0.0
  %v1331 = vmax.f32 %v1267, 0.0
  %v1332 = vmax.f32 %v1268, 0.0
  %v1333 = vmax.f32 %v1269, 0.0
  %v1334 = vmax.f32 %v1270, 0.0
  %v1335 = vmax.f32 %v1271, 0.0
  %v1336 = vmax.f32 %v1272, 0.0
  %v1337 = vmax.f32 %v1273, 0.0
  %v1338 = vmax.f32 %v1274, 0.0
  %v1339 = vmax.f32 %v1275, 0.0
  %v1340 = vmax.f32 %v1276, 0.0
  %v1341 = vmax.f32 %v1277, 0.0
  %v1342 = vmax.f32 %v1278, 0.0
  %v1343 = vmax.f32 %v1279, 0.0
  %v1344 = vmax.f32 %v1280, 0.0
  %v1345 = vmax.f32 %v1281, 0.0
  %v1346 = vmax.f32 %v1282, 0.0
  %v1347 = vmax.f32 %v1283, 0.0
  %v1348 = vmax.f32 %v1284, 0.0
  %v1349 = vmax.f32 %v1285, 0.0
  %v1350 = vmax.f32 %v1286, 0.0
  %v1351 = vmax.f32 %v1287, 0.0
  %v1352 = vmax.f32 %v1288, 0.0
  %v1353 = vmax.f32 %v1289, 0.0
  %v1354 = vmax.f32 %v1290, 0.0
  %v1355 = vmax.f32 %v1291, 0.0
  %v1356 = vmax.f32 %v1292, 0.0
  %v1357 = vmax.f32 %v1293, 0.0
  %v1358 = vmax.f32 %v1294, 0.0
  %v1359 = vmax.f32 %v1295, 0.0
  %v1360 = vmax.f32 %v1296, 0.0
  %v1361 = vmax.f32 %v1297, 0.0
  %v1362 = vmax.f32 %v1298, 0.0
  %v1363 = vmax.f32 %v1299, 0.0
  %v1364 = vmax.f32 %v1300, 0.0
  %v1365 = vmax.f32 %v1301, 0.0
  %v1366 = vmax.f32 %v1302, 0.0
  %v1367 = vmax.f32 %v1303, 0.0
  %v1368 = vmax.f32 %v1304, 0.0
  %v1369 = vmax.f32 %v1305, 0.0
  %v1370 = vmax.f32 %v1306, 0.0
  %v1371 = vmax.f32 %v1307, 0.0
  %v1372 = vmax.f32 %v1308, 0.0
  %v1373 = vmax.f32 %v1309, 0.0
  %v1374 = vmax.f32 %v1310, 0.0
  %v1375 = vmax.f32 %v1311, 0.0
  %v1376 = vmax.f32 %v1312, 0.0
  %v1377 = vmax.f32 %v1313, 0.0
  %v1378 = vmax.f32 %v1314, 0.0
  %v1379 = vmax.f32 %v1315, 0.0
  %v1380 = vmax.f32 %v1316, 0.0
  %v1381 = vmax.f32 %v1317, 0.0
  %v1382 = vmax.f32 %v1318, 0.0
  %v1383 = vpack.c.bf16 %v1320, %v1319
  %v1384 = vpack.c.bf16 %v1322, %v1321
  %v1385 = vpack.c.bf16 %v1324, %v1323
  %v1386 = vpack.c.bf16 %v1326, %v1325
  %v1387 = vpack.c.bf16 %v1328, %v1327
  %v1388 = vpack.c.bf16 %v1330, %v1329
  %v1389 = vpack.c.bf16 %v1332, %v1331
  %v1390 = vpack.c.bf16 %v1334, %v1333
  %v1391 = vpack.c.bf16 %v1336, %v1335
  %v1392 = vpack.c.bf16 %v1338, %v1337
  %v1393 = vpack.c.bf16 %v1340, %v1339
  %v1394 = vpack.c.bf16 %v1342, %v1341
  %v1395 = vpack.c.bf16 %v1344, %v1343
  %v1396 = vpack.c.bf16 %v1346, %v1345
  %v1397 = vpack.c.bf16 %v1348, %v1347
  %v1398 = vpack.c.bf16 %v1350, %v1349
  %v1399 = vpack.c.bf16 %v1352, %v1351
  %v1400 = vpack.c.bf16 %v1354, %v1353
  %v1401 = vpack.c.bf16 %v1356, %v1355
  %v1402 = vpack.c.bf16 %v1358, %v1357
  %v1403 = vpack.c.bf16 %v1360, %v1359
  %v1404 = vpack.c.bf16 %v1362, %v1361
  %v1405 = vpack.c.bf16 %v1364, %v1363
  %v1406 = vpack.c.bf16 %v1366, %v1365
  %v1407 = vpack.c.bf16 %v1368, %v1367
  %v1408 = vpack.c.bf16 %v1370, %v1369
  %v1409 = vpack.c.bf16 %v1372, %v1371
  %v1410 = vpack.c.bf16 %v1374, %v1373
  %v1411 = vpack.c.bf16 %v1376, %v1375
  %v1412 = vpack.c.bf16 %v1378, %v1377
  %v1413 = vpack.c.bf16 %v1380, %v1379
  %v1414 = vpack.c.bf16 %v1382, %v1381
  %v1447 = vunpack.c.l.b16 %v1383
  %v1448 = vunpack.c.h.b16 %v1383
  %v1449 = vunpack.c.l.b16 %v1384
  %v1450 = vunpack.c.h.b16 %v1384
  %v1451 = vunpack.c.l.b16 %v1385
  %v1452 = vunpack.c.h.b16 %v1385
  %v1453 = vunpack.c.l.b16 %v1386
  %v1454 = vunpack.c.h.b16 %v1386
  %v1455 = vunpack.c.l.b16 %v1387
  %v1456 = vunpack.c.h.b16 %v1387
  %v1457 = vunpack.c.l.b16 %v1388
  %v1458 = vunpack.c.h.b16 %v1388
  %v1459 = vunpack.c.l.b16 %v1389
  %v1460 = vunpack.c.h.b16 %v1389
  %v1461 = vunpack.c.l.b16 %v1390
  %v1462 = vunpack.c.h.b16 %v1390
  %v1463 = vunpack.c.l.b16 %v1391
  %v1464 = vunpack.c.h.b16 %v1391
  %v1465 = vunpack.c.l.b16 %v1392
  %v1466 = vunpack.c.h.b16 %v1392
  %v1467 = vunpack.c.l.b16 %v1393
  %v1468 = vunpack.c.h.b16 %v1393
  %v1469 = vunpack.c.l.b16 %v1394
  %v1470 = vunpack.c.h.b16 %v1394
  %v1471 = vunpack.c.l.b16 %v1395
  %v1472 = vunpack.c.h.b16 %v1395
  %v1473 = vunpack.c.l.b16 %v1396
  %v1474 = vunpack.c.h.b16 %v1396
  %v1475 = vunpack.c.l.b16 %v1397
  %v1476 = vunpack.c.h.b16 %v1397
  %v1477 = vunpack.c.l.b16 %v1398
  %v1478 = vunpack.c.h.b16 %v1398
  %v1479 = vunpack.c.l.b16 %v1399
  %v1480 = vunpack.c.h.b16 %v1399
  %v1481 = vunpack.c.l.b16 %v1400
  %v1482 = vunpack.c.h.b16 %v1400
  %v1483 = vunpack.c.l.b16 %v1401
  %v1484 = vunpack.c.h.b16 %v1401
  %v1485 = vunpack.c.l.b16 %v1402
  %v1486 = vunpack.c.h.b16 %v1402
  %v1487 = vunpack.c.l.b16 %v1403
  %v1488 = vunpack.c.h.b16 %v1403
  %v1489 = vunpack.c.l.b16 %v1404
  %v1490 = vunpack.c.h.b16 %v1404
  %v1491 = vunpack.c.l.b16 %v1405
  %v1492 = vunpack.c.h.b16 %v1405
  %v1493 = vunpack.c.l.b16 %v1406
  %v1494 = vunpack.c.h.b16 %v1406
  %v1495 = vunpack.c.l.b16 %v1407
  %v1496 = vunpack.c.h.b16 %v1407
  %v1497 = vunpack.c.l.b16 %v1408
  %v1498 = vunpack.c.h.b16 %v1408
  %v1499 = vunpack.c.l.b16 %v1409
  %v1500 = vunpack.c.h.b16 %v1409
  %v1501 = vunpack.c.l.b16 %v1410
  %v1502 = vunpack.c.h.b16 %v1410
  %v1503 = vunpack.c.l.b16 %v1411
  %v1504 = vunpack.c.h.b16 %v1411
  %v1505 = vunpack.c.l.b16 %v1412
  %v1506 = vunpack.c.h.b16 %v1412
  %v1507 = vunpack.c.l.b16 %v1413
  %v1508 = vunpack.c.h.b16 %v1413
  %v1509 = vunpack.c.l.b16 %v1414
  %v1510 = vunpack.c.h.b16 %v1414
  %v1511 = vpack.c.b16 %v1447, %v1447
  %v1512 = vpack.c.b16 %v1448, %v1448
  %v1513 = vpack.c.b16 %v1449, %v1449
  %v1514 = vpack.c.b16 %v1450, %v1450
  %v1515 = vpack.c.b16 %v1451, %v1451
  %v1516 = vpack.c.b16 %v1452, %v1452
  %v1517 = vpack.c.b16 %v1453, %v1453
  %v1518 = vpack.c.b16 %v1454, %v1454
  %v1519 = vpack.c.b16 %v1455, %v1455
  %v1520 = vpack.c.b16 %v1456, %v1456
  %v1521 = vpack.c.b16 %v1457, %v1457
  %v1522 = vpack.c.b16 %v1458, %v1458
  %v1523 = vpack.c.b16 %v1459, %v1459
  %v1524 = vpack.c.b16 %v1460, %v1460
  %v1525 = vpack.c.b16 %v1461, %v1461
  %v1526 = vpack.c.b16 %v1462, %v1462
  %v1527 = vpack.c.b16 %v1463, %v1463
  %v1528 = vpack.c.b16 %v1464, %v1464
  %v1529 = vpack.c.b16 %v1465, %v1465
  %v1530 = vpack.c.b16 %v1466, %v1466
  %v1531 = vpack.c.b16 %v1467, %v1467
  %v1532 = vpack.c.b16 %v1468, %v1468
  %v1533 = vpack.c.b16 %v1469, %v1469
  %v1534 = vpack.c.b16 %v1470, %v1470
  %v1535 = vpack.c.b16 %v1471, %v1471
  %v1536 = vpack.c.b16 %v1472, %v1472
  %v1537 = vpack.c.b16 %v1473, %v1473
  %v1538 = vpack.c.b16 %v1474, %v1474
  %v1539 = vpack.c.b16 %v1475, %v1475
  %v1540 = vpack.c.b16 %v1476, %v1476
  %v1541 = vpack.c.b16 %v1477, %v1477
  %v1542 = vpack.c.b16 %v1478, %v1478
  %v1543 = vpack.c.b16 %v1479, %v1479
  %v1544 = vpack.c.b16 %v1480, %v1480
  %v1545 = vpack.c.b16 %v1481, %v1481
  %v1546 = vpack.c.b16 %v1482, %v1482
  %v1547 = vpack.c.b16 %v1483, %v1483
  %v1548 = vpack.c.b16 %v1484, %v1484
  %v1549 = vpack.c.b16 %v1485, %v1485
  %v1550 = vpack.c.b16 %v1486, %v1486
  %v1551 = vpack.c.b16 %v1487, %v1487
  %v1552 = vpack.c.b16 %v1488, %v1488
  %v1553 = vpack.c.b16 %v1489, %v1489
  %v1554 = vpack.c.b16 %v1490, %v1490
  %v1555 = vpack.c.b16 %v1491, %v1491
  %v1556 = vpack.c.b16 %v1492, %v1492
  %v1557 = vpack.c.b16 %v1493, %v1493
  %v1558 = vpack.c.b16 %v1494, %v1494
  %v1559 = vpack.c.b16 %v1495, %v1495
  %v1560 = vpack.c.b16 %v1496, %v1496
  %v1561 = vpack.c.b16 %v1497, %v1497
  %v1562 = vpack.c.b16 %v1498, %v1498
  %v1563 = vpack.c.b16 %v1499, %v1499
  %v1564 = vpack.c.b16 %v1500, %v1500
  %v1565 = vpack.c.b16 %v1501, %v1501
  %v1566 = vpack.c.b16 %v1502, %v1502
  %v1567 = vpack.c.b16 %v1503, %v1503
  %v1568 = vpack.c.b16 %v1504, %v1504
  %v1569 = vpack.c.b16 %v1505, %v1505
  %v1570 = vpack.c.b16 %v1506, %v1506
  %v1571 = vpack.c.b16 %v1507, %v1507
  %v1572 = vpack.c.b16 %v1508, %v1508
  %v1573 = vpack.c.b16 %v1509, %v1509
  %v1574 = vpack.c.b16 %v1510, %v1510
  %vm1639 = vcmask 60416
  %1640 = vst.msk [vmem:[%s4] sm:$0xf] %vm1639, %v1511
  %1641 = vst.msk [vmem:[%s4 + $0x4] sm:$0xf] %vm1639, %v1512
  %1642 = vst.msk [vmem:[%s4 + $0x8] sm:$0xf] %vm1639, %v1513
  %1643 = vst.msk [vmem:[%s4 + $0xc] sm:$0xf] %vm1639, %v1514
  %1644 = vst.msk [vmem:[%s4 + $0x10] sm:$0xf] %vm1639, %v1515
  %1645 = vst.msk [vmem:[%s4 + $0x14] sm:$0xf] %vm1639, %v1516
  %1646 = vst.msk [vmem:[%s4 + $0x18] sm:$0xf] %vm1639, %v1517
  %1647 = vst.msk [vmem:[%s4 + $0x1c] sm:$0xf] %vm1639, %v1518
  %1648 = vst.msk [vmem:[%s4 + $0x20] sm:$0xf] %vm1639, %v1519
  %1649 = vst.msk [vmem:[%s4 + $0x24] sm:$0xf] %vm1639, %v1520
  %1650 = vst.msk [vmem:[%s4 + $0x28] sm:$0xf] %vm1639, %v1521
  %1651 = vst.msk [vmem:[%s4 + $0x2c] sm:$0xf] %vm1639, %v1522
  %1652 = vst.msk [vmem:[%s4 + $0x30] sm:$0xf] %vm1639, %v1523
  %1653 = vst.msk [vmem:[%s4 + $0x34] sm:$0xf] %vm1639, %v1524
  %1654 = vst.msk [vmem:[%s4 + $0x38] sm:$0xf] %vm1639, %v1525
  %1655 = vst.msk [vmem:[%s4 + $0x3c] sm:$0xf] %vm1639, %v1526
  %1656 = vst.msk [vmem:[%s4 + $0x40] sm:$0xf] %vm1639, %v1527
  %1657 = vst.msk [vmem:[%s4 + $0x44] sm:$0xf] %vm1639, %v1528
  %1658 = vst.msk [vmem:[%s4 + $0x48] sm:$0xf] %vm1639, %v1529
  %1659 = vst.msk [vmem:[%s4 + $0x4c] sm:$0xf] %vm1639, %v1530
  %1660 = vst.msk [vmem:[%s4 + $0x50] sm:$0xf] %vm1639, %v1531
  %1661 = vst.msk [vmem:[%s4 + $0x54] sm:$0xf] %vm1639, %v1532
  %1662 = vst.msk [vmem:[%s4 + $0x58] sm:$0xf] %vm1639, %v1533
  %1663 = vst.msk [vmem:[%s4 + $0x5c] sm:$0xf] %vm1639, %v1534
  %1664 = vst.msk [vmem:[%s4 + $0x60] sm:$0xf] %vm1639, %v1535
  %1665 = vst.msk [vmem:[%s4 + $0x64] sm:$0xf] %vm1639, %v1536
  %1666 = vst.msk [vmem:[%s4 + $0x68] sm:$0xf] %vm1639, %v1537
  %1667 = vst.msk [vmem:[%s4 + $0x6c] sm:$0xf] %vm1639, %v1538
  %1668 = vst.msk [vmem:[%s4 + $0x70] sm:$0xf] %vm1639, %v1539
  %1669 = vst.msk [vmem:[%s4 + $0x74] sm:$0xf] %vm1639, %v1540
  %1670 = vst.msk [vmem:[%s4 + $0x78] sm:$0xf] %vm1639, %v1541
  %1671 = vst.msk [vmem:[%s4 + $0x7c] sm:$0xf] %vm1639, %v1542
  %1672 = vst.msk [vmem:[%s4 + $0x80] sm:$0xf] %vm1639, %v1543
  %1673 = vst.msk [vmem:[%s4 + $0x84] sm:$0xf] %vm1639, %v1544
  %1674 = vst.msk [vmem:[%s4 + $0x88] sm:$0xf] %vm1639, %v1545
  %1675 = vst.msk [vmem:[%s4 + $0x8c] sm:$0xf] %vm1639, %v1546
  %1676 = vst.msk [vmem:[%s4 + $0x90] sm:$0xf] %vm1639, %v1547
  %1677 = vst.msk [vmem:[%s4 + $0x94] sm:$0xf] %vm1639, %v1548
  %1678 = vst.msk [vmem:[%s4 + $0x98] sm:$0xf] %vm1639, %v1549
  %1679 = vst.msk [vmem:[%s4 + $0x9c] sm:$0xf] %vm1639, %v1550
  %1680 = vst.msk [vmem:[%s4 + $0xa0] sm:$0xf] %vm1639, %v1551
  %1681 = vst.msk [vmem:[%s4 + $0xa4] sm:$0xf] %vm1639, %v1552
  %1682 = vst.msk [vmem:[%s4 + $0xa8] sm:$0xf] %vm1639, %v1553
  %1683 = vst.msk [vmem:[%s4 + $0xac] sm:$0xf] %vm1639, %v1554
  %1684 = vst.msk [vmem:[%s4 + $0xb0] sm:$0xf] %vm1639, %v1555
  %1685 = vst.msk [vmem:[%s4 + $0xb4] sm:$0xf] %vm1639, %v1556
  %1686 = vst.msk [vmem:[%s4 + $0xb8] sm:$0xf] %vm1639, %v1557
  %1687 = vst.msk [vmem:[%s4 + $0xbc] sm:$0xf] %vm1639, %v1558
  %1688 = vst.msk [vmem:[%s4 + $0xc0] sm:$0xf] %vm1639, %v1559
  %1689 = vst.msk [vmem:[%s4 + $0xc4] sm:$0xf] %vm1639, %v1560
  %1690 = vst.msk [vmem:[%s4 + $0xc8] sm:$0xf] %vm1639, %v1561
  %1691 = vst.msk [vmem:[%s4 + $0xcc] sm:$0xf] %vm1639, %v1562
  %1692 = vst.msk [vmem:[%s4 + $0xd0] sm:$0xf] %vm1639, %v1563
  %1693 = vst.msk [vmem:[%s4 + $0xd4] sm:$0xf] %vm1639, %v1564
  %1694 = vst.msk [vmem:[%s4 + $0xd8] sm:$0xf] %vm1639, %v1565
  %1695 = vst.msk [vmem:[%s4 + $0xdc] sm:$0xf] %vm1639, %v1566
  %1696 = vst.msk [vmem:[%s4 + $0xe0] sm:$0xf] %vm1639, %v1567
  %1697 = vst.msk [vmem:[%s4 + $0xe4] sm:$0xf] %vm1639, %v1568
  %1698 = vst.msk [vmem:[%s4 + $0xe8] sm:$0xf] %vm1639, %v1569
  %1699 = vst.msk [vmem:[%s4 + $0xec] sm:$0xf] %vm1639, %v1570
  %1700 = vst.msk [vmem:[%s4 + $0xf0] sm:$0xf] %vm1639, %v1571
  %1701 = vst.msk [vmem:[%s4 + $0xf4] sm:$0xf] %vm1639, %v1572
  %1702 = vst.msk [vmem:[%s4 + $0xf8] sm:$0xf] %vm1639, %v1573
  %1703 = vst.msk [vmem:[%s4 + $0xfc] sm:$0xf] %vm1639, %v1574
  // Predicated region
  $region18: #{g_net_forward.10} parent=0 // pred_check
    _
  $region19: #{g_net_forward.10} parent=0 // pred_check_branch
    %1705 = sbr.rel (0) target = $region21
  $region20: #{g_net_forward.10} parent=0 // pred_region
    _
  $region21: #{g_net_forward.10} parent=0 // pred_fallthru
    _
  // Predicated region
  $region22: #{g_net_forward.10} parent=0 // pred_check
    _
  $region23: #{g_net_forward.10} parent=0 // pred_check_branch
    %1707 = sbr.rel (0) target = $region25
  $region24: #{g_net_forward.10} parent=0 // pred_region
    _
  $region25: #{g_net_forward.10} parent=0 // pred_fallthru
    _

// kernel: g_net_forward.12
$region0: #{g_net_forward.12}
  #allocation0 [shape = 'u32[]', space=smem, size = 0x4, offset = 0x4, fixed_abs, tag = 'smem constant byte address 0x4 - core index']
  #allocation1 [shape = 'u32[144,128]{1,0:T(1,128)}', space=vmem, size = 0x12000, scoped, tag = 'internal scratch']
  %s0 = inlined_call_operand.vmem [shape: bf16[32,144], index: 0, kind: input, shape index: {}]
  %s1 = inlined_call_operand.vmem [shape: bf16[144,32], index: 1, kind: input, shape index: {}]
  %s2 = inlined_call_operand.vmem [shape: f32[1,32], index: 2, kind: input, shape index: {}]
  %s3 = inlined_call_operand.vmem [shape: f32[1,32], index: 3, kind: input, shape index: {}]
  %s4 = inlined_call_operand.vmem [shape: bf16[32,32], index: 4, kind: output, shape index: {}]
  %s5 = sld [smem:[#allocation0]]
  $region26: #{g_net_forward.12} parent=0
    _
  %s7 = ssub.s32 1, %s5
  %s8 = scalar_select 0, %s7, %s5
  // Predicated region
  $region2: #{g_net_forward.12} parent=0 // pred_check
    _
  $region3: #{g_net_forward.12} parent=0 // pred_check_branch
    %10 = sbr.rel (0) target = $region5
  $region4: #{g_net_forward.12} parent=0 // pred_region
    _
  $region5: #{g_net_forward.12} parent=0 // pred_fallthru
    _
  // Predicated region
  $region6: #{g_net_forward.12} parent=0 // pred_check
    _
  $region7: #{g_net_forward.12} parent=0 // pred_check_branch
    %12 = sbr.rel (0) target = $region9
  $region8: #{g_net_forward.12} parent=0 // pred_region
    _
  $region9: #{g_net_forward.12} parent=0 // pred_fallthru
    _
  // Predicated region
  $region10: #{g_net_forward.12} parent=0 // pred_check
    _
  $region11: #{g_net_forward.12} parent=0 // pred_check_branch
    %14 = sbr.rel (0) target = $region13
  $region12: #{g_net_forward.12} parent=0 // pred_region
    _
  $region13: #{g_net_forward.12} parent=0 // pred_fallthru
    _
  // Predicated region
  $region14: #{g_net_forward.12} parent=0 // pred_check
    _
  $region15: #{g_net_forward.12} parent=0 // pred_check_branch
    %16 = sbr.rel (0) target = $region17
  $region16: #{g_net_forward.12} parent=0 // pred_region
    _
  $region17: #{g_net_forward.12} parent=0 // pred_fallthru
    _
  %v18 = vld [vmem:[%s0] sm:$0xff]
  %v19 = vld [vmem:[%s0 + $0x8] sm:$0xff]
  %v20 = vld [vmem:[%s0 + $0x10] sm:$0xff]
  %v21 = vld [vmem:[%s0 + $0x18] sm:$0xff]
  %v22 = vld [vmem:[%s1] sm:$0xf]
  %v23 = vld [vmem:[%s1 + $0x4] sm:$0xf]
  %v24 = vld [vmem:[%s1 + $0x8] sm:$0xf]
  %v25 = vld [vmem:[%s1 + $0xc] sm:$0xf]
  %v26 = vld [vmem:[%s1 + $0x10] sm:$0xf]
  %v27 = vld [vmem:[%s1 + $0x14] sm:$0xf]
  %v28 = vld [vmem:[%s1 + $0x18] sm:$0xf]
  %v29 = vld [vmem:[%s1 + $0x1c] sm:$0xf]
  %v30 = vld [vmem:[%s1 + $0x20] sm:$0xf]
  %v31 = vld [vmem:[%s1 + $0x24] sm:$0xf]
  %v32 = vld [vmem:[%s1 + $0x28] sm:$0xf]
  %v33 = vld [vmem:[%s1 + $0x2c] sm:$0xf]
  %v34 = vld [vmem:[%s1 + $0x30] sm:$0xf]
  %v35 = vld [vmem:[%s1 + $0x34] sm:$0xf]
  %v36 = vld [vmem:[%s1 + $0x38] sm:$0xf]
  %v37 = vld [vmem:[%s1 + $0x3c] sm:$0xf]
  %v38 = vld [vmem:[%s1 + $0x40] sm:$0xf]
  %v39 = vld [vmem:[%s1 + $0x44] sm:$0xf]
  %v44 = vunpack.c.l.b16 %v18
  %v45 = vunpack.c.h.b16 %v18
  %v46 = vunpack.c.l.b16 %v19
  %v47 = vunpack.c.h.b16 %v19
  %v48 = vunpack.c.l.b16 %v20
  %v49 = vunpack.c.h.b16 %v20
  %v50 = vunpack.c.l.b16 %v21
  %v51 = vunpack.c.h.b16 %v21
  %v52 = vpack.c.b16 %v46, %v44
  %v53 = vpack.c.b16 %v47, %v45
  %v54 = vpack.c.b16 %v50, %v48
  %v55 = vpack.c.b16 %v51, %v49
  %v76 = vunpack.c.l.b16 %v22
  %v77 = vunpack.c.l.b16 %v23
  %v78 = vunpack.c.l.b16 %v24
  %v79 = vunpack.c.l.b16 %v25
  %v80 = vunpack.c.l.b16 %v26
  %v81 = vunpack.c.l.b16 %v27
  %v82 = vunpack.c.l.b16 %v28
  %v83 = vunpack.c.l.b16 %v29
  %v84 = vunpack.c.l.b16 %v30
  %v85 = vunpack.c.l.b16 %v31
  %v86 = vunpack.c.l.b16 %v32
  %v87 = vunpack.c.l.b16 %v33
  %v88 = vunpack.c.l.b16 %v34
  %v89 = vunpack.c.l.b16 %v35
  %v90 = vunpack.c.l.b16 %v36
  %v91 = vunpack.c.l.b16 %v37
  %v92 = vunpack.c.l.b16 %v38
  %v93 = vunpack.c.l.b16 %v39
  %v94 = vpack.c.b16 %v77, %v76
  %v95 = vpack.c.b16 %v79, %v78
  %v96 = vpack.c.b16 %v81, %v80
  %v97 = vpack.c.b16 %v83, %v82
  %v98 = vpack.c.b16 %v85, %v84
  %v99 = vpack.c.b16 %v87, %v86
  %v100 = vpack.c.b16 %v89, %v88
  %v101 = vpack.c.b16 %v91, %v90
  %v102 = vpack.c.b16 %v93, %v92
  %vm112 = vcmask 130048
  %v114 = vsel %vm112, %v53, 0
  %v117 = vsel %vm112, %v55, 0
  %119 = vmatprep.subr.bf16.mxu0 0
  %120 = vmatpush1.bf16.msra.mxu0 %v94
  %121 = vmatprep.subr.bf16.mxu0 0
  %122 = vmatpush1.bf16.msra.mxu0 %v95
  %123 = vmatprep.subr.bf16.mxu0 0
  %124 = vmatpush1.bf16.msra.mxu0 %v96
  %125 = vmatprep.subr.bf16.mxu0 0
  %126 = vmatpush1.bf16.msra.mxu0 %v97
  %127 = vmatprep.subr.bf16.mxu0 0
  %128 = vmatpush1.bf16.msra.mxu0 %v98
  %129 = vmatprep.subr.bf16.mxu0 0
  %130 = vmatpush1.bf16.msra.mxu0 %v99
  %131 = vmatprep.subr.bf16.mxu0 0
  %132 = vmatpush1.bf16.msra.mxu0 %v100
  %133 = vmatprep.subr.bf16.mxu0 0
  %134 = vmatpush1.bf16.msra.mxu0 %v101
  %135 = vmatprep.subr.bf16.mxu0 0
  %136 = vmatpush1.bf16.msra.mxu0 %v102
  %137 = vmatprep.subr.bf16.mxu0 0
  %138 = vmatpush1.bf16.msra.mxu0 0
  %139 = vmatprep.subr.bf16.mxu0 0
  %140 = vmatpush1.bf16.msra.mxu0 0
  %141 = vmatprep.subr.bf16.mxu0 0
  %142 = vmatpush1.bf16.msra.mxu0 0
  %143 = vmatprep.subr.bf16.mxu0 0
  %144 = vmatpush1.bf16.msra.mxu0 0
  %145 = vmatprep.subr.bf16.mxu0 0
  %146 = vmatpush1.bf16.msra.mxu0 0
  %147 = vmatprep.subr.bf16.mxu0 0
  %148 = vmatpush1.bf16.msra.mxu0 0
  %149 = vmatprep.subr.bf16.mxu0 0
  %150 = vmatpush1.bf16.msra.mxu0 0
  %151 = vmatprep.mubr.bf16.mxu0 %v114
  %152 = vmatmul.mubr.bf16.gmra.mrb[0].mxu0 %v52
  %v153 = vpop.f32.mrb[0].mxu0
  %v154 = vadd.f32 0.0, %v153
  %v155 = vpop.f32.mrb[0].mxu0
  %v156 = vpop.f32.mrb[0].mxu0
  %v157 = vadd.f32 0.0, %v156
  %v158 = vpop.f32.mrb[0].mxu0
  %159 = vmatprep.mubr.bf16.mxu0 %v117
  %160 = vmatmul.mubr.bf16.gmra.mrb[0].mxu0 %v54
  %v161 = vpop.f32.mrb[0].mxu0
  %v162 = vadd.f32 0.0, %v161
  %v163 = vpop.f32.mrb[0].mxu0
  %v164 = vpop.f32.mrb[0].mxu0
  %v165 = vadd.f32 0.0, %v164
  %v166 = vpop.f32.mrb[0].mxu0
  %167 = vdwg.mxu0
  %vm168 = vcmask 261120
  %v169 = vsel %vm168, %v154, 0.0
  %v170 = vsel %vm168, %v157, 0.0
  %v171 = vadd.f32 %v169, %v170
  %v172 = vsel %vm168, %v162, 0.0
  %v173 = vadd.f32 %v171, %v172
  %v174 = vsel %vm168, %v165, 0.0
  %v175 = vadd.f32 %v173, %v174
  %v176 = vrot.slane %v175, 4
  %v177 = vadd.f32 %v175, %v176
  %v178 = vrot.slane %v177, 2
  %v179 = vadd.f32 %v177, %v178
  %v180 = vrot.slane %v179, 1
  %v181 = vadd.f32 %v179, %v180
  %v182 = vmul.f32 %v154, %v154
  %v183 = vmul.f32 %v157, %v157
  %v184 = vmul.f32 %v162, %v162
  %v185 = vmul.f32 %v165, %v165
  %v186 = vsel %vm168, %v182, 0.0
  %v187 = vsel %vm168, %v183, 0.0
  %v188 = vadd.f32 %v186, %v187
  %v189 = vsel %vm168, %v184, 0.0
  %v190 = vadd.f32 %v188, %v189
  %v191 = vsel %vm168, %v185, 0.0
  %v192 = vadd.f32 %v190, %v191
  %v193 = vrot.slane %v192, 4
  %v194 = vadd.f32 %v192, %v193
  %v195 = vrot.slane %v194, 2
  %v196 = vadd.f32 %v194, %v195
  %v197 = vrot.slane %v196, 1
  %v198 = vadd.f32 %v196, %v197
  %v199 = vmul.f32 %v181, 0.03125
  %v200 = vmul.f32 %v198, 0.03125
  %v201 = vmul.f32 %v199, %v199
  %v202 = vsub.f32 %v200, %v201
  %v203 = vmax.f32 %v202, 0.0
  %v204 = vld [vmem:[%s2] sm:$0x1]
  %v205 = vadd.f32 %v203, 1e-05
  %v206 = vrsqrt.pop %v205
  %v207 = vmul.f32 %v204, %v206
  %v208 = vld [vmem:[%s3] sm:$0x1]
  %v209 = vmul.f32 %v199, %v207
  %v210 = vsub.f32 %v208, %v209
  %v212 = vlaneseq
  %v213 = vshrl.u32 %v212, 7
  %v214 = vsub.s32 0, %v213
  %v215 = vrot.slane %v207, %v214
  %v217 = vmul.f32 %v154, %v215
  %v218 = vmul.f32 %v157, %v215
  %v219 = vmul.f32 %v162, %v215
  %v220 = vmul.f32 %v165, %v215
  %v222 = vlaneseq
  %v223 = vshrl.u32 %v222, 7
  %v224 = vsub.s32 0, %v223
  %v225 = vrot.slane %v210, %v224
  %v227 = vadd.f32 %v217, %v225
  %v228 = vadd.f32 %v218, %v225
  %v229 = vadd.f32 %v219, %v225
  %v230 = vadd.f32 %v220, %v225
  %v231 = vmax.f32 %v227, 0.0
  %v232 = vmax.f32 %v228, 0.0
  %v233 = vmax.f32 %v229, 0.0
  %v234 = vmax.f32 %v230, 0.0
  %v235 = vpack.c.bf16 %v232, %v231
  %v236 = vpack.c.bf16 %v234, %v233
  %v239 = vunpack.c.l.b16 %v235
  %v240 = vunpack.c.h.b16 %v235
  %v241 = vunpack.c.l.b16 %v236
  %v242 = vunpack.c.h.b16 %v236
  %v243 = vpack.c.b16 %v239, %v239
  %v244 = vpack.c.b16 %v240, %v240
  %v245 = vpack.c.b16 %v241, %v241
  %v246 = vpack.c.b16 %v242, %v242
  %vm251 = vcmask 257024
  %252 = vst.msk [vmem:[%s4] sm:$0xf] %vm251, %v243
  %253 = vst.msk [vmem:[%s4 + $0x4] sm:$0xf] %vm251, %v244
  %254 = vst.msk [vmem:[%s4 + $0x8] sm:$0xf] %vm251, %v245
  %255 = vst.msk [vmem:[%s4 + $0xc] sm:$0xf] %vm251, %v246
  // Predicated region
  $region18: #{g_net_forward.12} parent=0 // pred_check
    _
  $region19: #{g_net_forward.12} parent=0 // pred_check_branch
    %257 = sbr.rel (0) target = $region21
  $region20: #{g_net_forward.12} parent=0 // pred_region
    _
  $region21: #{g_net_forward.12} parent=0 // pred_fallthru
    _
  // Predicated region
  $region22: #{g_net_forward.12} parent=0 // pred_check
    _
  $region23: #{g_net_forward.12} parent=0 // pred_check_branch
    %259 = sbr.rel (0) target = $region25
  $region24: #{g_net_forward.12} parent=0 // pred_region
    _
  $region25: #{g_net_forward.12} parent=0 // pred_fallthru
    _

// kernel: g_net_forward.14
$region0: #{g_net_forward.14}
  #allocation0 [shape = 'u32[]', space=smem, size = 0x4, offset = 0x4, fixed_abs, tag = 'smem constant byte address 0x4 - core index']
  #allocation1 [shape = 'u32[144,128]{1,0:T(1,128)}', space=vmem, size = 0x12000, scoped, tag = 'internal scratch']
  %s0 = inlined_call_operand.vmem [shape: bf16[32,288], index: 0, kind: input, shape index: {}]
  %s1 = inlined_call_operand.vmem [shape: bf16[288,32], index: 1, kind: input, shape index: {}]
  %s2 = inlined_call_operand.vmem [shape: f32[1,32], index: 2, kind: input, shape index: {}]
  %s3 = inlined_call_operand.vmem [shape: f32[1,32], index: 3, kind: input, shape index: {}]
  %s4 = inlined_call_operand.vmem [shape: bf16[32,32], index: 4, kind: input, shape index: {}]
  %s5 = inlined_call_operand.vmem [shape: bf16[32,32], index: 5, kind: output, shape index: {}]
  %s6 = sld [smem:[#allocation0]]
  $region30: #{g_net_forward.14} parent=0
    _
  %s8 = ssub.s32 1, %s6
  %s9 = scalar_select 0, %s8, %s6
  // Predicated region
  $region2: #{g_net_forward.14} parent=0 // pred_check
    _
  $region3: #{g_net_forward.14} parent=0 // pred_check_branch
    %11 = sbr.rel (0) target = $region5
  $region4: #{g_net_forward.14} parent=0 // pred_region
    _
  $region5: #{g_net_forward.14} parent=0 // pred_fallthru
    _
  // Predicated region
  $region6: #{g_net_forward.14} parent=0 // pred_check
    _
  $region7: #{g_net_forward.14} parent=0 // pred_check_branch
    %13 = sbr.rel (0) target = $region9
  $region8: #{g_net_forward.14} parent=0 // pred_region
    _
  $region9: #{g_net_forward.14} parent=0 // pred_fallthru
    _
  // Predicated region
  $region10: #{g_net_forward.14} parent=0 // pred_check
    _
  $region11: #{g_net_forward.14} parent=0 // pred_check_branch
    %15 = sbr.rel (0) target = $region13
  $region12: #{g_net_forward.14} parent=0 // pred_region
    _
  $region13: #{g_net_forward.14} parent=0 // pred_fallthru
    _
  // Predicated region
  $region14: #{g_net_forward.14} parent=0 // pred_check
    _
  $region15: #{g_net_forward.14} parent=0 // pred_check_branch
    %17 = sbr.rel (0) target = $region17
  $region16: #{g_net_forward.14} parent=0 // pred_region
    _
  $region17: #{g_net_forward.14} parent=0 // pred_fallthru
    _
  // Predicated region
  $region18: #{g_net_forward.14} parent=0 // pred_check
    _
  $region19: #{g_net_forward.14} parent=0 // pred_check_branch
    %19 = sbr.rel (0) target = $region21
  $region20: #{g_net_forward.14} parent=0 // pred_region
    _
  $region21: #{g_net_forward.14} parent=0 // pred_fallthru
    _
  %v21 = vld [vmem:[%s0] sm:$0xff]
  %v22 = vld [vmem:[%s0 + $0x8] sm:$0xf]
  %v23 = vld [vmem:[%s0 + $0xc] sm:$0xff]
  %v24 = vld [vmem:[%s0 + $0x14] sm:$0xf]
  %v25 = vld [vmem:[%s0 + $0x18] sm:$0xff]
  %v26 = vld [vmem:[%s0 + $0x20] sm:$0xf]
  %v27 = vld [vmem:[%s0 + $0x24] sm:$0xff]
  %v28 = vld [vmem:[%s0 + $0x2c] sm:$0xf]
  %v29 = vld [vmem:[%s1] sm:$0xf]
  %v30 = vld [vmem:[%s1 + $0x4] sm:$0xf]
  %v31 = vld [vmem:[%s1 + $0x8] sm:$0xf]
  %v32 = vld [vmem:[%s1 + $0xc] sm:$0xf]
  %v33 = vld [vmem:[%s1 + $0x10] sm:$0xf]
  %v34 = vld [vmem:[%s1 + $0x14] sm:$0xf]
  %v35 = vld [vmem:[%s1 + $0x18] sm:$0xf]
  %v36 = vld [vmem:[%s1 + $0x1c] sm:$0xf]
  %v37 = vld [vmem:[%s1 + $0x20] sm:$0xf]
  %v38 = vld [vmem:[%s1 + $0x24] sm:$0xf]
  %v39 = vld [vmem:[%s1 + $0x28] sm:$0xf]
  %v40 = vld [vmem:[%s1 + $0x2c] sm:$0xf]
  %v41 = vld [vmem:[%s1 + $0x30] sm:$0xf]
  %v42 = vld [vmem:[%s1 + $0x34] sm:$0xf]
  %v43 = vld [vmem:[%s1 + $0x38] sm:$0xf]
  %v44 = vld [vmem:[%s1 + $0x3c] sm:$0xf]
  %v45 = vld [vmem:[%s1 + $0x40] sm:$0xf]
  %v46 = vld [vmem:[%s1 + $0x44] sm:$0xf]
  %v47 = vld [vmem:[%s1 + $0x48] sm:$0xf]
  %v48 = vld [vmem:[%s1 + $0x4c] sm:$0xf]
  %v49 = vld [vmem:[%s1 + $0x50] sm:$0xf]
  %v50 = vld [vmem:[%s1 + $0x54] sm:$0xf]
  %v51 = vld [vmem:[%s1 + $0x58] sm:$0xf]
  %v52 = vld [vmem:[%s1 + $0x5c] sm:$0xf]
  %v53 = vld [vmem:[%s1 + $0x60] sm:$0xf]
  %v54 = vld [vmem:[%s1 + $0x64] sm:$0xf]
  %v55 = vld [vmem:[%s1 + $0x68] sm:$0xf]
  %v56 = vld [vmem:[%s1 + $0x6c] sm:$0xf]
  %v57 = vld [vmem:[%s1 + $0x70] sm:$0xf]
  %v58 = vld [vmem:[%s1 + $0x74] sm:$0xf]
  %v59 = vld [vmem:[%s1 + $0x78] sm:$0xf]
  %v60 = vld [vmem:[%s1 + $0x7c] sm:$0xf]
  %v61 = vld [vmem:[%s1 + $0x80] sm:$0xf]
  %v62 = vld [vmem:[%s1 + $0x84] sm:$0xf]
  %v63 = vld [vmem:[%s1 + $0x88] sm:$0xf]
  %v64 = vld [vmem:[%s1 + $0x8c] sm:$0xf]
  %v73 = vunpack.c.l.b16 %v21
  %v74 = vunpack.c.h.b16 %v21
  %v75 = vunpack.c.l.b16 %v22
  %v76 = vunpack.c.l.b16 %v23
  %v77 = vunpack.c.h.b16 %v23
  %v78 = vunpack.c.l.b16 %v24
  %v79 = vunpack.c.l.b16 %v25
  %v80 = vunpack.c.h.b16 %v25
  %v81 = vunpack.c.l.b16 %v26
  %v82 = vunpack.c.l.b16 %v27
  %v83 = vunpack.c.h.b16 %v27
  %v84 = vunpack.c.l.b16 %v28
  %v85 = vpack.c.b16 %v76, %v73
  %v86 = vpack.c.b16 %v77, %v74
  %v87 = vpack.c.b16 %v78, %v75
  %v88 = vpack.c.b16 %v82, %v79
  %v89 = vpack.c.b16 %v83, %v80
  %v90 = vpack.c.b16 %v84, %v81
  %v131 = vunpack.c.l.b16 %v29
  %v132 = vunpack.c.l.b16 %v30
  %v133 = vunpack.c.l.b16 %v31
  %v134 = vunpack.c.l.b16 %v32
  %v135 = vunpack.c.l.b16 %v33
  %v136 = vunpack.c.l.b16 %v34
  %v137 = vunpack.c.l.b16 %v35
  %v138 = vunpack.c.l.b16 %v36
  %v139 = vunpack.c.l.b16 %v37
  %v140 = vunpack.c.l.b16 %v38
  %v141 = vunpack.c.l.b16 %v39
  %v142 = vunpack.c.l.b16 %v40
  %v143 = vunpack.c.l.b16 %v41
  %v144 = vunpack.c.l.b16 %v42
  %v145 = vunpack.c.l.b16 %v43
  %v146 = vunpack.c.l.b16 %v44
  %v147 = vunpack.c.l.b16 %v45
  %v148 = vunpack.c.l.b16 %v46
  %v149 = vunpack.c.l.b16 %v47
  %v150 = vunpack.c.l.b16 %v48
  %v151 = vunpack.c.l.b16 %v49
  %v152 = vunpack.c.l.b16 %v50
  %v153 = vunpack.c.l.b16 %v51
  %v154 = vunpack.c.l.b16 %v52
  %v155 = vunpack.c.l.b16 %v53
  %v156 = vunpack.c.l.b16 %v54
  %v157 = vunpack.c.l.b16 %v55
  %v158 = vunpack.c.l.b16 %v56
  %v159 = vunpack.c.l.b16 %v57
  %v160 = vunpack.c.l.b16 %v58
  %v161 = vunpack.c.l.b16 %v59
  %v162 = vunpack.c.l.b16 %v60
  %v163 = vunpack.c.l.b16 %v61
  %v164 = vunpack.c.l.b16 %v62
  %v165 = vunpack.c.l.b16 %v63
  %v166 = vunpack.c.l.b16 %v64
  %v167 = vpack.c.b16 %v132, %v131
  %v168 = vpack.c.b16 %v134, %v133
  %v169 = vpack.c.b16 %v136, %v135
  %v170 = vpack.c.b16 %v138, %v137
  %v171 = vpack.c.b16 %v140, %v139
  %v172 = vpack.c.b16 %v142, %v141
  %v173 = vpack.c.b16 %v144, %v143
  %v174 = vpack.c.b16 %v146, %v145
  %v175 = vpack.c.b16 %v148, %v147
  %v176 = vpack.c.b16 %v150, %v149
  %v177 = vpack.c.b16 %v152, %v151
  %v178 = vpack.c.b16 %v154, %v153
  %v179 = vpack.c.b16 %v156, %v155
  %v180 = vpack.c.b16 %v158, %v157
  %v181 = vpack.c.b16 %v160, %v159
  %v182 = vpack.c.b16 %v162, %v161
  %v183 = vpack.c.b16 %v164, %v163
  %v184 = vpack.c.b16 %v166, %v165
  %vm203 = vcmask 261120
  %v205 = vsel %vm203, %v87, 0
  %v208 = vsel %vm203, %v90, 0
  %210 = vmatprep.subr.bf16.mxu0 0
  %211 = vmatpush1.bf16.msra.mxu0 %v167
  %212 = vmatprep.subr.bf16.mxu0 0
  %213 = vmatpush1.bf16.msra.mxu0 %v168
  %214 = vmatprep.subr.bf16.mxu0 0
  %215 = vmatpush1.bf16.msra.mxu0 %v169
  %216 = vmatprep.subr.bf16.mxu0 0
  %217 = vmatpush1.bf16.msra.mxu0 %v170
  %218 = vmatprep.subr.bf16.mxu0 0
  %219 = vmatpush1.bf16.msra.mxu0 %v171
  %220 = vmatprep.subr.bf16.mxu0 0
  %221 = vmatpush1.bf16.msra.mxu0 %v172
  %222 = vmatprep.subr.bf16.mxu0 0
  %223 = vmatpush1.bf16.msra.mxu0 %v173
  %224 = vmatprep.subr.bf16.mxu0 0
  %225 = vmatpush1.bf16.msra.mxu0 %v174
  %226 = vmatprep.subr.bf16.mxu0 0
  %227 = vmatpush1.bf16.msra.mxu0 %v175
  %228 = vmatprep.subr.bf16.mxu0 0
  %229 = vmatpush1.bf16.msra.mxu0 %v176
  %230 = vmatprep.subr.bf16.mxu0 0
  %231 = vmatpush1.bf16.msra.mxu0 %v177
  %232 = vmatprep.subr.bf16.mxu0 0
  %233 = vmatpush1.bf16.msra.mxu0 %v178
  %234 = vmatprep.subr.bf16.mxu0 0
  %235 = vmatpush1.bf16.msra.mxu0 %v179
  %236 = vmatprep.subr.bf16.mxu0 0
  %237 = vmatpush1.bf16.msra.mxu0 %v180
  %238 = vmatprep.subr.bf16.mxu0 0
  %239 = vmatpush1.bf16.msra.mxu0 %v181
  %240 = vmatprep.subr.bf16.mxu0 0
  %241 = vmatpush1.bf16.msra.mxu0 %v182
  %242 = vmatprep.mubr.bf16.mxu0 %v86
  %243 = vmatmul.mubr.bf16.gmra.mrb[0].mxu0 %v85
  %v244 = vpop.f32.mrb[0].mxu0
  %v245 = vadd.f32 0.0, %v244
  %v246 = vpop.f32.mrb[0].mxu0
  %v247 = vpop.f32.mrb[0].mxu0
  %v248 = vadd.f32 0.0, %v247
  %v249 = vpop.f32.mrb[0].mxu0
  %250 = vmatprep.mubr.bf16.mxu0 %v89
  %251 = vmatmul.mubr.bf16.gmra.mrb[0].mxu0 %v88
  %v252 = vpop.f32.mrb[0].mxu0
  %v253 = vadd.f32 0.0, %v252
  %v254 = vpop.f32.mrb[0].mxu0
  %v255 = vpop.f32.mrb[0].mxu0
  %v256 = vadd.f32 0.0, %v255
  %v257 = vpop.f32.mrb[0].mxu0
  %258 = vdwg.mxu0
  %259 = vmatprep.subr.bf16.mxu0 0
  %260 = vmatpush1.bf16.msra.mxu0 %v183
  %261 = vmatprep.subr.bf16.mxu0 0
  %262 = vmatpush1.bf16.msra.mxu0 %v184
  %263 = vmatprep.subr.bf16.mxu0 0
  %264 = vmatpush1.bf16.msra.mxu0 0
  %265 = vmatprep.subr.bf16.mxu0 0
  %266 = vmatpush1.bf16.msra.mxu0 0
  %267 = vmatprep.subr.bf16.mxu0 0
  %268 = vmatpush1.bf16.msra.mxu0 0
  %269 = vmatprep.subr.bf16.mxu0 0
  %270 = vmatpush1.bf16.msra.mxu0 0
  %271 = vmatprep.subr.bf16.mxu0 0
  %272 = vmatpush1.bf16.msra.mxu0 0
  %273 = vmatprep.subr.bf16.mxu0 0
  %274 = vmatpush1.bf16.msra.mxu0 0
  %275 = vmatprep.subr.bf16.mxu0 0
  %276 = vmatpush1.bf16.msra.mxu0 0
  %277 = vmatprep.subr.bf16.mxu0 0
  %278 = vmatpush1.bf16.msra.mxu0 0
  %279 = vmatprep.subr.bf16.mxu0 0
  %280 = vmatpush1.bf16.msra.mxu0 0
  %281 = vmatprep.subr.bf16.mxu0 0
  %282 = vmatpush1.bf16.msra.mxu0 0
  %283 = vmatprep.subr.bf16.mxu0 0
  %284 = vmatpush1.bf16.msra.mxu0 0
  %285 = vmatprep.subr.bf16.mxu0 0
  %286 = vmatpush1.bf16.msra.mxu0 0
  %287 = vmatprep.subr.bf16.mxu0 0
  %288 = vmatpush1.bf16.msra.mxu0 0
  %289 = vmatprep.subr.bf16.mxu0 0
  %290 = vmatpush1.bf16.msra.mxu0 0
  %291 = vmatprep.mubr.bf16.mxu0 0
  %292 = vmatmul.mubr.bf16.gmra.mrb[0].mxu0 %v205
  %v293 = vpop.f32.mrb[0].mxu0
  %v294 = vadd.f32 %v245, %v293
  %v295 = vpop.f32.mrb[0].mxu0
  %v296 = vpop.f32.mrb[0].mxu0
  %v297 = vadd.f32 %v248, %v296
  %v298 = vpop.f32.mrb[0].mxu0
  %299 = vmatprep.mubr.bf16.mxu0 0
  %300 = vmatmul.mubr.bf16.gmra.mrb[0].mxu0 %v208
  %v301 = vpop.f32.mrb[0].mxu0
  %v302 = vadd.f32 %v253, %v301
  %v303 = vpop.f32.mrb[0].mxu0
  %v304 = vpop.f32.mrb[0].mxu0
  %v305 = vadd.f32 %v256, %v304
  %v306 = vpop.f32.mrb[0].mxu0
  %307 = vdwg.mxu0
  %v308 = vsel %vm203, %v294, 0.0
  %v309 = vsel %vm203, %v297, 0.0
  %v310 = vadd.f32 %v308, %v309
  %v311 = vsel %vm203, %v302, 0.0
  %v312 = vadd.f32 %v310, %v311
  %v313 = vsel %vm203, %v305, 0.0
  %v314 = vadd.f32 %v312, %v313
  %v315 = vrot.slane %v314, 4
  %v316 = vadd.f32 %v314, %v315
  %v317 = vrot.slane %v316, 2
  %v318 = vadd.f32 %v316, %v317
  %v319 = vrot.slane %v318, 1
  %v320 = vadd.f32 %v318, %v319
  %v321 = vmul.f32 %v294, %v294
  %v322 = vmul.f32 %v297, %v297
  %v323 = vmul.f32 %v302, %v302
  %v324 = vmul.f32 %v305, %v305
  %v325 = vsel %vm203, %v321, 0.0
  %v326 = vsel %vm203, %v322, 0.0
  %v327 = vadd.f32 %v325, %v326
  %v328 = vsel %vm203, %v323, 0.0
  %v329 = vadd.f32 %v327, %v328
  %v330 = vsel %vm203, %v324, 0.0
  %v331 = vadd.f32 %v329, %v330
  %v332 = vrot.slane %v331, 4
  %v333 = vadd.f32 %v331, %v332
  %v334 = vrot.slane %v333, 2
  %v335 = vadd.f32 %v333, %v334
  %v336 = vrot.slane %v335, 1
  %v337 = vadd.f32 %v335, %v336
  %v338 = vmul.f32 %v320, 0.03125
  %v339 = vmul.f32 %v337, 0.03125
  %v340 = vmul.f32 %v338, %v338
  %v341 = vsub.f32 %v339, %v340
  %v342 = vmax.f32 %v341, 0.0
  %v343 = vld [vmem:[%s2] sm:$0x1]
  %v344 = vadd.f32 %v342, 1e-05
  %v345 = vrsqrt.pop %v344
  %v346 = vmul.f32 %v343, %v345
  %v347 = vld [vmem:[%s3] sm:$0x1]
  %v348 = vmul.f32 %v338, %v346
  %v349 = vsub.f32 %v347, %v348
  %v351 = vlaneseq
  %v352 = vshrl.u32 %v351, 7
  %v353 = vsub.s32 0, %v352
  %v354 = vrot.slane %v346, %v353
  %v356 = vmul.f32 %v294, %v354
  %v357 = vmul.f32 %v297, %v354
  %v358 = vmul.f32 %v302, %v354
  %v359 = vmul.f32 %v305, %v354
  %v361 = vlaneseq
  %v362 = vshrl.u32 %v361, 7
  %v363 = vsub.s32 0, %v362
  %v364 = vrot.slane %v349, %v363
  %v366 = vadd.f32 %v356, %v364
  %v367 = vadd.f32 %v357, %v364
  %v368 = vadd.f32 %v358, %v364
  %v369 = vadd.f32 %v359, %v364
  %v370 = vld [vmem:[%s4] sm:$0xf]
  %v371 = vld [vmem:[%s4 + $0x4] sm:$0xf]
  %v372 = vld [vmem:[%s4 + $0x8] sm:$0xf]
  %v373 = vld [vmem:[%s4 + $0xc] sm:$0xf]
  %v374 = vunpack.c.l.bf16 %v370
  %v375 = vunpack.c.l.bf16 %v371
  %v376 = vunpack.c.l.bf16 %v372
  %v377 = vunpack.c.l.bf16 %v373
  %v378 = vadd.f32 %v366, %v374
  %v379 = vadd.f32 %v367, %v375
  %v380 = vadd.f32 %v368, %v376
  %v381 = vadd.f32 %v369, %v377
  %v382 = vmax.f32 %v378, 0.0
  %v383 = vmax.f32 %v379, 0.0
  %v384 = vmax.f32 %v380, 0.0
  %v385 = vmax.f32 %v381, 0.0
  %v386 = vpack.c.bf16 %v383, %v382
  %v387 = vpack.c.bf16 %v385, %v384
  %v390 = vunpack.c.l.b16 %v386
  %v391 = vunpack.c.h.b16 %v386
  %v392 = vunpack.c.l.b16 %v387
  %v393 = vunpack.c.h.b16 %v387
  %v394 = vpack.c.b16 %v390, %v390
  %v395 = vpack.c.b16 %v391, %v391
  %v396 = vpack.c.b16 %v392, %v392
  %v397 = vpack.c.b16 %v393, %v393
  %vm402 = vcmask 257024
  %403 = vst.msk [vmem:[%s5] sm:$0xf] %vm402, %v394
  %404 = vst.msk [vmem:[%s5 + $0x4] sm:$0xf] %vm402, %v395
  %405 = vst.msk [vmem:[%s5 + $0x8] sm:$0xf] %vm402, %v396
  %406 = vst.msk [vmem:[%s5 + $0xc] sm:$0xf] %vm402, %v397
  // Predicated region
  $region22: #{g_net_forward.14} parent=0 // pred_check
    _
  $region23: #{g_net_forward.14} parent=0 // pred_check_branch
    %408 = sbr.rel (0) target = $region25
  $region24: #{g_net_forward.14} parent=0 // pred_region
    _
  $region25: #{g_net_forward.14} parent=0 // pred_fallthru
    _
  // Predicated region
  $region26: #{g_net_forward.14} parent=0 // pred_check
    _
  $region27: #{g_net_forward.14} parent=0 // pred_check_branch
    %410 = sbr.rel (0) target = $region29
  $region28: #{g_net_forward.14} parent=0 // pred_region
    _
  $region29: #{g_net_forward.14} parent=0 // pred_fallthru
    _

// kernel: g_net_forward.13
$region0: #{g_net_forward.13}
  #allocation0 [shape = 'u32[]', space=smem, size = 0x4, offset = 0x4, fixed_abs, tag = 'smem constant byte address 0x4 - core index']
  #allocation1 [shape = 'u32[144,128]{1,0:T(1,128)}', space=vmem, size = 0x12000, scoped, tag = 'internal scratch']
  %s0 = inlined_call_operand.vmem [shape: bf16[32,288], index: 0, kind: input, shape index: {}]
  %s1 = inlined_call_operand.vmem [shape: bf16[288,32], index: 1, kind: input, shape index: {}]
  %s2 = inlined_call_operand.vmem [shape: f32[1,32], index: 2, kind: input, shape index: {}]
  %s3 = inlined_call_operand.vmem [shape: f32[1,32], index: 3, kind: input, shape index: {}]
  %s4 = inlined_call_operand.vmem [shape: bf16[32,32], index: 4, kind: output, shape index: {}]
  %s5 = sld [smem:[#allocation0]]
  $region26: #{g_net_forward.13} parent=0
    _
  %s7 = ssub.s32 1, %s5
  %s8 = scalar_select 0, %s7, %s5
  // Predicated region
  $region2: #{g_net_forward.13} parent=0 // pred_check
    _
  $region3: #{g_net_forward.13} parent=0 // pred_check_branch
    %10 = sbr.rel (0) target = $region5
  $region4: #{g_net_forward.13} parent=0 // pred_region
    _
  $region5: #{g_net_forward.13} parent=0 // pred_fallthru
    _
  // Predicated region
  $region6: #{g_net_forward.13} parent=0 // pred_check
    _
  $region7: #{g_net_forward.13} parent=0 // pred_check_branch
    %12 = sbr.rel (0) target = $region9
  $region8: #{g_net_forward.13} parent=0 // pred_region
    _
  $region9: #{g_net_forward.13} parent=0 // pred_fallthru
    _
  // Predicated region
  $region10: #{g_net_forward.13} parent=0 // pred_check
    _
  $region11: #{g_net_forward.13} parent=0 // pred_check_branch
    %14 = sbr.rel (0) target = $region13
  $region12: #{g_net_forward.13} parent=0 // pred_region
    _
  $region13: #{g_net_forward.13} parent=0 // pred_fallthru
    _
  // Predicated region
  $region14: #{g_net_forward.13} parent=0 // pred_check
    _
  $region15: #{g_net_forward.13} parent=0 // pred_check_branch
    %16 = sbr.rel (0) target = $region17
  $region16: #{g_net_forward.13} parent=0 // pred_region
    _
  $region17: #{g_net_forward.13} parent=0 // pred_fallthru
    _
  %v18 = vld [vmem:[%s0] sm:$0xff]
  %v19 = vld [vmem:[%s0 + $0x8] sm:$0xf]
  %v20 = vld [vmem:[%s0 + $0xc] sm:$0xff]
  %v21 = vld [vmem:[%s0 + $0x14] sm:$0xf]
  %v22 = vld [vmem:[%s0 + $0x18] sm:$0xff]
  %v23 = vld [vmem:[%s0 + $0x20] sm:$0xf]
  %v24 = vld [vmem:[%s0 + $0x24] sm:$0xff]
  %v25 = vld [vmem:[%s0 + $0x2c] sm:$0xf]
  %v26 = vld [vmem:[%s1] sm:$0xf]
  %v27 = vld [vmem:[%s1 + $0x4] sm:$0xf]
  %v28 = vld [vmem:[%s1 + $0x8] sm:$0xf]
  %v29 = vld [vmem:[%s1 + $0xc] sm:$0xf]
  %v30 = vld [vmem:[%s1 + $0x10] sm:$0xf]
  %v31 = vld [vmem:[%s1 + $0x14] sm:$0xf]
  %v32 = vld [vmem:[%s1 + $0x18] sm:$0xf]
  %v33 = vld [vmem:[%s1 + $0x1c] sm:$0xf]
  %v34 = vld [vmem:[%s1 + $0x20] sm:$0xf]
  %v35 = vld [vmem:[%s1 + $0x24] sm:$0xf]
  %v36 = vld [vmem:[%s1 + $0x28] sm:$0xf]
  %v37 = vld [vmem:[%s1 + $0x2c] sm:$0xf]
  %v38 = vld [vmem:[%s1 + $0x30] sm:$0xf]
  %v39 = vld [vmem:[%s1 + $0x34] sm:$0xf]
  %v40 = vld [vmem:[%s1 + $0x38] sm:$0xf]
  %v41 = vld [vmem:[%s1 + $0x3c] sm:$0xf]
  %v42 = vld [vmem:[%s1 + $0x40] sm:$0xf]
  %v43 = vld [vmem:[%s1 + $0x44] sm:$0xf]
  %v44 = vld [vmem:[%s1 + $0x48] sm:$0xf]
  %v45 = vld [vmem:[%s1 + $0x4c] sm:$0xf]
  %v46 = vld [vmem:[%s1 + $0x50] sm:$0xf]
  %v47 = vld [vmem:[%s1 + $0x54] sm:$0xf]
  %v48 = vld [vmem:[%s1 + $0x58] sm:$0xf]
  %v49 = vld [vmem:[%s1 + $0x5c] sm:$0xf]
  %v50 = vld [vmem:[%s1 + $0x60] sm:$0xf]
  %v51 = vld [vmem:[%s1 + $0x64] sm:$0xf]
  %v52 = vld [vmem:[%s1 + $0x68] sm:$0xf]
  %v53 = vld [vmem:[%s1 + $0x6c] sm:$0xf]
  %v54 = vld [vmem:[%s1 + $0x70] sm:$0xf]
  %v55 = vld [vmem:[%s1 + $0x74] sm:$0xf]
  %v56 = vld [vmem:[%s1 + $0x78] sm:$0xf]
  %v57 = vld [vmem:[%s1 + $0x7c] sm:$0xf]
  %v58 = vld [vmem:[%s1 + $0x80] sm:$0xf]
  %v59 = vld [vmem:[%s1 + $0x84] sm:$0xf]
  %v60 = vld [vmem:[%s1 + $0x88] sm:$0xf]
  %v61 = vld [vmem:[%s1 + $0x8c] sm:$0xf]
  %v70 = vunpack.c.l.b16 %v18
  %v71 = vunpack.c.h.b16 %v18
  %v72 = vunpack.c.l.b16 %v19
  %v73 = vunpack.c.l.b16 %v20
  %v74 = vunpack.c.h.b16 %v20
  %v75 = vunpack.c.l.b16 %v21
  %v76 = vunpack.c.l.b16 %v22
  %v77 = vunpack.c.h.b16 %v22
  %v78 = vunpack.c.l.b16 %v23
  %v79 = vunpack.c.l.b16 %v24
  %v80 = vunpack.c.h.b16 %v24
  %v81 = vunpack.c.l.b16 %v25
  %v82 = vpack.c.b16 %v73, %v70
  %v83 = vpack.c.b16 %v74, %v71
  %v84 = vpack.c.b16 %v75, %v72
  %v85 = vpack.c.b16 %v79, %v76
  %v86 = vpack.c.b16 %v80, %v77
  %v87 = vpack.c.b16 %v81, %v78
  %v128 = vunpack.c.l.b16 %v26
  %v129 = vunpack.c.l.b16 %v27
  %v130 = vunpack.c.l.b16 %v28
  %v131 = vunpack.c.l.b16 %v29
  %v132 = vunpack.c.l.b16 %v30
  %v133 = vunpack.c.l.b16 %v31
  %v134 = vunpack.c.l.b16 %v32
  %v135 = vunpack.c.l.b16 %v33
  %v136 = vunpack.c.l.b16 %v34
  %v137 = vunpack.c.l.b16 %v35
  %v138 = vunpack.c.l.b16 %v36
  %v139 = vunpack.c.l.b16 %v37
  %v140 = vunpack.c.l.b16 %v38
  %v141 = vunpack.c.l.b16 %v39
  %v142 = vunpack.c.l.b16 %v40
  %v143 = vunpack.c.l.b16 %v41
  %v144 = vunpack.c.l.b16 %v42
  %v145 = vunpack.c.l.b16 %v43
  %v146 = vunpack.c.l.b16 %v44
  %v147 = vunpack.c.l.b16 %v45
  %v148 = vunpack.c.l.b16 %v46
  %v149 = vunpack.c.l.b16 %v47
  %v150 = vunpack.c.l.b16 %v48
  %v151 = vunpack.c.l.b16 %v49
  %v152 = vunpack.c.l.b16 %v50
  %v153 = vunpack.c.l.b16 %v51
  %v154 = vunpack.c.l.b16 %v52
  %v155 = vunpack.c.l.b16 %v53
  %v156 = vunpack.c.l.b16 %v54
  %v157 = vunpack.c.l.b16 %v55
  %v158 = vunpack.c.l.b16 %v56
  %v159 = vunpack.c.l.b16 %v57
  %v160 = vunpack.c.l.b16 %v58
  %v161 = vunpack.c.l.b16 %v59
  %v162 = vunpack.c.l.b16 %v60
  %v163 = vunpack.c.l.b16 %v61
  %v164 = vpack.c.b16 %v129, %v128
  %v165 = vpack.c.b16 %v131, %v130
  %v166 = vpack.c.b16 %v133, %v132
  %v167 = vpack.c.b16 %v135, %v134
  %v168 = vpack.c.b16 %v137, %v136
  %v169 = vpack.c.b16 %v139, %v138
  %v170 = vpack.c.b16 %v141, %v140
  %v171 = vpack.c.b16 %v143, %v142
  %v172 = vpack.c.b16 %v145, %v144
  %v173 = vpack.c.b16 %v147, %v146
  %v174 = vpack.c.b16 %v149, %v148
  %v175 = vpack.c.b16 %v151, %v150
  %v176 = vpack.c.b16 %v153, %v152
  %v177 = vpack.c.b16 %v155, %v154
  %v178 = vpack.c.b16 %v157, %v156
  %v179 = vpack.c.b16 %v159, %v158
  %v180 = vpack.c.b16 %v161, %v160
  %v181 = vpack.c.b16 %v163, %v162
  %vm200 = vcmask 261120
  %v202 = vsel %vm200, %v84, 0
  %v205 = vsel %vm200, %v87, 0
  %207 = vmatprep.subr.bf16.mxu0 0
  %208 = vmatpush1.bf16.msra.mxu0 %v164
  %209 = vmatprep.subr.bf16.mxu0 0
  %210 = vmatpush1.bf16.msra.mxu0 %v165
  %211 = vmatprep.subr.bf16.mxu0 0
  %212 = vmatpush1.bf16.msra.mxu0 %v166
  %213 = vmatprep.subr.bf16.mxu0 0
  %214 = vmatpush1.bf16.msra.mxu0 %v167
  %215 = vmatprep.subr.bf16.mxu0 0
  %216 = vmatpush1.bf16.msra.mxu0 %v168
  %217 = vmatprep.subr.bf16.mxu0 0
  %218 = vmatpush1.bf16.msra.mxu0 %v169
  %219 = vmatprep.subr.bf16.mxu0 0
  %220 = vmatpush1.bf16.msra.mxu0 %v170
  %221 = vmatprep.subr.bf16.mxu0 0
  %222 = vmatpush1.bf16.msra.mxu0 %v171
  %223 = vmatprep.subr.bf16.mxu0 0
  %224 = vmatpush1.bf16.msra.mxu0 %v172
  %225 = vmatprep.subr.bf16.mxu0 0
  %226 = vmatpush1.bf16.msra.mxu0 %v173
  %227 = vmatprep.subr.bf16.mxu0 0
  %228 = vmatpush1.bf16.msra.mxu0 %v174
  %229 = vmatprep.subr.bf16.mxu0 0
  %230 = vmatpush1.bf16.msra.mxu0 %v175
  %231 = vmatprep.subr.bf16.mxu0 0
  %232 = vmatpush1.bf16.msra.mxu0 %v176
  %233 = vmatprep.subr.bf16.mxu0 0
  %234 = vmatpush1.bf16.msra.mxu0 %v177
  %235 = vmatprep.subr.bf16.mxu0 0
  %236 = vmatpush1.bf16.msra.mxu0 %v178
  %237 = vmatprep.subr.bf16.mxu0 0
  %238 = vmatpush1.bf16.msra.mxu0 %v179
  %239 = vmatprep.mubr.bf16.mxu0 %v83
  %240 = vmatmul.mubr.bf16.gmra.mrb[0].mxu0 %v82
  %v241 = vpop.f32.mrb[0].mxu0
  %v242 = vadd.f32 0.0, %v241
  %v243 = vpop.f32.mrb[0].mxu0
  %v244 = vpop.f32.mrb[0].mxu0
  %v245 = vadd.f32 0.0, %v244
  %v246 = vpop.f32.mrb[0].mxu0
  %247 = vmatprep.mubr.bf16.mxu0 %v86
  %248 = vmatmul.mubr.bf16.gmra.mrb[0].mxu0 %v85
  %v249 = vpop.f32.mrb[0].mxu0
  %v250 = vadd.f32 0.0, %v249
  %v251 = vpop.f32.mrb[0].mxu0
  %v252 = vpop.f32.mrb[0].mxu0
  %v253 = vadd.f32 0.0, %v252
  %v254 = vpop.f32.mrb[0].mxu0
  %255 = vdwg.mxu0
  %256 = vmatprep.subr.bf16.mxu0 0
  %257 = vmatpush1.bf16.msra.mxu0 %v180
  %258 = vmatprep.subr.bf16.mxu0 0
  %259 = vmatpush1.bf16.msra.mxu0 %v181
  %260 = vmatprep.subr.bf16.mxu0 0
  %261 = vmatpush1.bf16.msra.mxu0 0
  %262 = vmatprep.subr.bf16.mxu0 0
  %263 = vmatpush1.bf16.msra.mxu0 0
  %264 = vmatprep.subr.bf16.mxu0 0
  %265 = vmatpush1.bf16.msra.mxu0 0
  %266 = vmatprep.subr.bf16.mxu0 0
  %267 = vmatpush1.bf16.msra.mxu0 0
  %268 = vmatprep.subr.bf16.mxu0 0
  %269 = vmatpush1.bf16.msra.mxu0 0
  %270 = vmatprep.subr.bf16.mxu0 0
  %271 = vmatpush1.bf16.msra.mxu0 0
  %272 = vmatprep.subr.bf16.mxu0 0
  %273 = vmatpush1.bf16.msra.mxu0 0
  %274 = vmatprep.subr.bf16.mxu0 0
  %275 = vmatpush1.bf16.msra.mxu0 0
  %276 = vmatprep.subr.bf16.mxu0 0
  %277 = vmatpush1.bf16.msra.mxu0 0
  %278 = vmatprep.subr.bf16.mxu0 0
  %279 = vmatpush1.bf16.msra.mxu0 0
  %280 = vmatprep.subr.bf16.mxu0 0
  %281 = vmatpush1.bf16.msra.mxu0 0
  %282 = vmatprep.subr.bf16.mxu0 0
  %283 = vmatpush1.bf16.msra.mxu0 0
  %284 = vmatprep.subr.bf16.mxu0 0
  %285 = vmatpush1.bf16.msra.mxu0 0
  %286 = vmatprep.subr.bf16.mxu0 0
  %287 = vmatpush1.bf16.msra.mxu0 0
  %288 = vmatprep.mubr.bf16.mxu0 0
  %289 = vmatmul.mubr.bf16.gmra.mrb[0].mxu0 %v202
  %v290 = vpop.f32.mrb[0].mxu0
  %v291 = vadd.f32 %v242, %v290
  %v292 = vpop.f32.mrb[0].mxu0
  %v293 = vpop.f32.mrb[0].mxu0
  %v294 = vadd.f32 %v245, %v293
  %v295 = vpop.f32.mrb[0].mxu0
  %296 = vmatprep.mubr.bf16.mxu0 0
  %297 = vmatmul.mubr.bf16.gmra.mrb[0].mxu0 %v205
  %v298 = vpop.f32.mrb[0].mxu0
  %v299 = vadd.f32 %v250, %v298
  %v300 = vpop.f32.mrb[0].mxu0
  %v301 = vpop.f32.mrb[0].mxu0
  %v302 = vadd.f32 %v253, %v301
  %v303 = vpop.f32.mrb[0].mxu0
  %304 = vdwg.mxu0
  %v305 = vsel %vm200, %v291, 0.0
  %v306 = vsel %vm200, %v294, 0.0
  %v307 = vadd.f32 %v305, %v306
  %v308 = vsel %vm200, %v299, 0.0
  %v309 = vadd.f32 %v307, %v308
  %v310 = vsel %vm200, %v302, 0.0
  %v311 = vadd.f32 %v309, %v310
  %v312 = vrot.slane %v311, 4
  %v313 = vadd.f32 %v311, %v312
  %v314 = vrot.slane %v313, 2
  %v315 = vadd.f32 %v313, %v314
  %v316 = vrot.slane %v315, 1
  %v317 = vadd.f32 %v315, %v316
  %v318 = vmul.f32 %v291, %v291
  %v319 = vmul.f32 %v294, %v294
  %v320 = vmul.f32 %v299, %v299
  %v321 = vmul.f32 %v302, %v302
  %v322 = vsel %vm200, %v318, 0.0
  %v323 = vsel %vm200, %v319, 0.0
  %v324 = vadd.f32 %v322, %v323
  %v325 = vsel %vm200, %v320, 0.0
  %v326 = vadd.f32 %v324, %v325
  %v327 = vsel %vm200, %v321, 0.0
  %v328 = vadd.f32 %v326, %v327
  %v329 = vrot.slane %v328, 4
  %v330 = vadd.f32 %v328, %v329
  %v331 = vrot.slane %v330, 2
  %v332 = vadd.f32 %v330, %v331
  %v333 = vrot.slane %v332, 1
  %v334 = vadd.f32 %v332, %v333
  %v335 = vmul.f32 %v317, 0.03125
  %v336 = vmul.f32 %v334, 0.03125
  %v337 = vmul.f32 %v335, %v335
  %v338 = vsub.f32 %v336, %v337
  %v339 = vmax.f32 %v338, 0.0
  %v340 = vld [vmem:[%s2] sm:$0x1]
  %v341 = vadd.f32 %v339, 1e-05
  %v342 = vrsqrt.pop %v341
  %v343 = vmul.f32 %v340, %v342
  %v344 = vld [vmem:[%s3] sm:$0x1]
  %v345 = vmul.f32 %v335, %v343
  %v346 = vsub.f32 %v344, %v345
  %v348 = vlaneseq
  %v349 = vshrl.u32 %v348, 7
  %v350 = vsub.s32 0, %v349
  %v351 = vrot.slane %v343, %v350
  %v353 = vmul.f32 %v291, %v351
  %v354 = vmul.f32 %v294, %v351
  %v355 = vmul.f32 %v299, %v351
  %v356 = vmul.f32 %v302, %v351
  %v358 = vlaneseq
  %v359 = vshrl.u32 %v358, 7
  %v360 = vsub.s32 0, %v359
  %v361 = vrot.slane %v346, %v360
  %v363 = vadd.f32 %v353, %v361
  %v364 = vadd.f32 %v354, %v361
  %v365 = vadd.f32 %v355, %v361
  %v366 = vadd.f32 %v356, %v361
  %v367 = vmax.f32 %v363, 0.0
  %v368 = vmax.f32 %v364, 0.0
  %v369 = vmax.f32 %v365, 0.0
  %v370 = vmax.f32 %v366, 0.0
  %v371 = vpack.c.bf16 %v368, %v367
  %v372 = vpack.c.bf16 %v370, %v369
  %v375 = vunpack.c.l.b16 %v371
  %v376 = vunpack.c.h.b16 %v371
  %v377 = vunpack.c.l.b16 %v372
  %v378 = vunpack.c.h.b16 %v372
  %v379 = vpack.c.b16 %v375, %v375
  %v380 = vpack.c.b16 %v376, %v376
  %v381 = vpack.c.b16 %v377, %v377
  %v382 = vpack.c.b16 %v378, %v378
  %vm387 = vcmask 257024
  %388 = vst.msk [vmem:[%s4] sm:$0xf] %vm387, %v379
  %389 = vst.msk [vmem:[%s4 + $0x4] sm:$0xf] %vm387, %v380
  %390 = vst.msk [vmem:[%s4 + $0x8] sm:$0xf] %vm387, %v381
  %391 = vst.msk [vmem:[%s4 + $0xc] sm:$0xf] %vm387, %v382
  // Predicated region
  $region18: #{g_net_forward.13} parent=0 // pred_check
    _
  $region19: #{g_net_forward.13} parent=0 // pred_check_branch
    %393 = sbr.rel (0) target = $region21
  $region20: #{g_net_forward.13} parent=0 // pred_region
    _
  $region21: #{g_net_forward.13} parent=0 // pred_fallthru
    _
  // Predicated region
  $region22: #{g_net_forward.13} parent=0 // pred_check
    _
  $region23: #{g_net_forward.13} parent=0 // pred_check_branch
    %395 = sbr.rel (0) target = $region25
  $region24: #{g_net_forward.13} parent=0 // pred_region
    _
  $region25: #{g_net_forward.13} parent=0 // pred_fallthru
    _

// kernel: g_net_forward.17
$region0: #{g_net_forward.17}
  #allocation0 [shape = 'u32[]', space=smem, size = 0x4, offset = 0x4, fixed_abs, tag = 'smem constant byte address 0x4 - core index']
  #allocation1 [shape = 'u32[144,128]{1,0:T(1,128)}', space=vmem, size = 0x12000, scoped, tag = 'internal scratch']
  %s0 = inlined_call_operand.vmem [shape: bf16[32,128], index: 0, kind: input, shape index: {}]
  %s1 = inlined_call_operand.vmem [shape: bf16[128,64], index: 1, kind: input, shape index: {}]
  %s2 = inlined_call_operand.vmem [shape: f32[1,64], index: 2, kind: input, shape index: {}]
  %s3 = inlined_call_operand.vmem [shape: f32[1,64], index: 3, kind: input, shape index: {}]
  %s4 = inlined_call_operand.vmem [shape: f32[64,64], index: 4, kind: input, shape index: {}]
  %s5 = inlined_call_operand.vmem [shape: bf16[32,64], index: 5, kind: output, shape index: {}]
  %s6 = sld [smem:[#allocation0]]
  $region30: #{g_net_forward.17} parent=0
    _
  %s8 = ssub.s32 1, %s6
  %s9 = scalar_select 0, %s8, %s6
  // Predicated region
  $region2: #{g_net_forward.17} parent=0 // pred_check
    _
  $region3: #{g_net_forward.17} parent=0 // pred_check_branch
    %11 = sbr.rel (0) target = $region5
  $region4: #{g_net_forward.17} parent=0 // pred_region
    _
  $region5: #{g_net_forward.17} parent=0 // pred_fallthru
    _
  // Predicated region
  $region6: #{g_net_forward.17} parent=0 // pred_check
    _
  $region7: #{g_net_forward.17} parent=0 // pred_check_branch
    %13 = sbr.rel (0) target = $region9
  $region8: #{g_net_forward.17} parent=0 // pred_region
    _
  $region9: #{g_net_forward.17} parent=0 // pred_fallthru
    _
  // Predicated region
  $region10: #{g_net_forward.17} parent=0 // pred_check
    _
  $region11: #{g_net_forward.17} parent=0 // pred_check_branch
    %15 = sbr.rel (0) target = $region13
  $region12: #{g_net_forward.17} parent=0 // pred_region
    _
  $region13: #{g_net_forward.17} parent=0 // pred_fallthru
    _
  // Predicated region
  $region14: #{g_net_forward.17} parent=0 // pred_check
    _
  $region15: #{g_net_forward.17} parent=0 // pred_check_branch
    %17 = sbr.rel (0) target = $region17
  $region16: #{g_net_forward.17} parent=0 // pred_region
    _
  $region17: #{g_net_forward.17} parent=0 // pred_fallthru
    _
  // Predicated region
  $region18: #{g_net_forward.17} parent=0 // pred_check
    _
  $region19: #{g_net_forward.17} parent=0 // pred_check_branch
    %19 = sbr.rel (0) target = $region21
  $region20: #{g_net_forward.17} parent=0 // pred_region
    _
  $region21: #{g_net_forward.17} parent=0 // pred_fallthru
    _
  %v21 = vld [vmem:[%s0] sm:$0xf]
  %v22 = vld [vmem:[%s0 + $0x4] sm:$0xf]
  %v23 = vld [vmem:[%s0 + $0x8] sm:$0xf]
  %v24 = vld [vmem:[%s0 + $0xc] sm:$0xf]
  %v25 = vld [vmem:[%s1] sm:$0xf]
  %v26 = vld [vmem:[%s1 + $0x4] sm:$0xf]
  %v27 = vld [vmem:[%s1 + $0x8] sm:$0xf]
  %v28 = vld [vmem:[%s1 + $0xc] sm:$0xf]
  %v29 = vld [vmem:[%s1 + $0x10] sm:$0xf]
  %v30 = vld [vmem:[%s1 + $0x14] sm:$0xf]
  %v31 = vld [vmem:[%s1 + $0x18] sm:$0xf]
  %v32 = vld [vmem:[%s1 + $0x1c] sm:$0xf]
  %v33 = vld [vmem:[%s1 + $0x20] sm:$0xf]
  %v34 = vld [vmem:[%s1 + $0x24] sm:$0xf]
  %v35 = vld [vmem:[%s1 + $0x28] sm:$0xf]
  %v36 = vld [vmem:[%s1 + $0x2c] sm:$0xf]
  %v37 = vld [vmem:[%s1 + $0x30] sm:$0xf]
  %v38 = vld [vmem:[%s1 + $0x34] sm:$0xf]
  %v39 = vld [vmem:[%s1 + $0x38] sm:$0xf]
  %v40 = vld [vmem:[%s1 + $0x3c] sm:$0xf]
  %v45 = vunpack.c.l.b16 %v21
  %v46 = vunpack.c.l.b16 %v22
  %v47 = vunpack.c.l.b16 %v23
  %v48 = vunpack.c.l.b16 %v24
  %v49 = vpack.c.b16 %v46, %v45
  %v50 = vpack.c.b16 %v48, %v47
  %v69 = vunpack.c.l.b16 %v25
  %v70 = vunpack.c.l.b16 %v26
  %v71 = vunpack.c.l.b16 %v27
  %v72 = vunpack.c.l.b16 %v28
  %v73 = vunpack.c.l.b16 %v29
  %v74 = vunpack.c.l.b16 %v30
  %v75 = vunpack.c.l.b16 %v31
  %v76 = vunpack.c.l.b16 %v32
  %v77 = vunpack.c.l.b16 %v33
  %v78 = vunpack.c.l.b16 %v34
  %v79 = vunpack.c.l.b16 %v35
  %v80 = vunpack.c.l.b16 %v36
  %v81 = vunpack.c.l.b16 %v37
  %v82 = vunpack.c.l.b16 %v38
  %v83 = vunpack.c.l.b16 %v39
  %v84 = vunpack.c.l.b16 %v40
  %v85 = vpack.c.b16 %v70, %v69
  %v86 = vpack.c.b16 %v72, %v71
  %v87 = vpack.c.b16 %v74, %v73
  %v88 = vpack.c.b16 %v76, %v75
  %v89 = vpack.c.b16 %v78, %v77
  %v90 = vpack.c.b16 %v80, %v79
  %v91 = vpack.c.b16 %v82, %v81
  %v92 = vpack.c.b16 %v84, %v83
  %101 = vmatprep.subr.bf16.mxu0 0
  %102 = vmatpush1.bf16.msra.mxu0 %v85
  %103 = vmatprep.subr.bf16.mxu0 0
  %104 = vmatpush1.bf16.msra.mxu0 %v86
  %105 = vmatprep.subr.bf16.mxu0 0
  %106 = vmatpush1.bf16.msra.mxu0 %v87
  %107 = vmatprep.subr.bf16.mxu0 0
  %108 = vmatpush1.bf16.msra.mxu0 %v88
  %109 = vmatprep.subr.bf16.mxu0 0
  %110 = vmatpush1.bf16.msra.mxu0 %v89
  %111 = vmatprep.subr.bf16.mxu0 0
  %112 = vmatpush1.bf16.msra.mxu0 %v90
  %113 = vmatprep.subr.bf16.mxu0 0
  %114 = vmatpush1.bf16.msra.mxu0 %v91
  %115 = vmatprep.subr.bf16.mxu0 0
  %116 = vmatpush1.bf16.msra.mxu0 %v92
  %117 = vmatprep.subr.bf16.mxu0 0
  %118 = vmatpush1.bf16.msra.mxu0 0
  %119 = vmatprep.subr.bf16.mxu0 0
  %120 = vmatpush1.bf16.msra.mxu0 0
  %121 = vmatprep.subr.bf16.mxu0 0
  %122 = vmatpush1.bf16.msra.mxu0 0
  %123 = vmatprep.subr.bf16.mxu0 0
  %124 = vmatpush1.bf16.msra.mxu0 0
  %125 = vmatprep.subr.bf16.mxu0 0
  %126 = vmatpush1.bf16.msra.mxu0 0
  %127 = vmatprep.subr.bf16.mxu0 0
  %128 = vmatpush1.bf16.msra.mxu0 0
  %129 = vmatprep.subr.bf16.mxu0 0
  %130 = vmatpush1.bf16.msra.mxu0 0
  %131 = vmatprep.subr.bf16.mxu0 0
  %132 = vmatpush1.bf16.msra.mxu0 0
  %133 = vmatprep.mubr.bf16.mxu0 0
  %134 = vmatmul.mubr.bf16.gmra.mrb[0].mxu0 %v49
  %v135 = vpop.f32.mrb[0].mxu0
  %v136 = vadd.f32 0.0, %v135
  %v137 = vpop.f32.mrb[0].mxu0
  %v138 = vpop.f32.mrb[0].mxu0
  %v139 = vadd.f32 0.0, %v138
  %v140 = vpop.f32.mrb[0].mxu0
  %141 = vmatprep.mubr.bf16.mxu0 0
  %142 = vmatmul.mubr.bf16.gmra.mrb[0].mxu0 %v50
  %v143 = vpop.f32.mrb[0].mxu0
  %v144 = vadd.f32 0.0, %v143
  %v145 = vpop.f32.mrb[0].mxu0
  %v146 = vpop.f32.mrb[0].mxu0
  %v147 = vadd.f32 0.0, %v146
  %v148 = vpop.f32.mrb[0].mxu0
  %149 = vdwg.mxu0
  %vm150 = vcmask 523264
  %v151 = vsel %vm150, %v136, 0.0
  %v152 = vsel %vm150, %v139, 0.0
  %v153 = vadd.f32 %v151, %v152
  %v154 = vsel %vm150, %v144, 0.0
  %v155 = vadd.f32 %v153, %v154
  %v156 = vsel %vm150, %v147, 0.0
  %v157 = vadd.f32 %v155, %v156
  %v158 = vrot.slane %v157, 4
  %v159 = vadd.f32 %v157, %v158
  %v160 = vrot.slane %v159, 2
  %v161 = vadd.f32 %v159, %v160
  %v162 = vrot.slane %v161, 1
  %v163 = vadd.f32 %v161, %v162
  %v164 = vmul.f32 %v136, %v136
  %v165 = vmul.f32 %v139, %v139
  %v166 = vmul.f32 %v144, %v144
  %v167 = vmul.f32 %v147, %v147
  %v168 = vsel %vm150, %v164, 0.0
  %v169 = vsel %vm150, %v165, 0.0
  %v170 = vadd.f32 %v168, %v169
  %v171 = vsel %vm150, %v166, 0.0
  %v172 = vadd.f32 %v170, %v171
  %v173 = vsel %vm150, %v167, 0.0
  %v174 = vadd.f32 %v172, %v173
  %v175 = vrot.slane %v174, 4
  %v176 = vadd.f32 %v174, %v175
  %v177 = vrot.slane %v176, 2
  %v178 = vadd.f32 %v176, %v177
  %v179 = vrot.slane %v178, 1
  %v180 = vadd.f32 %v178, %v179
  %v181 = vld [vmem:[%s4] sm:$0xff]
  %v182 = vld [vmem:[%s4 + $0x8] sm:$0xff]
  %v183 = vld [vmem:[%s4 + $0x10] sm:$0xff]
  %v184 = vld [vmem:[%s4 + $0x18] sm:$0xff]
  %v185 = vld [vmem:[%s4 + $0x20] sm:$0xff]
  %v186 = vld [vmem:[%s4 + $0x28] sm:$0xff]
  %v187 = vld [vmem:[%s4 + $0x30] sm:$0xff]
  %v188 = vld [vmem:[%s4 + $0x38] sm:$0xff]
  %v190 = vsel %vm150, %v163, 0
  %192 = vmatprep.subr.mxu0 0.0
  %193 = vmatpush1.msra.mxu0 %v181
  %194 = vmatprep.subr.mxu0 0.0
  %195 = vmatpush1.msra.mxu0 %v182
  %196 = vmatprep.subr.mxu0 0.0
  %197 = vmatpush1.msra.mxu0 %v183
  %198 = vmatprep.subr.mxu0 0.0
  %199 = vmatpush1.msra.mxu0 %v184
  %200 = vmatprep.subr.mxu0 0.0
  %201 = vmatpush1.msra.mxu0 %v185
  %202 = vmatprep.subr.mxu0 0.0
  %203 = vmatpush1.msra.mxu0 %v186
  %204 = vmatprep.subr.mxu0 0.0
  %205 = vmatpush1.msra.mxu0 %v187
  %206 = vmatprep.subr.mxu0 0.0
  %207 = vmatpush1.msra.mxu0 %v188
  %208 = vmatprep.subr.mxu0 0.0
  %209 = vmatpush1.msra.mxu0 0.0
  %210 = vmatprep.subr.mxu0 0.0
  %211 = vmatpush1.msra.mxu0 0.0
  %212 = vmatprep.subr.mxu0 0.0
  %213 = vmatpush1.msra.mxu0 0.0
  %214 = vmatprep.subr.mxu0 0.0
  %215 = vmatpush1.msra.mxu0 0.0
  %216 = vmatprep.subr.mxu0 0.0
  %217 = vmatpush1.msra.mxu0 0.0
  %218 = vmatprep.subr.mxu0 0.0
  %219 = vmatpush1.msra.mxu0 0.0
  %220 = vmatprep.subr.mxu0 0.0
  %221 = vmatpush1.msra.mxu0 0.0
  %222 = vmatprep.subr.mxu0 0.0
  %223 = vmatpush1.msra.mxu0 0.0
  %224 = vmatprep.subr.mxu0 0.0
  %225 = vmatpush1.msra.mxu0 0.0
  %226 = vmatprep.subr.mxu0 0.0
  %227 = vmatpush1.msra.mxu0 0.0
  %228 = vmatprep.subr.mxu0 0.0
  %229 = vmatpush1.msra.mxu0 0.0
  %230 = vmatprep.subr.mxu0 0.0
  %231 = vmatpush1.msra.mxu0 0.0
  %232 = vmatprep.subr.mxu0 0.0
  %233 = vmatpush1.msra.mxu0 0.0
  %234 = vmatprep.subr.mxu0 0.0
  %235 = vmatpush1.msra.mxu0 0.0
  %236 = vmatprep.subr.mxu0 0.0
  %237 = vmatpush1.msra.mxu0 0.0
  %238 = vmatprep.subr.mxu0 0.0
  %239 = vmatpush1.msra.mxu0 0.0
  %240 = vmatprep.subr.mxu0 0.0
  %241 = vmatpush1.msra.mxu0 0.0
  %242 = vmatprep.subr.mxu0 0.0
  %243 = vmatpush1.msra.mxu0 0.0
  %244 = vmatprep.subr.mxu0 0.0
  %245 = vmatpush1.msra.mxu0 0.0
  %246 = vmatprep.subr.mxu0 0.0
  %247 = vmatpush1.msra.mxu0 0.0
  %248 = vmatprep.subr.mxu0 0.0
  %249 = vmatpush1.msra.mxu0 0.0
  %250 = vmatprep.subr.mxu0 0.0
  %251 = vmatpush1.msra.mxu0 0.0
  %252 = vmatprep.subr.mxu0 0.0
  %253 = vmatpush1.msra.mxu0 0.0
  %254 = vmatprep.subr.mxu0 0.0
  %255 = vmatpush1.msra.mxu0 0.0
  %256 = vmatprep.mubr.f32.mxu0 0.0
  %257 = vmatmul.mubr.f32.gmra.mrb[0].mxu0 %v190
  %v258 = vpop.f32.mrb[0].mxu0
  %v259 = vadd.f32 0.0, %v258
  %v260 = vpop.f32.mrb[0].mxu0
  %261 = vdwg.mxu0
  %v263 = vsel %vm150, %v180, 0
  %265 = vmatprep.subr.mxu0 0.0
  %266 = vmatpush1.msra.mxu0 %v181
  %267 = vmatprep.subr.mxu0 0.0
  %268 = vmatpush1.msra.mxu0 %v182
  %269 = vmatprep.subr.mxu0 0.0
  %270 = vmatpush1.msra.mxu0 %v183
  %271 = vmatprep.subr.mxu0 0.0
  %272 = vmatpush1.msra.mxu0 %v184
  %273 = vmatprep.subr.mxu0 0.0
  %274 = vmatpush1.msra.mxu0 %v185
  %275 = vmatprep.subr.mxu0 0.0
  %276 = vmatpush1.msra.mxu0 %v186
  %277 = vmatprep.subr.mxu0 0.0
  %278 = vmatpush1.msra.mxu0 %v187
  %279 = vmatprep.subr.mxu0 0.0
  %280 = vmatpush1.msra.mxu0 %v188
  %281 = vmatprep.subr.mxu0 0.0
  %282 = vmatpush1.msra.mxu0 0.0
  %283 = vmatprep.subr.mxu0 0.0
  %284 = vmatpush1.msra.mxu0 0.0
  %285 = vmatprep.subr.mxu0 0.0
  %286 = vmatpush1.msra.mxu0 0.0
  %287 = vmatprep.subr.mxu0 0.0
  %288 = vmatpush1.msra.mxu0 0.0
  %289 = vmatprep.subr.mxu0 0.0
  %290 = vmatpush1.msra.mxu0 0.0
  %291 = vmatprep.subr.mxu0 0.0
  %292 = vmatpush1.msra.mxu0 0.0
  %293 = vmatprep.subr.mxu0 0.0
  %294 = vmatpush1.msra.mxu0 0.0
  %295 = vmatprep.subr.mxu0 0.0
  %296 = vmatpush1.msra.mxu0 0.0
  %297 = vmatprep.subr.mxu0 0.0
  %298 = vmatpush1.msra.mxu0 0.0
  %299 = vmatprep.subr.mxu0 0.0
  %300 = vmatpush1.msra.mxu0 0.0
  %301 = vmatprep.subr.mxu0 0.0
  %302 = vmatpush1.msra.mxu0 0.0
  %303 = vmatprep.subr.mxu0 0.0
  %304 = vmatpush1.msra.mxu0 0.0
  %305 = vmatprep.subr.mxu0 0.0
  %306 = vmatpush1.msra.mxu0 0.0
  %307 = vmatprep.subr.mxu0 0.0
  %308 = vmatpush1.msra.mxu0 0.0
  %309 = vmatprep.subr.mxu0 0.0
  %310 = vmatpush1.msra.mxu0 0.0
  %311 = vmatprep.subr.mxu0 0.0
  %312 = vmatpush1.msra.mxu0 0.0
  %313 = vmatprep.subr.mxu0 0.0
  %314 = vmatpush1.msra.mxu0 0.0
  %315 = vmatprep.subr.mxu0 0.0
  %316 = vmatpush1.msra.mxu0 0.0
  %317 = vmatprep.subr.mxu0 0.0
  %318 = vmatpush1.msra.mxu0 0.0
  %319 = vmatprep.subr.mxu0 0.0
  %320 = vmatpush1.msra.mxu0 0.0
  %321 = vmatprep.subr.mxu0 0.0
  %322 = vmatpush1.msra.mxu0 0.0
  %323 = vmatprep.subr.mxu0 0.0
  %324 = vmatpush1.msra.mxu0 0.0
  %325 = vmatprep.subr.mxu0 0.0
  %326 = vmatpush1.msra.mxu0 0.0
  %327 = vmatprep.subr.mxu0 0.0
  %328 = vmatpush1.msra.mxu0 0.0
  %329 = vmatprep.mubr.f32.mxu0 0.0
  %330 = vmatmul.mubr.f32.gmra.mrb[0].mxu0 %v263
  %v331 = vpop.f32.mrb[0].mxu0
  %v332 = vadd.f32 0.0, %v331
  %v333 = vpop.f32.mrb[0].mxu0
  %334 = vdwg.mxu0
  %v335 = vmul.f32 %v259, 0.0078125
  %v336 = vmul.f32 %v332, 0.0078125
  %v337 = vmul.f32 %v335, %v335
  %v338 = vsub.f32 %v336, %v337
  %v339 = vmax.f32 %v338, 0.0
  %v340 = vld [vmem:[%s2] sm:$0x1]
  %v341 = vadd.f32 %v339, 1e-05
  %v342 = vrsqrt.pop %v341
  %v343 = vmul.f32 %v340, %v342
  %v344 = vld [vmem:[%s3] sm:$0x1]
  %v345 = vmul.f32 %v335, %v343
  %v346 = vsub.f32 %v344, %v345
  %v348 = vlaneseq
  %v349 = vshrl.u32 %v348, 7
  %v350 = vsub.s32 0, %v349
  %v351 = vrot.slane %v343, %v350
  %v353 = vmul.f32 %v136, %v351
  %v354 = vmul.f32 %v139, %v351
  %v355 = vmul.f32 %v144, %v351
  %v356 = vmul.f32 %v147, %v351
  %v358 = vlaneseq
  %v359 = vshrl.u32 %v358, 7
  %v360 = vsub.s32 0, %v359
  %v361 = vrot.slane %v346, %v360
  %v363 = vadd.f32 %v353, %v361
  %v364 = vadd.f32 %v354, %v361
  %v365 = vadd.f32 %v355, %v361
  %v366 = vadd.f32 %v356, %v361
  %v367 = vmax.f32 %v363, 0.0
  %v368 = vmax.f32 %v364, 0.0
  %v369 = vmax.f32 %v365, 0.0
  %v370 = vmax.f32 %v366, 0.0
  %v371 = vpack.c.bf16 %v368, %v367
  %v372 = vpack.c.bf16 %v370, %v369
  %v375 = vunpack.c.l.b16 %v371
  %v376 = vunpack.c.h.b16 %v371
  %v377 = vunpack.c.l.b16 %v372
  %v378 = vunpack.c.h.b16 %v372
  %v379 = vpack.c.b16 %v375, %v375
  %v380 = vpack.c.b16 %v376, %v376
  %v381 = vpack.c.b16 %v377, %v377
  %v382 = vpack.c.b16 %v378, %v378
  %vm387 = vcmask 519168
  %388 = vst.msk [vmem:[%s5] sm:$0xf] %vm387, %v379
  %389 = vst.msk [vmem:[%s5 + $0x4] sm:$0xf] %vm387, %v380
  %390 = vst.msk [vmem:[%s5 + $0x8] sm:$0xf] %vm387, %v381
  %391 = vst.msk [vmem:[%s5 + $0xc] sm:$0xf] %vm387, %v382
  // Predicated region
  $region22: #{g_net_forward.17} parent=0 // pred_check
    _
  $region23: #{g_net_forward.17} parent=0 // pred_check_branch
    %393 = sbr.rel (0) target = $region25
  $region24: #{g_net_forward.17} parent=0 // pred_region
    _
  $region25: #{g_net_forward.17} parent=0 // pred_fallthru
    _
  // Predicated region
  $region26: #{g_net_forward.17} parent=0 // pred_check
    _
  $region27: #{g_net_forward.17} parent=0 // pred_check_branch
    %395 = sbr.rel (0) target = $region29
  $region28: #{g_net_forward.17} parent=0 // pred_region
    _
  $region29: #{g_net_forward.17} parent=0 // pred_fallthru
    _

// kernel: g_net_forward.18
$region0: #{g_net_forward.18}
  #allocation0 [shape = 'u32[]', space=smem, size = 0x4, offset = 0x4, fixed_abs, tag = 'smem constant byte address 0x4 - core index']
  #allocation1 [shape = 'u32[144,128]{1,0:T(1,128)}', space=vmem, size = 0x12000, scoped, tag = 'internal scratch']
  %s0 = inlined_call_operand.vmem [shape: bf16[128,64], index: 0, kind: input, shape index: {}]
  %s1 = inlined_call_operand.vmem [shape: bf16[64,32], index: 1, kind: input, shape index: {}]
  %s2 = inlined_call_operand.vmem [shape: f32[1,32], index: 2, kind: input, shape index: {}]
  %s3 = inlined_call_operand.vmem [shape: f32[1,32], index: 3, kind: input, shape index: {}]
  %s4 = inlined_call_operand.vmem [shape: f32[32,32], index: 4, kind: input, shape index: {}]
  %s5 = inlined_call_operand.vmem [shape: bf16[128,32], index: 5, kind: output, shape index: {}]
  %s6 = sld [smem:[#allocation0]]
  $region30: #{g_net_forward.18} parent=0
    _
  %s8 = ssub.s32 1, %s6
  %s9 = scalar_select 0, %s8, %s6
  // Predicated region
  $region2: #{g_net_forward.18} parent=0 // pred_check
    _
  $region3: #{g_net_forward.18} parent=0 // pred_check_branch
    %11 = sbr.rel (0) target = $region5
  $region4: #{g_net_forward.18} parent=0 // pred_region
    _
  $region5: #{g_net_forward.18} parent=0 // pred_fallthru
    _
  // Predicated region
  $region6: #{g_net_forward.18} parent=0 // pred_check
    _
  $region7: #{g_net_forward.18} parent=0 // pred_check_branch
    %13 = sbr.rel (0) target = $region9
  $region8: #{g_net_forward.18} parent=0 // pred_region
    _
  $region9: #{g_net_forward.18} parent=0 // pred_fallthru
    _
  // Predicated region
  $region10: #{g_net_forward.18} parent=0 // pred_check
    _
  $region11: #{g_net_forward.18} parent=0 // pred_check_branch
    %15 = sbr.rel (0) target = $region13
  $region12: #{g_net_forward.18} parent=0 // pred_region
    _
  $region13: #{g_net_forward.18} parent=0 // pred_fallthru
    _
  // Predicated region
  $region14: #{g_net_forward.18} parent=0 // pred_check
    _
  $region15: #{g_net_forward.18} parent=0 // pred_check_branch
    %17 = sbr.rel (0) target = $region17
  $region16: #{g_net_forward.18} parent=0 // pred_region
    _
  $region17: #{g_net_forward.18} parent=0 // pred_fallthru
    _
  // Predicated region
  $region18: #{g_net_forward.18} parent=0 // pred_check
    _
  $region19: #{g_net_forward.18} parent=0 // pred_check_branch
    %19 = sbr.rel (0) target = $region21
  $region20: #{g_net_forward.18} parent=0 // pred_region
    _
  $region21: #{g_net_forward.18} parent=0 // pred_fallthru
    _
  %v21 = vld [vmem:[%s0] sm:$0xf]
  %v22 = vld [vmem:[%s0 + $0x4] sm:$0xf]
  %v23 = vld [vmem:[%s0 + $0x8] sm:$0xf]
  %v24 = vld [vmem:[%s0 + $0xc] sm:$0xf]
  %v25 = vld [vmem:[%s0 + $0x10] sm:$0xf]
  %v26 = vld [vmem:[%s0 + $0x14] sm:$0xf]
  %v27 = vld [vmem:[%s0 + $0x18] sm:$0xf]
  %v28 = vld [vmem:[%s0 + $0x1c] sm:$0xf]
  %v29 = vld [vmem:[%s0 + $0x20] sm:$0xf]
  %v30 = vld [vmem:[%s0 + $0x24] sm:$0xf]
  %v31 = vld [vmem:[%s0 + $0x28] sm:$0xf]
  %v32 = vld [vmem:[%s0 + $0x2c] sm:$0xf]
  %v33 = vld [vmem:[%s0 + $0x30] sm:$0xf]
  %v34 = vld [vmem:[%s0 + $0x34] sm:$0xf]
  %v35 = vld [vmem:[%s0 + $0x38] sm:$0xf]
  %v36 = vld [vmem:[%s0 + $0x3c] sm:$0xf]
  %v37 = vld [vmem:[%s1] sm:$0xf]
  %v38 = vld [vmem:[%s1 + $0x4] sm:$0xf]
  %v39 = vld [vmem:[%s1 + $0x8] sm:$0xf]
  %v40 = vld [vmem:[%s1 + $0xc] sm:$0xf]
  %v41 = vld [vmem:[%s1 + $0x10] sm:$0xf]
  %v42 = vld [vmem:[%s1 + $0x14] sm:$0xf]
  %v43 = vld [vmem:[%s1 + $0x18] sm:$0xf]
  %v44 = vld [vmem:[%s1 + $0x1c] sm:$0xf]
  %v61 = vunpack.c.l.b16 %v21
  %v62 = vunpack.c.l.b16 %v22
  %v63 = vunpack.c.l.b16 %v23
  %v64 = vunpack.c.l.b16 %v24
  %v65 = vunpack.c.l.b16 %v25
  %v66 = vunpack.c.l.b16 %v26
  %v67 = vunpack.c.l.b16 %v27
  %v68 = vunpack.c.l.b16 %v28
  %v69 = vunpack.c.l.b16 %v29
  %v70 = vunpack.c.l.b16 %v30
  %v71 = vunpack.c.l.b16 %v31
  %v72 = vunpack.c.l.b16 %v32
  %v73 = vunpack.c.l.b16 %v33
  %v74 = vunpack.c.l.b16 %v34
  %v75 = vunpack.c.l.b16 %v35
  %v76 = vunpack.c.l.b16 %v36
  %v77 = vpack.c.b16 %v62, %v61
  %v78 = vpack.c.b16 %v64, %v63
  %v79 = vpack.c.b16 %v66, %v65
  %v80 = vpack.c.b16 %v68, %v67
  %v81 = vpack.c.b16 %v70, %v69
  %v82 = vpack.c.b16 %v72, %v71
  %v83 = vpack.c.b16 %v74, %v73
  %v84 = vpack.c.b16 %v76, %v75
  %v93 = vunpack.c.l.b16 %v37
  %v94 = vunpack.c.l.b16 %v38
  %v95 = vunpack.c.l.b16 %v39
  %v96 = vunpack.c.l.b16 %v40
  %v97 = vunpack.c.l.b16 %v41
  %v98 = vunpack.c.l.b16 %v42
  %v99 = vunpack.c.l.b16 %v43
  %v100 = vunpack.c.l.b16 %v44
  %v101 = vpack.c.b16 %v94, %v93
  %v102 = vpack.c.b16 %v96, %v95
  %v103 = vpack.c.b16 %v98, %v97
  %v104 = vpack.c.b16 %v100, %v99
  %vm109 = vcmask 523264
  %v111 = vsel %vm109, %v77, 0
  %v114 = vsel %vm109, %v78, 0
  %v117 = vsel %vm109, %v79, 0
  %v120 = vsel %vm109, %v80, 0
  %v123 = vsel %vm109, %v81, 0
  %v126 = vsel %vm109, %v82, 0
  %v129 = vsel %vm109, %v83, 0
  %v132 = vsel %vm109, %v84, 0
  %134 = vmatprep.subr.bf16.mxu0 0
  %135 = vmatpush1.bf16.msra.mxu0 %v101
  %136 = vmatprep.subr.bf16.mxu0 0
  %137 = vmatpush1.bf16.msra.mxu0 %v102
  %138 = vmatprep.subr.bf16.mxu0 0
  %139 = vmatpush1.bf16.msra.mxu0 %v103
  %140 = vmatprep.subr.bf16.mxu0 0
  %141 = vmatpush1.bf16.msra.mxu0 %v104
  %142 = vmatprep.subr.bf16.mxu0 0
  %143 = vmatpush1.bf16.msra.mxu0 0
  %144 = vmatprep.subr.bf16.mxu0 0
  %145 = vmatpush1.bf16.msra.mxu0 0
  %146 = vmatprep.subr.bf16.mxu0 0
  %147 = vmatpush1.bf16.msra.mxu0 0
  %148 = vmatprep.subr.bf16.mxu0 0
  %149 = vmatpush1.bf16.msra.mxu0 0
  %150 = vmatprep.subr.bf16.mxu0 0
  %151 = vmatpush1.bf16.msra.mxu0 0
  %152 = vmatprep.subr.bf16.mxu0 0
  %153 = vmatpush1.bf16.msra.mxu0 0
  %154 = vmatprep.subr.bf16.mxu0 0
  %155 = vmatpush1.bf16.msra.mxu0 0
  %156 = vmatprep.subr.bf16.mxu0 0
  %157 = vmatpush1.bf16.msra.mxu0 0
  %158 = vmatprep.subr.bf16.mxu0 0
  %159 = vmatpush1.bf16.msra.mxu0 0
  %160 = vmatprep.subr.bf16.mxu0 0
  %161 = vmatpush1.bf16.msra.mxu0 0
  %162 = vmatprep.subr.bf16.mxu0 0
  %163 = vmatpush1.bf16.msra.mxu0 0
  %164 = vmatprep.subr.bf16.mxu0 0
  %165 = vmatpush1.bf16.msra.mxu0 0
  %166 = vmatprep.mubr.bf16.mxu0 0
  %167 = vmatmul.mubr.bf16.gmra.mrb[0].mxu0 %v111
  %v168 = vpop.f32.mrb[0].mxu0
  %v169 = vadd.f32 0.0, %v168
  %v170 = vpop.f32.mrb[0].mxu0
  %v171 = vpop.f32.mrb[0].mxu0
  %v172 = vadd.f32 0.0, %v171
  %v173 = vpop.f32.mrb[0].mxu0
  %174 = vmatprep.mubr.bf16.mxu0 0
  %175 = vmatmul.mubr.bf16.gmra.mrb[0].mxu0 %v114
  %v176 = vpop.f32.mrb[0].mxu0
  %v177 = vadd.f32 0.0, %v176
  %v178 = vpop.f32.mrb[0].mxu0
  %v179 = vpop.f32.mrb[0].mxu0
  %v180 = vadd.f32 0.0, %v179
  %v181 = vpop.f32.mrb[0].mxu0
  %182 = vmatprep.mubr.bf16.mxu0 0
  %183 = vmatmul.mubr.bf16.gmra.mrb[0].mxu0 %v117
  %v184 = vpop.f32.mrb[0].mxu0
  %v185 = vadd.f32 0.0, %v184
  %v186 = vpop.f32.mrb[0].mxu0
  %v187 = vpop.f32.mrb[0].mxu0
  %v188 = vadd.f32 0.0, %v187
  %v189 = vpop.f32.mrb[0].mxu0
  %190 = vmatprep.mubr.bf16.mxu0 0
  %191 = vmatmul.mubr.bf16.gmra.mrb[0].mxu0 %v120
  %v192 = vpop.f32.mrb[0].mxu0
  %v193 = vadd.f32 0.0, %v192
  %v194 = vpop.f32.mrb[0].mxu0
  %v195 = vpop.f32.mrb[0].mxu0
  %v196 = vadd.f32 0.0, %v195
  %v197 = vpop.f32.mrb[0].mxu0
  %198 = vmatprep.mubr.bf16.mxu0 0
  %199 = vmatmul.mubr.bf16.gmra.mrb[0].mxu0 %v123
  %v200 = vpop.f32.mrb[0].mxu0
  %v201 = vadd.f32 0.0, %v200
  %v202 = vpop.f32.mrb[0].mxu0
  %v203 = vpop.f32.mrb[0].mxu0
  %v204 = vadd.f32 0.0, %v203
  %v205 = vpop.f32.mrb[0].mxu0
  %206 = vmatprep.mubr.bf16.mxu0 0
  %207 = vmatmul.mubr.bf16.gmra.mrb[0].mxu0 %v126
  %v208 = vpop.f32.mrb[0].mxu0
  %v209 = vadd.f32 0.0, %v208
  %v210 = vpop.f32.mrb[0].mxu0
  %v211 = vpop.f32.mrb[0].mxu0
  %v212 = vadd.f32 0.0, %v211
  %v213 = vpop.f32.mrb[0].mxu0
  %214 = vmatprep.mubr.bf16.mxu0 0
  %215 = vmatmul.mubr.bf16.gmra.mrb[0].mxu0 %v129
  %v216 = vpop.f32.mrb[0].mxu0
  %v217 = vadd.f32 0.0, %v216
  %v218 = vpop.f32.mrb[0].mxu0
  %v219 = vpop.f32.mrb[0].mxu0
  %v220 = vadd.f32 0.0, %v219
  %v221 = vpop.f32.mrb[0].mxu0
  %222 = vmatprep.mubr.bf16.mxu0 0
  %223 = vmatmul.mubr.bf16.gmra.mrb[0].mxu0 %v132
  %v224 = vpop.f32.mrb[0].mxu0
  %v225 = vadd.f32 0.0, %v224
  %v226 = vpop.f32.mrb[0].mxu0
  %v227 = vpop.f32.mrb[0].mxu0
  %v228 = vadd.f32 0.0, %v227
  %v229 = vpop.f32.mrb[0].mxu0
  %230 = vdwg.mxu0
  %vm231 = vcmask 261120
  %v232 = vsel %vm231, %v169, 0.0
  %v233 = vsel %vm231, %v172, 0.0
  %v234 = vadd.f32 %v232, %v233
  %v235 = vsel %vm231, %v177, 0.0
  %v236 = vadd.f32 %v234, %v235
  %v237 = vsel %vm231, %v180, 0.0
  %v238 = vadd.f32 %v236, %v237
  %v239 = vsel %vm231, %v185, 0.0
  %v240 = vadd.f32 %v238, %v239
  %v241 = vsel %vm231, %v188, 0.0
  %v242 = vadd.f32 %v240, %v241
  %v243 = vsel %vm231, %v193, 0.0
  %v244 = vadd.f32 %v242, %v243
  %v245 = vsel %vm231, %v196, 0.0
  %v246 = vadd.f32 %v244, %v245
  %v247 = vsel %vm231, %v201, 0.0
  %v248 = vadd.f32 %v246, %v247
  %v249 = vsel %vm231, %v204, 0.0
  %v250 = vadd.f32 %v248, %v249
  %v251 = vsel %vm231, %v209, 0.0
  %v252 = vadd.f32 %v250, %v251
  %v253 = vsel %vm231, %v212, 0.0
  %v254 = vadd.f32 %v252, %v253
  %v255 = vsel %vm231, %v217, 0.0
  %v256 = vadd.f32 %v254, %v255
  %v257 = vsel %vm231, %v220, 0.0
  %v258 = vadd.f32 %v256, %v257
  %v259 = vsel %vm231, %v225, 0.0
  %v260 = vadd.f32 %v258, %v259
  %v261 = vsel %vm231, %v228, 0.0
  %v262 = vadd.f32 %v260, %v261
  %v263 = vrot.slane %v262, 4
  %v264 = vadd.f32 %v262, %v263
  %v265 = vrot.slane %v264, 2
  %v266 = vadd.f32 %v264, %v265
  %v267 = vrot.slane %v266, 1
  %v268 = vadd.f32 %v266, %v267
  %v269 = vmul.f32 %v169, %v169
  %v270 = vmul.f32 %v172, %v172
  %v271 = vmul.f32 %v177, %v177
  %v272 = vmul.f32 %v180, %v180
  %v273 = vmul.f32 %v185, %v185
  %v274 = vmul.f32 %v188, %v188
  %v275 = vmul.f32 %v193, %v193
  %v276 = vmul.f32 %v196, %v196
  %v277 = vmul.f32 %v201, %v201
  %v278 = vmul.f32 %v204, %v204
  %v279 = vmul.f32 %v209, %v209
  %v280 = vmul.f32 %v212, %v212
  %v281 = vmul.f32 %v217, %v217
  %v282 = vmul.f32 %v220, %v220
  %v283 = vmul.f32 %v225, %v225
  %v284 = vmul.f32 %v228, %v228
  %v285 = vsel %vm231, %v269, 0.0
  %v286 = vsel %vm231, %v270, 0.0
  %v287 = vadd.f32 %v285, %v286
  %v288 = vsel %vm231, %v271, 0.0
  %v289 = vadd.f32 %v287, %v288
  %v290 = vsel %vm231, %v272, 0.0
  %v291 = vadd.f32 %v289, %v290
  %v292 = vsel %vm231, %v273, 0.0
  %v293 = vadd.f32 %v291, %v292
  %v294 = vsel %vm231, %v274, 0.0
  %v295 = vadd.f32 %v293, %v294
  %v296 = vsel %vm231, %v275, 0.0
  %v297 = vadd.f32 %v295, %v296
  %v298 = vsel %vm231, %v276, 0.0
  %v299 = vadd.f32 %v297, %v298
  %v300 = vsel %vm231, %v277, 0.0
  %v301 = vadd.f32 %v299, %v300
  %v302 = vsel %vm231, %v278, 0.0
  %v303 = vadd.f32 %v301, %v302
  %v304 = vsel %vm231, %v279, 0.0
  %v305 = vadd.f32 %v303, %v304
  %v306 = vsel %vm231, %v280, 0.0
  %v307 = vadd.f32 %v305, %v306
  %v308 = vsel %vm231, %v281, 0.0
  %v309 = vadd.f32 %v307, %v308
  %v310 = vsel %vm231, %v282, 0.0
  %v311 = vadd.f32 %v309, %v310
  %v312 = vsel %vm231, %v283, 0.0
  %v313 = vadd.f32 %v311, %v312
  %v314 = vsel %vm231, %v284, 0.0
  %v315 = vadd.f32 %v313, %v314
  %v316 = vrot.slane %v315, 4
  %v317 = vadd.f32 %v315, %v316
  %v318 = vrot.slane %v317, 2
  %v319 = vadd.f32 %v317, %v318
  %v320 = vrot.slane %v319, 1
  %v321 = vadd.f32 %v319, %v320
  %v322 = vld [vmem:[%s4] sm:$0xff]
  %v323 = vld [vmem:[%s4 + $0x8] sm:$0xff]
  %v324 = vld [vmem:[%s4 + $0x10] sm:$0xff]
  %v325 = vld [vmem:[%s4 + $0x18] sm:$0xff]
  %v327 = vsel %vm231, %v268, 0
  %329 = vmatprep.subr.mxu0 0.0
  %330 = vmatpush1.msra.mxu0 %v322
  %331 = vmatprep.subr.mxu0 0.0
  %332 = vmatpush1.msra.mxu0 %v323
  %333 = vmatprep.subr.mxu0 0.0
  %334 = vmatpush1.msra.mxu0 %v324
  %335 = vmatprep.subr.mxu0 0.0
  %336 = vmatpush1.msra.mxu0 %v325
  %337 = vmatprep.subr.mxu0 0.0
  %338 = vmatpush1.msra.mxu0 0.0
  %339 = vmatprep.subr.mxu0 0.0
  %340 = vmatpush1.msra.mxu0 0.0
  %341 = vmatprep.subr.mxu0 0.0
  %342 = vmatpush1.msra.mxu0 0.0
  %343 = vmatprep.subr.mxu0 0.0
  %344 = vmatpush1.msra.mxu0 0.0
  %345 = vmatprep.subr.mxu0 0.0
  %346 = vmatpush1.msra.mxu0 0.0
  %347 = vmatprep.subr.mxu0 0.0
  %348 = vmatpush1.msra.mxu0 0.0
  %349 = vmatprep.subr.mxu0 0.0
  %350 = vmatpush1.msra.mxu0 0.0
  %351 = vmatprep.subr.mxu0 0.0
  %352 = vmatpush1.msra.mxu0 0.0
  %353 = vmatprep.subr.mxu0 0.0
  %354 = vmatpush1.msra.mxu0 0.0
  %355 = vmatprep.subr.mxu0 0.0
  %356 = vmatpush1.msra.mxu0 0.0
  %357 = vmatprep.subr.mxu0 0.0
  %358 = vmatpush1.msra.mxu0 0.0
  %359 = vmatprep.subr.mxu0 0.0
  %360 = vmatpush1.msra.mxu0 0.0
  %361 = vmatprep.subr.mxu0 0.0
  %362 = vmatpush1.msra.mxu0 0.0
  %363 = vmatprep.subr.mxu0 0.0
  %364 = vmatpush1.msra.mxu0 0.0
  %365 = vmatprep.subr.mxu0 0.0
  %366 = vmatpush1.msra.mxu0 0.0
  %367 = vmatprep.subr.mxu0 0.0
  %368 = vmatpush1.msra.mxu0 0.0
  %369 = vmatprep.subr.mxu0 0.0
  %370 = vmatpush1.msra.mxu0 0.0
  %371 = vmatprep.subr.mxu0 0.0
  %372 = vmatpush1.msra.mxu0 0.0
  %373 = vmatprep.subr.mxu0 0.0
  %374 = vmatpush1.msra.mxu0 0.0
  %375 = vmatprep.subr.mxu0 0.0
  %376 = vmatpush1.msra.mxu0 0.0
  %377 = vmatprep.subr.mxu0 0.0
  %378 = vmatpush1.msra.mxu0 0.0
  %379 = vmatprep.subr.mxu0 0.0
  %380 = vmatpush1.msra.mxu0 0.0
  %381 = vmatprep.subr.mxu0 0.0
  %382 = vmatpush1.msra.mxu0 0.0
  %383 = vmatprep.subr.mxu0 0.0
  %384 = vmatpush1.msra.mxu0 0.0
  %385 = vmatprep.subr.mxu0 0.0
  %386 = vmatpush1.msra.mxu0 0.0
  %387 = vmatprep.subr.mxu0 0.0
  %388 = vmatpush1.msra.mxu0 0.0
  %389 = vmatprep.subr.mxu0 0.0
  %390 = vmatpush1.msra.mxu0 0.0
  %391 = vmatprep.subr.mxu0 0.0
  %392 = vmatpush1.msra.mxu0 0.0
  %393 = vmatprep.mubr.f32.mxu0 0.0
  %394 = vmatmul.mubr.f32.gmra.mrb[0].mxu0 %v327
  %v395 = vpop.f32.mrb[0].mxu0
  %v396 = vadd.f32 0.0, %v395
  %v397 = vpop.f32.mrb[0].mxu0
  %398 = vdwg.mxu0
  %v400 = vsel %vm231, %v321, 0
  %402 = vmatprep.subr.mxu0 0.0
  %403 = vmatpush1.msra.mxu0 %v322
  %404 = vmatprep.subr.mxu0 0.0
  %405 = vmatpush1.msra.mxu0 %v323
  %406 = vmatprep.subr.mxu0 0.0
  %407 = vmatpush1.msra.mxu0 %v324
  %408 = vmatprep.subr.mxu0 0.0
  %409 = vmatpush1.msra.mxu0 %v325
  %410 = vmatprep.subr.mxu0 0.0
  %411 = vmatpush1.msra.mxu0 0.0
  %412 = vmatprep.subr.mxu0 0.0
  %413 = vmatpush1.msra.mxu0 0.0
  %414 = vmatprep.subr.mxu0 0.0
  %415 = vmatpush1.msra.mxu0 0.0
  %416 = vmatprep.subr.mxu0 0.0
  %417 = vmatpush1.msra.mxu0 0.0
  %418 = vmatprep.subr.mxu0 0.0
  %419 = vmatpush1.msra.mxu0 0.0
  %420 = vmatprep.subr.mxu0 0.0
  %421 = vmatpush1.msra.mxu0 0.0
  %422 = vmatprep.subr.mxu0 0.0
  %423 = vmatpush1.msra.mxu0 0.0
  %424 = vmatprep.subr.mxu0 0.0
  %425 = vmatpush1.msra.mxu0 0.0
  %426 = vmatprep.subr.mxu0 0.0
  %427 = vmatpush1.msra.mxu0 0.0
  %428 = vmatprep.subr.mxu0 0.0
  %429 = vmatpush1.msra.mxu0 0.0
  %430 = vmatprep.subr.mxu0 0.0
  %431 = vmatpush1.msra.mxu0 0.0
  %432 = vmatprep.subr.mxu0 0.0
  %433 = vmatpush1.msra.mxu0 0.0
  %434 = vmatprep.subr.mxu0 0.0
  %435 = vmatpush1.msra.mxu0 0.0
  %436 = vmatprep.subr.mxu0 0.0
  %437 = vmatpush1.msra.mxu0 0.0
  %438 = vmatprep.subr.mxu0 0.0
  %439 = vmatpush1.msra.mxu0 0.0
  %440 = vmatprep.subr.mxu0 0.0
  %441 = vmatpush1.msra.mxu0 0.0
  %442 = vmatprep.subr.mxu0 0.0
  %443 = vmatpush1.msra.mxu0 0.0
  %444 = vmatprep.subr.mxu0 0.0
  %445 = vmatpush1.msra.mxu0 0.0
  %446 = vmatprep.subr.mxu0 0.0
  %447 = vmatpush1.msra.mxu0 0.0
  %448 = vmatprep.subr.mxu0 0.0
  %449 = vmatpush1.msra.mxu0 0.0
  %450 = vmatprep.subr.mxu0 0.0
  %451 = vmatpush1.msra.mxu0 0.0
  %452 = vmatprep.subr.mxu0 0.0
  %453 = vmatpush1.msra.mxu0 0.0
  %454 = vmatprep.subr.mxu0 0.0
  %455 = vmatpush1.msra.mxu0 0.0
  %456 = vmatprep.subr.mxu0 0.0
  %457 = vmatpush1.msra.mxu0 0.0
  %458 = vmatprep.subr.mxu0 0.0
  %459 = vmatpush1.msra.mxu0 0.0
  %460 = vmatprep.subr.mxu0 0.0
  %461 = vmatpush1.msra.mxu0 0.0
  %462 = vmatprep.subr.mxu0 0.0
  %463 = vmatpush1.msra.mxu0 0.0
  %464 = vmatprep.subr.mxu0 0.0
  %465 = vmatpush1.msra.mxu0 0.0
  %466 = vmatprep.mubr.f32.mxu0 0.0
  %467 = vmatmul.mubr.f32.gmra.mrb[0].mxu0 %v400
  %v468 = vpop.f32.mrb[0].mxu0
  %v469 = vadd.f32 0.0, %v468
  %v470 = vpop.f32.mrb[0].mxu0
  %471 = vdwg.mxu0
  %v472 = vmul.f32 %v396, 0.001953125
  %v473 = vmul.f32 %v469, 0.001953125
  %v474 = vmul.f32 %v472, %v472
  %v475 = vsub.f32 %v473, %v474
  %v476 = vmax.f32 %v475, 0.0
  %v477 = vld [vmem:[%s2] sm:$0x1]
  %v478 = vadd.f32 %v476, 1e-05
  %v479 = vrsqrt.pop %v478
  %v480 = vmul.f32 %v477, %v479
  %v481 = vld [vmem:[%s3] sm:$0x1]
  %v482 = vmul.f32 %v472, %v480
  %v483 = vsub.f32 %v481, %v482
  %v485 = vlaneseq
  %v486 = vshrl.u32 %v485, 7
  %v487 = vsub.s32 0, %v486
  %v488 = vrot.slane %v480, %v487
  %v490 = vmul.f32 %v169, %v488
  %v491 = vmul.f32 %v172, %v488
  %v492 = vmul.f32 %v177, %v488
  %v493 = vmul.f32 %v180, %v488
  %v494 = vmul.f32 %v185, %v488
  %v495 = vmul.f32 %v188, %v488
  %v496 = vmul.f32 %v193, %v488
  %v497 = vmul.f32 %v196, %v488
  %v498 = vmul.f32 %v201, %v488
  %v499 = vmul.f32 %v204, %v488
  %v500 = vmul.f32 %v209, %v488
  %v501 = vmul.f32 %v212, %v488
  %v502 = vmul.f32 %v217, %v488
  %v503 = vmul.f32 %v220, %v488
  %v504 = vmul.f32 %v225, %v488
  %v505 = vmul.f32 %v228, %v488
  %v507 = vlaneseq
  %v508 = vshrl.u32 %v507, 7
  %v509 = vsub.s32 0, %v508
  %v510 = vrot.slane %v483, %v509
  %v512 = vadd.f32 %v490, %v510
  %v513 = vadd.f32 %v491, %v510
  %v514 = vadd.f32 %v492, %v510
  %v515 = vadd.f32 %v493, %v510
  %v516 = vadd.f32 %v494, %v510
  %v517 = vadd.f32 %v495, %v510
  %v518 = vadd.f32 %v496, %v510
  %v519 = vadd.f32 %v497, %v510
  %v520 = vadd.f32 %v498, %v510
  %v521 = vadd.f32 %v499, %v510
  %v522 = vadd.f32 %v500, %v510
  %v523 = vadd.f32 %v501, %v510
  %v524 = vadd.f32 %v502, %v510
  %v525 = vadd.f32 %v503, %v510
  %v526 = vadd.f32 %v504, %v510
  %v527 = vadd.f32 %v505, %v510
  %v528 = vmax.f32 %v512, 0.0
  %v529 = vmax.f32 %v513, 0.0
  %v530 = vmax.f32 %v514, 0.0
  %v531 = vmax.f32 %v515, 0.0
  %v532 = vmax.f32 %v516, 0.0
  %v533 = vmax.f32 %v517, 0.0
  %v534 = vmax.f32 %v518, 0.0
  %v535 = vmax.f32 %v519, 0.0
  %v536 = vmax.f32 %v520, 0.0
  %v537 = vmax.f32 %v521, 0.0
  %v538 = vmax.f32 %v522, 0.0
  %v539 = vmax.f32 %v523, 0.0
  %v540 = vmax.f32 %v524, 0.0
  %v541 = vmax.f32 %v525, 0.0
  %v542 = vmax.f32 %v526, 0.0
  %v543 = vmax.f32 %v527, 0.0
  %v544 = vpack.c.bf16 %v529, %v528
  %v545 = vpack.c.bf16 %v531, %v530
  %v546 = vpack.c.bf16 %v533, %v532
  %v547 = vpack.c.bf16 %v535, %v534
  %v548 = vpack.c.bf16 %v537, %v536
  %v549 = vpack.c.bf16 %v539, %v538
  %v550 = vpack.c.bf16 %v541, %v540
  %v551 = vpack.c.bf16 %v543, %v542
  %v560 = vunpack.c.l.b16 %v544
  %v561 = vunpack.c.h.b16 %v544
  %v562 = vunpack.c.l.b16 %v545
  %v563 = vunpack.c.h.b16 %v545
  %v564 = vunpack.c.l.b16 %v546
  %v565 = vunpack.c.h.b16 %v546
  %v566 = vunpack.c.l.b16 %v547
  %v567 = vunpack.c.h.b16 %v547
  %v568 = vunpack.c.l.b16 %v548
  %v569 = vunpack.c.h.b16 %v548
  %v570 = vunpack.c.l.b16 %v549
  %v571 = vunpack.c.h.b16 %v549
  %v572 = vunpack.c.l.b16 %v550
  %v573 = vunpack.c.h.b16 %v550
  %v574 = vunpack.c.l.b16 %v551
  %v575 = vunpack.c.h.b16 %v551
  %v576 = vpack.c.b16 %v560, %v560
  %v577 = vpack.c.b16 %v561, %v561
  %v578 = vpack.c.b16 %v562, %v562
  %v579 = vpack.c.b16 %v563, %v563
  %v580 = vpack.c.b16 %v564, %v564
  %v581 = vpack.c.b16 %v565, %v565
  %v582 = vpack.c.b16 %v566, %v566
  %v583 = vpack.c.b16 %v567, %v567
  %v584 = vpack.c.b16 %v568, %v568
  %v585 = vpack.c.b16 %v569, %v569
  %v586 = vpack.c.b16 %v570, %v570
  %v587 = vpack.c.b16 %v571, %v571
  %v588 = vpack.c.b16 %v572, %v572
  %v589 = vpack.c.b16 %v573, %v573
  %v590 = vpack.c.b16 %v574, %v574
  %v591 = vpack.c.b16 %v575, %v575
  %vm608 = vcmask 257024
  %609 = vst.msk [vmem:[%s5] sm:$0xf] %vm608, %v576
  %610 = vst.msk [vmem:[%s5 + $0x4] sm:$0xf] %vm608, %v577
  %611 = vst.msk [vmem:[%s5 + $0x8] sm:$0xf] %vm608, %v578
  %612 = vst.msk [vmem:[%s5 + $0xc] sm:$0xf] %vm608, %v579
  %613 = vst.msk [vmem:[%s5 + $0x10] sm:$0xf] %vm608, %v580
  %614 = vst.msk [vmem:[%s5 + $0x14] sm:$0xf] %vm608, %v581
  %615 = vst.msk [vmem:[%s5 + $0x18] sm:$0xf] %vm608, %v582
  %616 = vst.msk [vmem:[%s5 + $0x1c] sm:$0xf] %vm608, %v583
  %617 = vst.msk [vmem:[%s5 + $0x20] sm:$0xf] %vm608, %v584
  %618 = vst.msk [vmem:[%s5 + $0x24] sm:$0xf] %vm608, %v585
  %619 = vst.msk [vmem:[%s5 + $0x28] sm:$0xf] %vm608, %v586
  %620 = vst.msk [vmem:[%s5 + $0x2c] sm:$0xf] %vm608, %v587
  %621 = vst.msk [vmem:[%s5 + $0x30] sm:$0xf] %vm608, %v588
  %622 = vst.msk [vmem:[%s5 + $0x34] sm:$0xf] %vm608, %v589
  %623 = vst.msk [vmem:[%s5 + $0x38] sm:$0xf] %vm608, %v590
  %624 = vst.msk [vmem:[%s5 + $0x3c] sm:$0xf] %vm608, %v591
  // Predicated region
  $region22: #{g_net_forward.18} parent=0 // pred_check
    _
  $region23: #{g_net_forward.18} parent=0 // pred_check_branch
    %626 = sbr.rel (0) target = $region25
  $region24: #{g_net_forward.18} parent=0 // pred_region
    _
  $region25: #{g_net_forward.18} parent=0 // pred_fallthru
    _
  // Predicated region
  $region26: #{g_net_forward.18} parent=0 // pred_check
    _
  $region27: #{g_net_forward.18} parent=0 // pred_check_branch
    %628 = sbr.rel (0) target = $region29
  $region28: #{g_net_forward.18} parent=0 // pred_region
    _
  $region29: #{g_net_forward.18} parent=0 // pred_fallthru
    _

// kernel: g_net_forward.19
$region0: #{g_net_forward.19}
  #allocation0 [shape = 'u32[]', space=smem, size = 0x4, offset = 0x4, fixed_abs, tag = 'smem constant byte address 0x4 - core index']
  #allocation1 [shape = 'u32[144,128]{1,0:T(1,128)}', space=vmem, size = 0x12000, scoped, tag = 'internal scratch']
  %s0 = inlined_call_operand.vmem [shape: bf16[512,400], index: 0, kind: input, shape index: {}]
  %s1 = inlined_call_operand.vmem [shape: bf16[400,3], index: 1, kind: input, shape index: {}]
  %s2 = inlined_call_operand.vmem [shape: f32[1,3], index: 2, kind: input, shape index: {}]
  %s3 = inlined_call_operand.vmem [shape: f32[512,3], index: 3, kind: output, shape index: {}]
  %s4 = sld [smem:[#allocation0]]
  $region22: #{g_net_forward.19} parent=0
    _
  %s6 = ssub.s32 1, %s4
  %s7 = scalar_select 0, %s6, %s4
  // Predicated region
  $region2: #{g_net_forward.19} parent=0 // pred_check
    _
  $region3: #{g_net_forward.19} parent=0 // pred_check_branch
    %9 = sbr.rel (0) target = $region5
  $region4: #{g_net_forward.19} parent=0 // pred_region
    _
  $region5: #{g_net_forward.19} parent=0 // pred_fallthru
    _
  // Predicated region
  $region6: #{g_net_forward.19} parent=0 // pred_check
    _
  $region7: #{g_net_forward.19} parent=0 // pred_check_branch
    %11 = sbr.rel (0) target = $region9
  $region8: #{g_net_forward.19} parent=0 // pred_region
    _
  $region9: #{g_net_forward.19} parent=0 // pred_fallthru
    _
  // Predicated region
  $region10: #{g_net_forward.19} parent=0 // pred_check
    _
  $region11: #{g_net_forward.19} parent=0 // pred_check_branch
    %13 = sbr.rel (0) target = $region13
  $region12: #{g_net_forward.19} parent=0 // pred_region
    _
  $region13: #{g_net_forward.19} parent=0 // pred_fallthru
    _
  %v15 = vld [vmem:[%s0] sm:$0xff]
  %v16 = vld [vmem:[%s0 + $0x8] sm:$0xff]
  %v17 = vld [vmem:[%s0 + $0x10] sm:$0xff]
  %v18 = vld [vmem:[%s0 + $0x18] sm:$0xff]
  %v19 = vld [vmem:[%s0 + $0x20] sm:$0xff]
  %v20 = vld [vmem:[%s0 + $0x28] sm:$0xff]
  %v21 = vld [vmem:[%s0 + $0x30] sm:$0xff]
  %v22 = vld [vmem:[%s0 + $0x38] sm:$0xff]
  %v23 = vld [vmem:[%s0 + $0x40] sm:$0xff]
  %v24 = vld [vmem:[%s0 + $0x48] sm:$0xff]
  %v25 = vld [vmem:[%s0 + $0x50] sm:$0xff]
  %v26 = vld [vmem:[%s0 + $0x58] sm:$0xff]
  %v27 = vld [vmem:[%s0 + $0x60] sm:$0xff]
  %v28 = vld [vmem:[%s0 + $0x68] sm:$0xff]
  %v29 = vld [vmem:[%s0 + $0x70] sm:$0xff]
  %v30 = vld [vmem:[%s0 + $0x78] sm:$0xff]
  %v31 = vld [vmem:[%s0 + $0x80] sm:$0xff]
  %v32 = vld [vmem:[%s0 + $0x88] sm:$0xff]
  %v33 = vld [vmem:[%s0 + $0x90] sm:$0xff]
  %v34 = vld [vmem:[%s0 + $0x98] sm:$0xff]
  %v35 = vld [vmem:[%s0 + $0xa0] sm:$0xff]
  %v36 = vld [vmem:[%s0 + $0xa8] sm:$0xff]
  %v37 = vld [vmem:[%s0 + $0xb0] sm:$0xff]
  %v38 = vld [vmem:[%s0 + $0xb8] sm:$0xff]
  %v39 = vld [vmem:[%s0 + $0xc0] sm:$0xff]
  %v40 = vld [vmem:[%s0 + $0xc8] sm:$0xff]
  %v41 = vld [vmem:[%s0 + $0xd0] sm:$0xff]
  %v42 = vld [vmem:[%s0 + $0xd8] sm:$0xff]
  %v43 = vld [vmem:[%s0 + $0xe0] sm:$0xff]
  %v44 = vld [vmem:[%s0 + $0xe8] sm:$0xff]
  %v45 = vld [vmem:[%s0 + $0xf0] sm:$0xff]
  %v46 = vld [vmem:[%s0 + $0xf8] sm:$0xff]
  %v47 = vld [vmem:[%s0 + $0x100] sm:$0xff]
  %v48 = vld [vmem:[%s0 + $0x108] sm:$0xff]
  %v49 = vld [vmem:[%s0 + $0x110] sm:$0xff]
  %v50 = vld [vmem:[%s0 + $0x118] sm:$0xff]
  %v51 = vld [vmem:[%s0 + $0x120] sm:$0xff]
  %v52 = vld [vmem:[%s0 + $0x128] sm:$0xff]
  %v53 = vld [vmem:[%s0 + $0x130] sm:$0xff]
  %v54 = vld [vmem:[%s0 + $0x138] sm:$0xff]
  %v55 = vld [vmem:[%s0 + $0x140] sm:$0xff]
  %v56 = vld [vmem:[%s0 + $0x148] sm:$0xff]
  %v57 = vld [vmem:[%s0 + $0x150] sm:$0xff]
  %v58 = vld [vmem:[%s0 + $0x158] sm:$0xff]
  %v59 = vld [vmem:[%s0 + $0x160] sm:$0xff]
  %v60 = vld [vmem:[%s0 + $0x168] sm:$0xff]
  %v61 = vld [vmem:[%s0 + $0x170] sm:$0xff]
  %v62 = vld [vmem:[%s0 + $0x178] sm:$0xff]
  %v63 = vld [vmem:[%s0 + $0x180] sm:$0xff]
  %v64 = vld [vmem:[%s0 + $0x188] sm:$0xff]
  %v65 = vld [vmem:[%s0 + $0x190] sm:$0xff]
  %v66 = vld [vmem:[%s0 + $0x198] sm:$0xff]
  %v67 = vld [vmem:[%s0 + $0x1a0] sm:$0xff]
  %v68 = vld [vmem:[%s0 + $0x1a8] sm:$0xff]
  %v69 = vld [vmem:[%s0 + $0x1b0] sm:$0xff]
  %v70 = vld [vmem:[%s0 + $0x1b8] sm:$0xff]
  %v71 = vld [vmem:[%s0 + $0x1c0] sm:$0xff]
  %v72 = vld [vmem:[%s0 + $0x1c8] sm:$0xff]
  %v73 = vld [vmem:[%s0 + $0x1d0] sm:$0xff]
  %v74 = vld [vmem:[%s0 + $0x1d8] sm:$0xff]
  %v75 = vld [vmem:[%s0 + $0x1e0] sm:$0xff]
  %v76 = vld [vmem:[%s0 + $0x1e8] sm:$0xff]
  %v77 = vld [vmem:[%s0 + $0x1f0] sm:$0xff]
  %v78 = vld [vmem:[%s0 + $0x1f8] sm:$0xff]
  %v79 = vld [vmem:[%s0 + $0x200] sm:$0xff]
  %v80 = vld [vmem:[%s0 + $0x208] sm:$0xff]
  %v81 = vld [vmem:[%s0 + $0x210] sm:$0xff]
  %v82 = vld [vmem:[%s0 + $0x218] sm:$0xff]
  %v83 = vld [vmem:[%s0 + $0x220] sm:$0xff]
  %v84 = vld [vmem:[%s0 + $0x228] sm:$0xff]
  %v85 = vld [vmem:[%s0 + $0x230] sm:$0xff]
  %v86 = vld [vmem:[%s0 + $0x238] sm:$0xff]
  %v87 = vld [vmem:[%s0 + $0x240] sm:$0xff]
  %v88 = vld [vmem:[%s0 + $0x248] sm:$0xff]
  %v89 = vld [vmem:[%s0 + $0x250] sm:$0xff]
  %v90 = vld [vmem:[%s0 + $0x258] sm:$0xff]
  %v91 = vld [vmem:[%s0 + $0x260] sm:$0xff]
  %v92 = vld [vmem:[%s0 + $0x268] sm:$0xff]
  %v93 = vld [vmem:[%s0 + $0x270] sm:$0xff]
  %v94 = vld [vmem:[%s0 + $0x278] sm:$0xff]
  %v95 = vld [vmem:[%s0 + $0x280] sm:$0xff]
  %v96 = vld [vmem:[%s0 + $0x288] sm:$0xff]
  %v97 = vld [vmem:[%s0 + $0x290] sm:$0xff]
  %v98 = vld [vmem:[%s0 + $0x298] sm:$0xff]
  %v99 = vld [vmem:[%s0 + $0x2a0] sm:$0xff]
  %v100 = vld [vmem:[%s0 + $0x2a8] sm:$0xff]
  %v101 = vld [vmem:[%s0 + $0x2b0] sm:$0xff]
  %v102 = vld [vmem:[%s0 + $0x2b8] sm:$0xff]
  %v103 = vld [vmem:[%s0 + $0x2c0] sm:$0xff]
  %v104 = vld [vmem:[%s0 + $0x2c8] sm:$0xff]
  %v105 = vld [vmem:[%s0 + $0x2d0] sm:$0xff]
  %v106 = vld [vmem:[%s0 + $0x2d8] sm:$0xff]
  %v107 = vld [vmem:[%s0 + $0x2e0] sm:$0xff]
  %v108 = vld [vmem:[%s0 + $0x2e8] sm:$0xff]
  %v109 = vld [vmem:[%s0 + $0x2f0] sm:$0xff]
  %v110 = vld [vmem:[%s0 + $0x2f8] sm:$0xff]
  %v111 = vld [vmem:[%s0 + $0x300] sm:$0xff]
  %v112 = vld [vmem:[%s0 + $0x308] sm:$0xff]
  %v113 = vld [vmem:[%s0 + $0x310] sm:$0xff]
  %v114 = vld [vmem:[%s0 + $0x318] sm:$0xff]
  %v115 = vld [vmem:[%s0 + $0x320] sm:$0xff]
  %v116 = vld [vmem:[%s0 + $0x328] sm:$0xff]
  %v117 = vld [vmem:[%s0 + $0x330] sm:$0xff]
  %v118 = vld [vmem:[%s0 + $0x338] sm:$0xff]
  %v119 = vld [vmem:[%s0 + $0x340] sm:$0xff]
  %v120 = vld [vmem:[%s0 + $0x348] sm:$0xff]
  %v121 = vld [vmem:[%s0 + $0x350] sm:$0xff]
  %v122 = vld [vmem:[%s0 + $0x358] sm:$0xff]
  %v123 = vld [vmem:[%s0 + $0x360] sm:$0xff]
  %v124 = vld [vmem:[%s0 + $0x368] sm:$0xff]
  %v125 = vld [vmem:[%s0 + $0x370] sm:$0xff]
  %v126 = vld [vmem:[%s0 + $0x378] sm:$0xff]
  %v127 = vld [vmem:[%s0 + $0x380] sm:$0xff]
  %v128 = vld [vmem:[%s0 + $0x388] sm:$0xff]
  %v129 = vld [vmem:[%s0 + $0x390] sm:$0xff]
  %v130 = vld [vmem:[%s0 + $0x398] sm:$0xff]
  %v131 = vld [vmem:[%s0 + $0x3a0] sm:$0xff]
  %v132 = vld [vmem:[%s0 + $0x3a8] sm:$0xff]
  %v133 = vld [vmem:[%s0 + $0x3b0] sm:$0xff]
  %v134 = vld [vmem:[%s0 + $0x3b8] sm:$0xff]
  %v135 = vld [vmem:[%s0 + $0x3c0] sm:$0xff]
  %v136 = vld [vmem:[%s0 + $0x3c8] sm:$0xff]
  %v137 = vld [vmem:[%s0 + $0x3d0] sm:$0xff]
  %v138 = vld [vmem:[%s0 + $0x3d8] sm:$0xff]
  %v139 = vld [vmem:[%s0 + $0x3e0] sm:$0xff]
  %v140 = vld [vmem:[%s0 + $0x3e8] sm:$0xff]
  %v141 = vld [vmem:[%s0 + $0x3f0] sm:$0xff]
  %v142 = vld [vmem:[%s0 + $0x3f8] sm:$0xff]
  %v143 = vld [vmem:[%s1] sm:$0xf]
  %v144 = vld [vmem:[%s1 + $0x4] sm:$0xf]
  %v145 = vld [vmem:[%s1 + $0x8] sm:$0xf]
  %v146 = vld [vmem:[%s1 + $0xc] sm:$0xf]
  %v147 = vld [vmem:[%s1 + $0x10] sm:$0xf]
  %v148 = vld [vmem:[%s1 + $0x14] sm:$0xf]
  %v149 = vld [vmem:[%s1 + $0x18] sm:$0xf]
  %v150 = vld [vmem:[%s1 + $0x1c] sm:$0xf]
  %v151 = vld [vmem:[%s1 + $0x20] sm:$0xf]
  %v152 = vld [vmem:[%s1 + $0x24] sm:$0xf]
  %v153 = vld [vmem:[%s1 + $0x28] sm:$0xf]
  %v154 = vld [vmem:[%s1 + $0x2c] sm:$0xf]
  %v155 = vld [vmem:[%s1 + $0x30] sm:$0xf]
  %v156 = vld [vmem:[%s1 + $0x34] sm:$0xf]
  %v157 = vld [vmem:[%s1 + $0x38] sm:$0xf]
  %v158 = vld [vmem:[%s1 + $0x3c] sm:$0xf]
  %v159 = vld [vmem:[%s1 + $0x40] sm:$0xf]
  %v160 = vld [vmem:[%s1 + $0x44] sm:$0xf]
  %v161 = vld [vmem:[%s1 + $0x48] sm:$0xf]
  %v162 = vld [vmem:[%s1 + $0x4c] sm:$0xf]
  %v163 = vld [vmem:[%s1 + $0x50] sm:$0xf]
  %v164 = vld [vmem:[%s1 + $0x54] sm:$0xf]
  %v165 = vld [vmem:[%s1 + $0x58] sm:$0xf]
  %v166 = vld [vmem:[%s1 + $0x5c] sm:$0xf]
  %v167 = vld [vmem:[%s1 + $0x60] sm:$0xf]
  %v168 = vld [vmem:[%s1 + $0x64] sm:$0xf]
  %v169 = vld [vmem:[%s1 + $0x68] sm:$0xf]
  %v170 = vld [vmem:[%s1 + $0x6c] sm:$0xf]
  %v171 = vld [vmem:[%s1 + $0x70] sm:$0xf]
  %v172 = vld [vmem:[%s1 + $0x74] sm:$0xf]
  %v173 = vld [vmem:[%s1 + $0x78] sm:$0xf]
  %v174 = vld [vmem:[%s1 + $0x7c] sm:$0xf]
  %v175 = vld [vmem:[%s1 + $0x80] sm:$0xf]
  %v176 = vld [vmem:[%s1 + $0x84] sm:$0xf]
  %v177 = vld [vmem:[%s1 + $0x88] sm:$0xf]
  %v178 = vld [vmem:[%s1 + $0x8c] sm:$0xf]
  %v179 = vld [vmem:[%s1 + $0x90] sm:$0xf]
  %v180 = vld [vmem:[%s1 + $0x94] sm:$0xf]
  %v181 = vld [vmem:[%s1 + $0x98] sm:$0xf]
  %v182 = vld [vmem:[%s1 + $0x9c] sm:$0xf]
  %v183 = vld [vmem:[%s1 + $0xa0] sm:$0xf]
  %v184 = vld [vmem:[%s1 + $0xa4] sm:$0xf]
  %v185 = vld [vmem:[%s1 + $0xa8] sm:$0xf]
  %v186 = vld [vmem:[%s1 + $0xac] sm:$0xf]
  %v187 = vld [vmem:[%s1 + $0xb0] sm:$0xf]
  %v188 = vld [vmem:[%s1 + $0xb4] sm:$0xf]
  %v189 = vld [vmem:[%s1 + $0xb8] sm:$0xf]
  %v190 = vld [vmem:[%s1 + $0xbc] sm:$0xf]
  %v191 = vld [vmem:[%s1 + $0xc0] sm:$0xf]
  %v192 = vld [vmem:[%s1 + $0xc4] sm:$0xf]
  %v193 = vld [vmem:[%s2] sm:$0x1]
  %v195 = vlaneseq
  %v196 = vshrl.u32 %v195, 7
  %v197 = vsub.s32 0, %v196
  %v198 = vrot.slane %v193, %v197
  %v328 = vunpack.c.l.b16 %v15
  %v329 = vunpack.c.h.b16 %v15
  %v330 = vunpack.c.l.b16 %v16
  %v331 = vunpack.c.h.b16 %v16
  %v332 = vunpack.c.l.b16 %v17
  %v333 = vunpack.c.h.b16 %v17
  %v334 = vunpack.c.l.b16 %v18
  %v335 = vunpack.c.h.b16 %v18
  %v336 = vunpack.c.l.b16 %v19
  %v337 = vunpack.c.h.b16 %v19
  %v338 = vunpack.c.l.b16 %v20
  %v339 = vunpack.c.h.b16 %v20
  %v340 = vunpack.c.l.b16 %v21
  %v341 = vunpack.c.h.b16 %v21
  %v342 = vunpack.c.l.b16 %v22
  %v343 = vunpack.c.h.b16 %v22
  %v344 = vunpack.c.l.b16 %v23
  %v345 = vunpack.c.h.b16 %v23
  %v346 = vunpack.c.l.b16 %v24
  %v347 = vunpack.c.h.b16 %v24
  %v348 = vunpack.c.l.b16 %v25
  %v349 = vunpack.c.h.b16 %v25
  %v350 = vunpack.c.l.b16 %v26
  %v351 = vunpack.c.h.b16 %v26
  %v352 = vunpack.c.l.b16 %v27
  %v353 = vunpack.c.h.b16 %v27
  %v354 = vunpack.c.l.b16 %v28
  %v355 = vunpack.c.h.b16 %v28
  %v356 = vunpack.c.l.b16 %v29
  %v357 = vunpack.c.h.b16 %v29
  %v358 = vunpack.c.l.b16 %v30
  %v359 = vunpack.c.h.b16 %v30
  %v360 = vunpack.c.l.b16 %v31
  %v361 = vunpack.c.h.b16 %v31
  %v362 = vunpack.c.l.b16 %v32
  %v363 = vunpack.c.h.b16 %v32
  %v364 = vunpack.c.l.b16 %v33
  %v365 = vunpack.c.h.b16 %v33
  %v366 = vunpack.c.l.b16 %v34
  %v367 = vunpack.c.h.b16 %v34
  %v368 = vunpack.c.l.b16 %v35
  %v369 = vunpack.c.h.b16 %v35
  %v370 = vunpack.c.l.b16 %v36
  %v371 = vunpack.c.h.b16 %v36
  %v372 = vunpack.c.l.b16 %v37
  %v373 = vunpack.c.h.b16 %v37
  %v374 = vunpack.c.l.b16 %v38
  %v375 = vunpack.c.h.b16 %v38
  %v376 = vunpack.c.l.b16 %v39
  %v377 = vunpack.c.h.b16 %v39
  %v378 = vunpack.c.l.b16 %v40
  %v379 = vunpack.c.h.b16 %v40
  %v380 = vunpack.c.l.b16 %v41
  %v381 = vunpack.c.h.b16 %v41
  %v382 = vunpack.c.l.b16 %v42
  %v383 = vunpack.c.h.b16 %v42
  %v384 = vunpack.c.l.b16 %v43
  %v385 = vunpack.c.h.b16 %v43
  %v386 = vunpack.c.l.b16 %v44
  %v387 = vunpack.c.h.b16 %v44
  %v388 = vunpack.c.l.b16 %v45
  %v389 = vunpack.c.h.b16 %v45
  %v390 = vunpack.c.l.b16 %v46
  %v391 = vunpack.c.h.b16 %v46
  %v392 = vunpack.c.l.b16 %v47
  %v393 = vunpack.c.h.b16 %v47
  %v394 = vunpack.c.l.b16 %v48
  %v395 = vunpack.c.h.b16 %v48
  %v396 = vunpack.c.l.b16 %v49
  %v397 = vunpack.c.h.b16 %v49
  %v398 = vunpack.c.l.b16 %v50
  %v399 = vunpack.c.h.b16 %v50
  %v400 = vunpack.c.l.b16 %v51
  %v401 = vunpack.c.h.b16 %v51
  %v402 = vunpack.c.l.b16 %v52
  %v403 = vunpack.c.h.b16 %v52
  %v404 = vunpack.c.l.b16 %v53
  %v405 = vunpack.c.h.b16 %v53
  %v406 = vunpack.c.l.b16 %v54
  %v407 = vunpack.c.h.b16 %v54
  %v408 = vunpack.c.l.b16 %v55
  %v409 = vunpack.c.h.b16 %v55
  %v410 = vunpack.c.l.b16 %v56
  %v411 = vunpack.c.h.b16 %v56
  %v412 = vunpack.c.l.b16 %v57
  %v413 = vunpack.c.h.b16 %v57
  %v414 = vunpack.c.l.b16 %v58
  %v415 = vunpack.c.h.b16 %v58
  %v416 = vunpack.c.l.b16 %v59
  %v417 = vunpack.c.h.b16 %v59
  %v418 = vunpack.c.l.b16 %v60
  %v419 = vunpack.c.h.b16 %v60
  %v420 = vunpack.c.l.b16 %v61
  %v421 = vunpack.c.h.b16 %v61
  %v422 = vunpack.c.l.b16 %v62
  %v423 = vunpack.c.h.b16 %v62
  %v424 = vunpack.c.l.b16 %v63
  %v425 = vunpack.c.h.b16 %v63
  %v426 = vunpack.c.l.b16 %v64
  %v427 = vunpack.c.h.b16 %v64
  %v428 = vunpack.c.l.b16 %v65
  %v429 = vunpack.c.h.b16 %v65
  %v430 = vunpack.c.l.b16 %v66
  %v431 = vunpack.c.h.b16 %v66
  %v432 = vunpack.c.l.b16 %v67
  %v433 = vunpack.c.h.b16 %v67
  %v434 = vunpack.c.l.b16 %v68
  %v435 = vunpack.c.h.b16 %v68
  %v436 = vunpack.c.l.b16 %v69
  %v437 = vunpack.c.h.b16 %v69
  %v438 = vunpack.c.l.b16 %v70
  %v439 = vunpack.c.h.b16 %v70
  %v440 = vunpack.c.l.b16 %v71
  %v441 = vunpack.c.h.b16 %v71
  %v442 = vunpack.c.l.b16 %v72
  %v443 = vunpack.c.h.b16 %v72
  %v444 = vunpack.c.l.b16 %v73
  %v445 = vunpack.c.h.b16 %v73
  %v446 = vunpack.c.l.b16 %v74
  %v447 = vunpack.c.h.b16 %v74
  %v448 = vunpack.c.l.b16 %v75
  %v449 = vunpack.c.h.b16 %v75
  %v450 = vunpack.c.l.b16 %v76
  %v451 = vunpack.c.h.b16 %v76
  %v452 = vunpack.c.l.b16 %v77
  %v453 = vunpack.c.h.b16 %v77
  %v454 = vunpack.c.l.b16 %v78
  %v455 = vunpack.c.h.b16 %v78
  %v456 = vunpack.c.l.b16 %v79
  %v457 = vunpack.c.h.b16 %v79
  %v458 = vunpack.c.l.b16 %v80
  %v459 = vunpack.c.h.b16 %v80
  %v460 = vunpack.c.l.b16 %v81
  %v461 = vunpack.c.h.b16 %v81
  %v462 = vunpack.c.l.b16 %v82
  %v463 = vunpack.c.h.b16 %v82
  %v464 = vunpack.c.l.b16 %v83
  %v465 = vunpack.c.h.b16 %v83
  %v466 = vunpack.c.l.b16 %v84
  %v467 = vunpack.c.h.b16 %v84
  %v468 = vunpack.c.l.b16 %v85
  %v469 = vunpack.c.h.b16 %v85
  %v470 = vunpack.c.l.b16 %v86
  %v471 = vunpack.c.h.b16 %v86
  %v472 = vunpack.c.l.b16 %v87
  %v473 = vunpack.c.h.b16 %v87
  %v474 = vunpack.c.l.b16 %v88
  %v475 = vunpack.c.h.b16 %v88
  %v476 = vunpack.c.l.b16 %v89
  %v477 = vunpack.c.h.b16 %v89
  %v478 = vunpack.c.l.b16 %v90
  %v479 = vunpack.c.h.b16 %v90
  %v480 = vunpack.c.l.b16 %v91
  %v481 = vunpack.c.h.b16 %v91
  %v482 = vunpack.c.l.b16 %v92
  %v483 = vunpack.c.h.b16 %v92
  %v484 = vunpack.c.l.b16 %v93
  %v485 = vunpack.c.h.b16 %v93
  %v486 = vunpack.c.l.b16 %v94
  %v487 = vunpack.c.h.b16 %v94
  %v488 = vunpack.c.l.b16 %v95
  %v489 = vunpack.c.h.b16 %v95
  %v490 = vunpack.c.l.b16 %v96
  %v491 = vunpack.c.h.b16 %v96
  %v492 = vunpack.c.l.b16 %v97
  %v493 = vunpack.c.h.b16 %v97
  %v494 = vunpack.c.l.b16 %v98
  %v495 = vunpack.c.h.b16 %v98
  %v496 = vunpack.c.l.b16 %v99
  %v497 = vunpack.c.h.b16 %v99
  %v498 = vunpack.c.l.b16 %v100
  %v499 = vunpack.c.h.b16 %v100
  %v500 = vunpack.c.l.b16 %v101
  %v501 = vunpack.c.h.b16 %v101
  %v502 = vunpack.c.l.b16 %v102
  %v503 = vunpack.c.h.b16 %v102
  %v504 = vunpack.c.l.b16 %v103
  %v505 = vunpack.c.h.b16 %v103
  %v506 = vunpack.c.l.b16 %v104
  %v507 = vunpack.c.h.b16 %v104
  %v508 = vunpack.c.l.b16 %v105
  %v509 = vunpack.c.h.b16 %v105
  %v510 = vunpack.c.l.b16 %v106
  %v511 = vunpack.c.h.b16 %v106
  %v512 = vunpack.c.l.b16 %v107
  %v513 = vunpack.c.h.b16 %v107
  %v514 = vunpack.c.l.b16 %v108
  %v515 = vunpack.c.h.b16 %v108
  %v516 = vunpack.c.l.b16 %v109
  %v517 = vunpack.c.h.b16 %v109
  %v518 = vunpack.c.l.b16 %v110
  %v519 = vunpack.c.h.b16 %v110
  %v520 = vunpack.c.l.b16 %v111
  %v521 = vunpack.c.h.b16 %v111
  %v522 = vunpack.c.l.b16 %v112
  %v523 = vunpack.c.h.b16 %v112
  %v524 = vunpack.c.l.b16 %v113
  %v525 = vunpack.c.h.b16 %v113
  %v526 = vunpack.c.l.b16 %v114
  %v527 = vunpack.c.h.b16 %v114
  %v528 = vunpack.c.l.b16 %v115
  %v529 = vunpack.c.h.b16 %v115
  %v530 = vunpack.c.l.b16 %v116
  %v531 = vunpack.c.h.b16 %v116
  %v532 = vunpack.c.l.b16 %v117
  %v533 = vunpack.c.h.b16 %v117
  %v534 = vunpack.c.l.b16 %v118
  %v535 = vunpack.c.h.b16 %v118
  %v536 = vunpack.c.l.b16 %v119
  %v537 = vunpack.c.h.b16 %v119
  %v538 = vunpack.c.l.b16 %v120
  %v539 = vunpack.c.h.b16 %v120
  %v540 = vunpack.c.l.b16 %v121
  %v541 = vunpack.c.h.b16 %v121
  %v542 = vunpack.c.l.b16 %v122
  %v543 = vunpack.c.h.b16 %v122
  %v544 = vunpack.c.l.b16 %v123
  %v545 = vunpack.c.h.b16 %v123
  %v546 = vunpack.c.l.b16 %v124
  %v547 = vunpack.c.h.b16 %v124
  %v548 = vunpack.c.l.b16 %v125
  %v549 = vunpack.c.h.b16 %v125
  %v550 = vunpack.c.l.b16 %v126
  %v551 = vunpack.c.h.b16 %v126
  %v552 = vunpack.c.l.b16 %v127
  %v553 = vunpack.c.h.b16 %v127
  %v554 = vunpack.c.l.b16 %v128
  %v555 = vunpack.c.h.b16 %v128
  %v556 = vunpack.c.l.b16 %v129
  %v557 = vunpack.c.h.b16 %v129
  %v558 = vunpack.c.l.b16 %v130
  %v559 = vunpack.c.h.b16 %v130
  %v560 = vunpack.c.l.b16 %v131
  %v561 = vunpack.c.h.b16 %v131
  %v562 = vunpack.c.l.b16 %v132
  %v563 = vunpack.c.h.b16 %v132
  %v564 = vunpack.c.l.b16 %v133
  %v565 = vunpack.c.h.b16 %v133
  %v566 = vunpack.c.l.b16 %v134
  %v567 = vunpack.c.h.b16 %v134
  %v568 = vunpack.c.l.b16 %v135
  %v569 = vunpack.c.h.b16 %v135
  %v570 = vunpack.c.l.b16 %v136
  %v571 = vunpack.c.h.b16 %v136
  %v572 = vunpack.c.l.b16 %v137
  %v573 = vunpack.c.h.b16 %v137
  %v574 = vunpack.c.l.b16 %v138
  %v575 = vunpack.c.h.b16 %v138
  %v576 = vunpack.c.l.b16 %v139
  %v577 = vunpack.c.h.b16 %v139
  %v578 = vunpack.c.l.b16 %v140
  %v579 = vunpack.c.h.b16 %v140
  %v580 = vunpack.c.l.b16 %v141
  %v581 = vunpack.c.h.b16 %v141
  %v582 = vunpack.c.l.b16 %v142
  %v583 = vunpack.c.h.b16 %v142
  %v584 = vpack.c.b16 %v332, %v328
  %v585 = vpack.c.b16 %v333, %v329
  %v586 = vpack.c.b16 %v334, %v330
  %v587 = vpack.c.b16 %v335, %v331
  %v588 = vpack.c.b16 %v340, %v336
  %v589 = vpack.c.b16 %v341, %v337
  %v590 = vpack.c.b16 %v342, %v338
  %v591 = vpack.c.b16 %v343, %v339
  %v592 = vpack.c.b16 %v348, %v344
  %v593 = vpack.c.b16 %v349, %v345
  %v594 = vpack.c.b16 %v350, %v346
  %v595 = vpack.c.b16 %v351, %v347
  %v596 = vpack.c.b16 %v356, %v352
  %v597 = vpack.c.b16 %v357, %v353
  %v598 = vpack.c.b16 %v358, %v354
  %v599 = vpack.c.b16 %v359, %v355
  %v600 = vpack.c.b16 %v364, %v360
  %v601 = vpack.c.b16 %v365, %v361
  %v602 = vpack.c.b16 %v366, %v362
  %v603 = vpack.c.b16 %v367, %v363
  %v604 = vpack.c.b16 %v372, %v368
  %v605 = vpack.c.b16 %v373, %v369
  %v606 = vpack.c.b16 %v374, %v370
  %v607 = vpack.c.b16 %v375, %v371
  %v608 = vpack.c.b16 %v380, %v376
  %v609 = vpack.c.b16 %v381, %v377
  %v610 = vpack.c.b16 %v382, %v378
  %v611 = vpack.c.b16 %v383, %v379
  %v612 = vpack.c.b16 %v388, %v384
  %v613 = vpack.c.b16 %v389, %v385
  %v614 = vpack.c.b16 %v390, %v386
  %v615 = vpack.c.b16 %v391, %v387
  %v616 = vpack.c.b16 %v396, %v392
  %v617 = vpack.c.b16 %v397, %v393
  %v618 = vpack.c.b16 %v398, %v394
  %v619 = vpack.c.b16 %v399, %v395
  %v620 = vpack.c.b16 %v404, %v400
  %v621 = vpack.c.b16 %v405, %v401
  %v622 = vpack.c.b16 %v406, %v402
  %v623 = vpack.c.b16 %v407, %v403
  %v624 = vpack.c.b16 %v412, %v408
  %v625 = vpack.c.b16 %v413, %v409
  %v626 = vpack.c.b16 %v414, %v410
  %v627 = vpack.c.b16 %v415, %v411
  %v628 = vpack.c.b16 %v420, %v416
  %v629 = vpack.c.b16 %v421, %v417
  %v630 = vpack.c.b16 %v422, %v418
  %v631 = vpack.c.b16 %v423, %v419
  %v632 = vpack.c.b16 %v428, %v424
  %v633 = vpack.c.b16 %v429, %v425
  %v634 = vpack.c.b16 %v430, %v426
  %v635 = vpack.c.b16 %v431, %v427
  %v636 = vpack.c.b16 %v436, %v432
  %v637 = vpack.c.b16 %v437, %v433
  %v638 = vpack.c.b16 %v438, %v434
  %v639 = vpack.c.b16 %v439, %v435
  %v640 = vpack.c.b16 %v444, %v440
  %v641 = vpack.c.b16 %v445, %v441
  %v642 = vpack.c.b16 %v446, %v442
  %v643 = vpack.c.b16 %v447, %v443
  %v644 = vpack.c.b16 %v452, %v448
  %v645 = vpack.c.b16 %v453, %v449
  %v646 = vpack.c.b16 %v454, %v450
  %v647 = vpack.c.b16 %v455, %v451
  %v648 = vpack.c.b16 %v460, %v456
  %v649 = vpack.c.b16 %v461, %v457
  %v650 = vpack.c.b16 %v462, %v458
  %v651 = vpack.c.b16 %v463, %v459
  %v652 = vpack.c.b16 %v468, %v464
  %v653 = vpack.c.b16 %v469, %v465
  %v654 = vpack.c.b16 %v470, %v466
  %v655 = vpack.c.b16 %v471, %v467
  %v656 = vpack.c.b16 %v476, %v472
  %v657 = vpack.c.b16 %v477, %v473
  %v658 = vpack.c.b16 %v478, %v474
  %v659 = vpack.c.b16 %v479, %v475
  %v660 = vpack.c.b16 %v484, %v480
  %v661 = vpack.c.b16 %v485, %v481
  %v662 = vpack.c.b16 %v486, %v482
  %v663 = vpack.c.b16 %v487, %v483
  %v664 = vpack.c.b16 %v492, %v488
  %v665 = vpack.c.b16 %v493, %v489
  %v666 = vpack.c.b16 %v494, %v490
  %v667 = vpack.c.b16 %v495, %v491
  %v668 = vpack.c.b16 %v500, %v496
  %v669 = vpack.c.b16 %v501, %v497
  %v670 = vpack.c.b16 %v502, %v498
  %v671 = vpack.c.b16 %v503, %v499
  %v672 = vpack.c.b16 %v508, %v504
  %v673 = vpack.c.b16 %v509, %v505
  %v674 = vpack.c.b16 %v510, %v506
  %v675 = vpack.c.b16 %v511, %v507
  %v676 = vpack.c.b16 %v516, %v512
  %v677 = vpack.c.b16 %v517, %v513
  %v678 = vpack.c.b16 %v518, %v514
  %v679 = vpack.c.b16 %v519, %v515
  %v680 = vpack.c.b16 %v524, %v520
  %v681 = vpack.c.b16 %v525, %v521
  %v682 = vpack.c.b16 %v526, %v522
  %v683 = vpack.c.b16 %v527, %v523
  %v684 = vpack.c.b16 %v532, %v528
  %v685 = vpack.c.b16 %v533, %v529
  %v686 = vpack.c.b16 %v534, %v530
  %v687 = vpack.c.b16 %v535, %v531
  %v688 = vpack.c.b16 %v540, %v536
  %v689 = vpack.c.b16 %v541, %v537
  %v690 = vpack.c.b16 %v542, %v538
  %v691 = vpack.c.b16 %v543, %v539
  %v692 = vpack.c.b16 %v548, %v544
  %v693 = vpack.c.b16 %v549, %v545
  %v694 = vpack.c.b16 %v550, %v546
  %v695 = vpack.c.b16 %v551, %v547
  %v696 = vpack.c.b16 %v556, %v552
  %v697 = vpack.c.b16 %v557, %v553
  %v698 = vpack.c.b16 %v558, %v554
  %v699 = vpack.c.b16 %v559, %v555
  %v700 = vpack.c.b16 %v564, %v560
  %v701 = vpack.c.b16 %v565, %v561
  %v702 = vpack.c.b16 %v566, %v562
  %v703 = vpack.c.b16 %v567, %v563
  %v704 = vpack.c.b16 %v572, %v568
  %v705 = vpack.c.b16 %v573, %v569
  %v706 = vpack.c.b16 %v574, %v570
  %v707 = vpack.c.b16 %v575, %v571
  %v708 = vpack.c.b16 %v580, %v576
  %v709 = vpack.c.b16 %v581, %v577
  %v710 = vpack.c.b16 %v582, %v578
  %v711 = vpack.c.b16 %v583, %v579
  %v858 = vunpack.c.l.b16 %v143
  %v859 = vunpack.c.l.b16 %v144
  %v860 = vunpack.c.l.b16 %v145
  %v861 = vunpack.c.l.b16 %v146
  %v862 = vunpack.c.l.b16 %v147
  %v863 = vunpack.c.l.b16 %v148
  %v864 = vunpack.c.l.b16 %v149
  %v865 = vunpack.c.l.b16 %v150
  %v866 = vunpack.c.l.b16 %v151
  %v867 = vunpack.c.l.b16 %v152
  %v868 = vunpack.c.l.b16 %v153
  %v869 = vunpack.c.l.b16 %v154
  %v870 = vunpack.c.l.b16 %v155
  %v871 = vunpack.c.l.b16 %v156
  %v872 = vunpack.c.l.b16 %v157
  %v873 = vunpack.c.l.b16 %v158
  %v874 = vunpack.c.l.b16 %v159
  %v875 = vunpack.c.l.b16 %v160
  %v876 = vunpack.c.l.b16 %v161
  %v877 = vunpack.c.l.b16 %v162
  %v878 = vunpack.c.l.b16 %v163
  %v879 = vunpack.c.l.b16 %v164
  %v880 = vunpack.c.l.b16 %v165
  %v881 = vunpack.c.l.b16 %v166
  %v882 = vunpack.c.l.b16 %v167
  %v883 = vunpack.c.l.b16 %v168
  %v884 = vunpack.c.l.b16 %v169
  %v885 = vunpack.c.l.b16 %v170
  %v886 = vunpack.c.l.b16 %v171
  %v887 = vunpack.c.l.b16 %v172
  %v888 = vunpack.c.l.b16 %v173
  %v889 = vunpack.c.l.b16 %v174
  %v890 = vunpack.c.l.b16 %v175
  %v891 = vunpack.c.l.b16 %v176
  %v892 = vunpack.c.l.b16 %v177
  %v893 = vunpack.c.l.b16 %v178
  %v894 = vunpack.c.l.b16 %v179
  %v895 = vunpack.c.l.b16 %v180
  %v896 = vunpack.c.l.b16 %v181
  %v897 = vunpack.c.l.b16 %v182
  %v898 = vunpack.c.l.b16 %v183
  %v899 = vunpack.c.l.b16 %v184
  %v900 = vunpack.c.l.b16 %v185
  %v901 = vunpack.c.l.b16 %v186
  %v902 = vunpack.c.l.b16 %v187
  %v903 = vunpack.c.l.b16 %v188
  %v904 = vunpack.c.l.b16 %v189
  %v905 = vunpack.c.l.b16 %v190
  %v906 = vunpack.c.l.b16 %v191
  %v907 = vunpack.c.l.b16 %v192
  %v908 = vpack.c.b16 %v859, %v858
  %v909 = vpack.c.b16 %v861, %v860
  %v910 = vpack.c.b16 %v863, %v862
  %v911 = vpack.c.b16 %v865, %v864
  %v912 = vpack.c.b16 %v867, %v866
  %v913 = vpack.c.b16 %v869, %v868
  %v914 = vpack.c.b16 %v871, %v870
  %v915 = vpack.c.b16 %v873, %v872
  %v916 = vpack.c.b16 %v875, %v874
  %v917 = vpack.c.b16 %v877, %v876
  %v918 = vpack.c.b16 %v879, %v878
  %v919 = vpack.c.b16 %v881, %v880
  %v920 = vpack.c.b16 %v883, %v882
  %v921 = vpack.c.b16 %v885, %v884
  %v922 = vpack.c.b16 %v887, %v886
  %v923 = vpack.c.b16 %v889, %v888
  %v924 = vpack.c.b16 %v891, %v890
  %v925 = vpack.c.b16 %v893, %v892
  %v926 = vpack.c.b16 %v895, %v894
  %v927 = vpack.c.b16 %v897, %v896
  %v928 = vpack.c.b16 %v899, %v898
  %v929 = vpack.c.b16 %v901, %v900
  %v930 = vpack.c.b16 %v903, %v902
  %v931 = vpack.c.b16 %v905, %v904
  %v932 = vpack.c.b16 %v907, %v906
  %vm958 = vcmask 130048
  %v960 = vsel %vm958, %v587, 0
  %v963 = vsel %vm958, %v591, 0
  %v966 = vsel %vm958, %v595, 0
  %v969 = vsel %vm958, %v599, 0
  %v972 = vsel %vm958, %v603, 0
  %v975 = vsel %vm958, %v607, 0
  %v978 = vsel %vm958, %v611, 0
  %v981 = vsel %vm958, %v615, 0
  %v984 = vsel %vm958, %v619, 0
  %v987 = vsel %vm958, %v623, 0
  %v990 = vsel %vm958, %v627, 0
  %v993 = vsel %vm958, %v631, 0
  %v996 = vsel %vm958, %v635, 0
  %v999 = vsel %vm958, %v639, 0
  %v1002 = vsel %vm958, %v643, 0
  %v1005 = vsel %vm958, %v647, 0
  %v1008 = vsel %vm958, %v651, 0
  %v1011 = vsel %vm958, %v655, 0
  %v1014 = vsel %vm958, %v659, 0
  %v1017 = vsel %vm958, %v663, 0
  %v1020 = vsel %vm958, %v667, 0
  %v1023 = vsel %vm958, %v671, 0
  %v1026 = vsel %vm958, %v675, 0
  %v1029 = vsel %vm958, %v679, 0
  %v1032 = vsel %vm958, %v683, 0
  %v1035 = vsel %vm958, %v687, 0
  %v1038 = vsel %vm958, %v691, 0
  %v1041 = vsel %vm958, %v695, 0
  %v1044 = vsel %vm958, %v699, 0
  %v1047 = vsel %vm958, %v703, 0
  %v1050 = vsel %vm958, %v707, 0
  %v1053 = vsel %vm958, %v711, 0
  %1055 = vmatprep.subr.bf16.mxu0 0
  %1056 = vmatpush1.bf16.msra.mxu0 %v908
  %1057 = vmatprep.subr.bf16.mxu0 0
  %1058 = vmatpush1.bf16.msra.mxu0 %v909
  %1059 = vmatprep.subr.bf16.mxu0 0
  %1060 = vmatpush1.bf16.msra.mxu0 %v910
  %1061 = vmatprep.subr.bf16.mxu0 0
  %1062 = vmatpush1.bf16.msra.mxu0 %v911
  %1063 = vmatprep.subr.bf16.mxu0 0
  %1064 = vmatpush1.bf16.msra.mxu0 %v912
  %1065 = vmatprep.subr.bf16.mxu0 0
  %1066 = vmatpush1.bf16.msra.mxu0 %v913
  %1067 = vmatprep.subr.bf16.mxu0 0
  %1068 = vmatpush1.bf16.msra.mxu0 %v914
  %1069 = vmatprep.subr.bf16.mxu0 0
  %1070 = vmatpush1.bf16.msra.mxu0 %v915
  %1071 = vmatprep.subr.bf16.mxu0 0
  %1072 = vmatpush1.bf16.msra.mxu0 %v916
  %1073 = vmatprep.subr.bf16.mxu0 0
  %1074 = vmatpush1.bf16.msra.mxu0 %v917
  %1075 = vmatprep.subr.bf16.mxu0 0
  %1076 = vmatpush1.bf16.msra.mxu0 %v918
  %1077 = vmatprep.subr.bf16.mxu0 0
  %1078 = vmatpush1.bf16.msra.mxu0 %v919
  %1079 = vmatprep.subr.bf16.mxu0 0
  %1080 = vmatpush1.bf16.msra.mxu0 %v920
  %1081 = vmatprep.subr.bf16.mxu0 0
  %1082 = vmatpush1.bf16.msra.mxu0 %v921
  %1083 = vmatprep.subr.bf16.mxu0 0
  %1084 = vmatpush1.bf16.msra.mxu0 %v922
  %1085 = vmatprep.subr.bf16.mxu0 0
  %1086 = vmatpush1.bf16.msra.mxu0 %v923
  %1087 = vmatprep.mubr.bf16.mxu0 %v585
  %1088 = vmatmul.mubr.bf16.gmra.mrb[0].mxu0 %v584
  %v1089 = vpop.f32.mrb[0].mxu0
  %v1090 = vadd.f32 %v198, %v1089
  %v1091 = vpop.f32.mrb[0].mxu0
  %v1092 = vpop.f32.mrb[0].mxu0
  %v1093 = vadd.f32 %v198, %v1092
  %v1094 = vpop.f32.mrb[0].mxu0
  %1095 = vmatprep.mubr.bf16.mxu0 %v589
  %1096 = vmatmul.mubr.bf16.gmra.mrb[0].mxu0 %v588
  %v1097 = vpop.f32.mrb[0].mxu0
  %v1098 = vadd.f32 %v198, %v1097
  %v1099 = vpop.f32.mrb[0].mxu0
  %v1100 = vpop.f32.mrb[0].mxu0
  %v1101 = vadd.f32 %v198, %v1100
  %v1102 = vpop.f32.mrb[0].mxu0
  %1103 = vmatprep.mubr.bf16.mxu0 %v593
  %1104 = vmatmul.mubr.bf16.gmra.mrb[0].mxu0 %v592
  %v1105 = vpop.f32.mrb[0].mxu0
  %v1106 = vadd.f32 %v198, %v1105
  %v1107 = vpop.f32.mrb[0].mxu0
  %v1108 = vpop.f32.mrb[0].mxu0
  %v1109 = vadd.f32 %v198, %v1108
  %v1110 = vpop.f32.mrb[0].mxu0
  %1111 = vmatprep.mubr.bf16.mxu0 %v597
  %1112 = vmatmul.mubr.bf16.gmra.mrb[0].mxu0 %v596
  %v1113 = vpop.f32.mrb[0].mxu0
  %v1114 = vadd.f32 %v198, %v1113
  %v1115 = vpop.f32.mrb[0].mxu0
  %v1116 = vpop.f32.mrb[0].mxu0
  %v1117 = vadd.f32 %v198, %v1116
  %v1118 = vpop.f32.mrb[0].mxu0
  %1119 = vmatprep.mubr.bf16.mxu0 %v601
  %1120 = vmatmul.mubr.bf16.gmra.mrb[0].mxu0 %v600
  %v1121 = vpop.f32.mrb[0].mxu0
  %v1122 = vadd.f32 %v198, %v1121
  %v1123 = vpop.f32.mrb[0].mxu0
  %v1124 = vpop.f32.mrb[0].mxu0
  %v1125 = vadd.f32 %v198, %v1124
  %v1126 = vpop.f32.mrb[0].mxu0
  %1127 = vmatprep.mubr.bf16.mxu0 %v605
  %1128 = vmatmul.mubr.bf16.gmra.mrb[0].mxu0 %v604
  %v1129 = vpop.f32.mrb[0].mxu0
  %v1130 = vadd.f32 %v198, %v1129
  %v1131 = vpop.f32.mrb[0].mxu0
  %v1132 = vpop.f32.mrb[0].mxu0
  %v1133 = vadd.f32 %v198, %v1132
  %v1134 = vpop.f32.mrb[0].mxu0
  %1135 = vmatprep.mubr.bf16.mxu0 %v609
  %1136 = vmatmul.mubr.bf16.gmra.mrb[0].mxu0 %v608
  %v1137 = vpop.f32.mrb[0].mxu0
  %v1138 = vadd.f32 %v198, %v1137
  %v1139 = vpop.f32.mrb[0].mxu0
  %v1140 = vpop.f32.mrb[0].mxu0
  %v1141 = vadd.f32 %v198, %v1140
  %v1142 = vpop.f32.mrb[0].mxu0
  %1143 = vmatprep.mubr.bf16.mxu0 %v613
  %1144 = vmatmul.mubr.bf16.gmra.mrb[0].mxu0 %v612
  %v1145 = vpop.f32.mrb[0].mxu0
  %v1146 = vadd.f32 %v198, %v1145
  %v1147 = vpop.f32.mrb[0].mxu0
  %v1148 = vpop.f32.mrb[0].mxu0
  %v1149 = vadd.f32 %v198, %v1148
  %v1150 = vpop.f32.mrb[0].mxu0
  %1151 = vmatprep.mubr.bf16.mxu0 %v617
  %1152 = vmatmul.mubr.bf16.gmra.mrb[0].mxu0 %v616
  %v1153 = vpop.f32.mrb[0].mxu0
  %v1154 = vadd.f32 %v198, %v1153
  %v1155 = vpop.f32.mrb[0].mxu0
  %v1156 = vpop.f32.mrb[0].mxu0
  %v1157 = vadd.f32 %v198, %v1156
  %v1158 = vpop.f32.mrb[0].mxu0
  %1159 = vmatprep.mubr.bf16.mxu0 %v621
  %1160 = vmatmul.mubr.bf16.gmra.mrb[0].mxu0 %v620
  %v1161 = vpop.f32.mrb[0].mxu0
  %v1162 = vadd.f32 %v198, %v1161
  %v1163 = vpop.f32.mrb[0].mxu0
  %v1164 = vpop.f32.mrb[0].mxu0
  %v1165 = vadd.f32 %v198, %v1164
  %v1166 = vpop.f32.mrb[0].mxu0
  %1167 = vmatprep.mubr.bf16.mxu0 %v625
  %1168 = vmatmul.mubr.bf16.gmra.mrb[0].mxu0 %v624
  %v1169 = vpop.f32.mrb[0].mxu0
  %v1170 = vadd.f32 %v198, %v1169
  %v1171 = vpop.f32.mrb[0].mxu0
  %v1172 = vpop.f32.mrb[0].mxu0
  %v1173 = vadd.f32 %v198, %v1172
  %v1174 = vpop.f32.mrb[0].mxu0
  %1175 = vmatprep.mubr.bf16.mxu0 %v629
  %1176 = vmatmul.mubr.bf16.gmra.mrb[0].mxu0 %v628
  %v1177 = vpop.f32.mrb[0].mxu0
  %v1178 = vadd.f32 %v198, %v1177
  %v1179 = vpop.f32.mrb[0].mxu0
  %v1180 = vpop.f32.mrb[0].mxu0
  %v1181 = vadd.f32 %v198, %v1180
  %v1182 = vpop.f32.mrb[0].mxu0
  %1183 = vmatprep.mubr.bf16.mxu0 %v633
  %1184 = vmatmul.mubr.bf16.gmra.mrb[0].mxu0 %v632
  %v1185 = vpop.f32.mrb[0].mxu0
  %v1186 = vadd.f32 %v198, %v1185
  %v1187 = vpop.f32.mrb[0].mxu0
  %v1188 = vpop.f32.mrb[0].mxu0
  %v1189 = vadd.f32 %v198, %v1188
  %v1190 = vpop.f32.mrb[0].mxu0
  %1191 = vmatprep.mubr.bf16.mxu0 %v637
  %1192 = vmatmul.mubr.bf16.gmra.mrb[0].mxu0 %v636
  %v1193 = vpop.f32.mrb[0].mxu0
  %v1194 = vadd.f32 %v198, %v1193
  %v1195 = vpop.f32.mrb[0].mxu0
  %v1196 = vpop.f32.mrb[0].mxu0
  %v1197 = vadd.f32 %v198, %v1196
  %v1198 = vpop.f32.mrb[0].mxu0
  %1199 = vmatprep.mubr.bf16.mxu0 %v641
  %1200 = vmatmul.mubr.bf16.gmra.mrb[0].mxu0 %v640
  %v1201 = vpop.f32.mrb[0].mxu0
  %v1202 = vadd.f32 %v198, %v1201
  %v1203 = vpop.f32.mrb[0].mxu0
  %v1204 = vpop.f32.mrb[0].mxu0
  %v1205 = vadd.f32 %v198, %v1204
  %v1206 = vpop.f32.mrb[0].mxu0
  %1207 = vmatprep.mubr.bf16.mxu0 %v645
  %1208 = vmatmul.mubr.bf16.gmra.mrb[0].mxu0 %v644
  %v1209 = vpop.f32.mrb[0].mxu0
  %v1210 = vadd.f32 %v198, %v1209
  %v1211 = vpop.f32.mrb[0].mxu0
  %v1212 = vpop.f32.mrb[0].mxu0
  %v1213 = vadd.f32 %v198, %v1212
  %v1214 = vpop.f32.mrb[0].mxu0
  %1215 = vmatprep.mubr.bf16.mxu0 %v649
  %1216 = vmatmul.mubr.bf16.gmra.mrb[0].mxu0 %v648
  %v1217 = vpop.f32.mrb[0].mxu0
  %v1218 = vadd.f32 %v198, %v1217
  %v1219 = vpop.f32.mrb[0].mxu0
  %v1220 = vpop.f32.mrb[0].mxu0
  %v1221 = vadd.f32 %v198, %v1220
  %v1222 = vpop.f32.mrb[0].mxu0
  %1223 = vmatprep.mubr.bf16.mxu0 %v653
  %1224 = vmatmul.mubr.bf16.gmra.mrb[0].mxu0 %v652
  %v1225 = vpop.f32.mrb[0].mxu0
  %v1226 = vadd.f32 %v198, %v1225
  %v1227 = vpop.f32.mrb[0].mxu0
  %v1228 = vpop.f32.mrb[0].mxu0
  %v1229 = vadd.f32 %v198, %v1228
  %v1230 = vpop.f32.mrb[0].mxu0
  %1231 = vmatprep.mubr.bf16.mxu0 %v657
  %1232 = vmatmul.mubr.bf16.gmra.mrb[0].mxu0 %v656
  %v1233 = vpop.f32.mrb[0].mxu0
  %v1234 = vadd.f32 %v198, %v1233
  %v1235 = vpop.f32.mrb[0].mxu0
  %v1236 = vpop.f32.mrb[0].mxu0
  %v1237 = vadd.f32 %v198, %v1236
  %v1238 = vpop.f32.mrb[0].mxu0
  %1239 = vmatprep.mubr.bf16.mxu0 %v661
  %1240 = vmatmul.mubr.bf16.gmra.mrb[0].mxu0 %v660
  %v1241 = vpop.f32.mrb[0].mxu0
  %v1242 = vadd.f32 %v198, %v1241
  %v1243 = vpop.f32.mrb[0].mxu0
  %v1244 = vpop.f32.mrb[0].mxu0
  %v1245 = vadd.f32 %v198, %v1244
  %v1246 = vpop.f32.mrb[0].mxu0
  %1247 = vmatprep.mubr.bf16.mxu0 %v665
  %1248 = vmatmul.mubr.bf16.gmra.mrb[0].mxu0 %v664
  %v1249 = vpop.f32.mrb[0].mxu0
  %v1250 = vadd.f32 %v198, %v1249
  %v1251 = vpop.f32.mrb[0].mxu0
  %v1252 = vpop.f32.mrb[0].mxu0
  %v1253 = vadd.f32 %v198, %v1252
  %v1254 = vpop.f32.mrb[0].mxu0
  %1255 = vmatprep.mubr.bf16.mxu0 %v669
  %1256 = vmatmul.mubr.bf16.gmra.mrb[0].mxu0 %v668
  %v1257 = vpop.f32.mrb[0].mxu0
  %v1258 = vadd.f32 %v198, %v1257
  %v1259 = vpop.f32.mrb[0].mxu0
  %v1260 = vpop.f32.mrb[0].mxu0
  %v1261 = vadd.f32 %v198, %v1260
  %v1262 = vpop.f32.mrb[0].mxu0
  %1263 = vmatprep.mubr.bf16.mxu0 %v673
  %1264 = vmatmul.mubr.bf16.gmra.mrb[0].mxu0 %v672
  %v1265 = vpop.f32.mrb[0].mxu0
  %v1266 = vadd.f32 %v198, %v1265
  %v1267 = vpop.f32.mrb[0].mxu0
  %v1268 = vpop.f32.mrb[0].mxu0
  %v1269 = vadd.f32 %v198, %v1268
  %v1270 = vpop.f32.mrb[0].mxu0
  %1271 = vmatprep.mubr.bf16.mxu0 %v677
  %1272 = vmatmul.mubr.bf16.gmra.mrb[0].mxu0 %v676
  %v1273 = vpop.f32.mrb[0].mxu0
  %v1274 = vadd.f32 %v198, %v1273
  %v1275 = vpop.f32.mrb[0].mxu0
  %v1276 = vpop.f32.mrb[0].mxu0
  %v1277 = vadd.f32 %v198, %v1276
  %v1278 = vpop.f32.mrb[0].mxu0
  %1279 = vmatprep.mubr.bf16.mxu0 %v681
  %1280 = vmatmul.mubr.bf16.gmra.mrb[0].mxu0 %v680
  %v1281 = vpop.f32.mrb[0].mxu0
  %v1282 = vadd.f32 %v198, %v1281
  %v1283 = vpop.f32.mrb[0].mxu0
  %v1284 = vpop.f32.mrb[0].mxu0
  %v1285 = vadd.f32 %v198, %v1284
  %v1286 = vpop.f32.mrb[0].mxu0
  %1287 = vmatprep.mubr.bf16.mxu0 %v685
  %1288 = vmatmul.mubr.bf16.gmra.mrb[0].mxu0 %v684
  %v1289 = vpop.f32.mrb[0].mxu0
  %v1290 = vadd.f32 %v198, %v1289
  %v1291 = vpop.f32.mrb[0].mxu0
  %v1292 = vpop.f32.mrb[0].mxu0
  %v1293 = vadd.f32 %v198, %v1292
  %v1294 = vpop.f32.mrb[0].mxu0
  %1295 = vmatprep.mubr.bf16.mxu0 %v689
  %1296 = vmatmul.mubr.bf16.gmra.mrb[0].mxu0 %v688
  %v1297 = vpop.f32.mrb[0].mxu0
  %v1298 = vadd.f32 %v198, %v1297
  %v1299 = vpop.f32.mrb[0].mxu0
  %v1300 = vpop.f32.mrb[0].mxu0
  %v1301 = vadd.f32 %v198, %v1300
  %v1302 = vpop.f32.mrb[0].mxu0
  %1303 = vmatprep.mubr.bf16.mxu0 %v693
  %1304 = vmatmul.mubr.bf16.gmra.mrb[0].mxu0 %v692
  %v1305 = vpop.f32.mrb[0].mxu0
  %v1306 = vadd.f32 %v198, %v1305
  %v1307 = vpop.f32.mrb[0].mxu0
  %v1308 = vpop.f32.mrb[0].mxu0
  %v1309 = vadd.f32 %v198, %v1308
  %v1310 = vpop.f32.mrb[0].mxu0
  %1311 = vmatprep.mubr.bf16.mxu0 %v697
  %1312 = vmatmul.mubr.bf16.gmra.mrb[0].mxu0 %v696
  %v1313 = vpop.f32.mrb[0].mxu0
  %v1314 = vadd.f32 %v198, %v1313
  %v1315 = vpop.f32.mrb[0].mxu0
  %v1316 = vpop.f32.mrb[0].mxu0
  %v1317 = vadd.f32 %v198, %v1316
  %v1318 = vpop.f32.mrb[0].mxu0
  %1319 = vmatprep.mubr.bf16.mxu0 %v701
  %1320 = vmatmul.mubr.bf16.gmra.mrb[0].mxu0 %v700
  %v1321 = vpop.f32.mrb[0].mxu0
  %v1322 = vadd.f32 %v198, %v1321
  %v1323 = vpop.f32.mrb[0].mxu0
  %v1324 = vpop.f32.mrb[0].mxu0
  %v1325 = vadd.f32 %v198, %v1324
  %v1326 = vpop.f32.mrb[0].mxu0
  %1327 = vmatprep.mubr.bf16.mxu0 %v705
  %1328 = vmatmul.mubr.bf16.gmra.mrb[0].mxu0 %v704
  %v1329 = vpop.f32.mrb[0].mxu0
  %v1330 = vadd.f32 %v198, %v1329
  %v1331 = vpop.f32.mrb[0].mxu0
  %v1332 = vpop.f32.mrb[0].mxu0
  %v1333 = vadd.f32 %v198, %v1332
  %v1334 = vpop.f32.mrb[0].mxu0
  %1335 = vmatprep.mubr.bf16.mxu0 %v709
  %1336 = vmatmul.mubr.bf16.gmra.mrb[0].mxu0 %v708
  %v1337 = vpop.f32.mrb[0].mxu0
  %v1338 = vadd.f32 %v198, %v1337
  %v1339 = vpop.f32.mrb[0].mxu0
  %v1340 = vpop.f32.mrb[0].mxu0
  %v1341 = vadd.f32 %v198, %v1340
  %v1342 = vpop.f32.mrb[0].mxu0
  %1343 = vdwg.mxu0
  %1344 = vmatprep.subr.bf16.mxu0 0
  %1345 = vmatpush1.bf16.msra.mxu0 %v924
  %1346 = vmatprep.subr.bf16.mxu0 0
  %1347 = vmatpush1.bf16.msra.mxu0 %v925
  %1348 = vmatprep.subr.bf16.mxu0 0
  %1349 = vmatpush1.bf16.msra.mxu0 %v926
  %1350 = vmatprep.subr.bf16.mxu0 0
  %1351 = vmatpush1.bf16.msra.mxu0 %v927
  %1352 = vmatprep.subr.bf16.mxu0 0
  %1353 = vmatpush1.bf16.msra.mxu0 %v928
  %1354 = vmatprep.subr.bf16.mxu0 0
  %1355 = vmatpush1.bf16.msra.mxu0 %v929
  %1356 = vmatprep.subr.bf16.mxu0 0
  %1357 = vmatpush1.bf16.msra.mxu0 %v930
  %1358 = vmatprep.subr.bf16.mxu0 0
  %1359 = vmatpush1.bf16.msra.mxu0 %v931
  %1360 = vmatprep.subr.bf16.mxu0 0
  %1361 = vmatpush1.bf16.msra.mxu0 %v932
  %1362 = vmatprep.subr.bf16.mxu0 0
  %1363 = vmatpush1.bf16.msra.mxu0 0
  %1364 = vmatprep.subr.bf16.mxu0 0
  %1365 = vmatpush1.bf16.msra.mxu0 0
  %1366 = vmatprep.subr.bf16.mxu0 0
  %1367 = vmatpush1.bf16.msra.mxu0 0
  %1368 = vmatprep.subr.bf16.mxu0 0
  %1369 = vmatpush1.bf16.msra.mxu0 0
  %1370 = vmatprep.subr.bf16.mxu0 0
  %1371 = vmatpush1.bf16.msra.mxu0 0
  %1372 = vmatprep.subr.bf16.mxu0 0
  %1373 = vmatpush1.bf16.msra.mxu0 0
  %1374 = vmatprep.subr.bf16.mxu0 0
  %1375 = vmatpush1.bf16.msra.mxu0 0
  %1376 = vmatprep.mubr.bf16.mxu0 %v960
  %1377 = vmatmul.mubr.bf16.gmra.mrb[0].mxu0 %v586
  %v1378 = vpop.f32.mrb[0].mxu0
  %v1379 = vadd.f32 %v1090, %v1378
  %v1380 = vpop.f32.mrb[0].mxu0
  %v1381 = vpop.f32.mrb[0].mxu0
  %v1382 = vadd.f32 %v1093, %v1381
  %v1383 = vpop.f32.mrb[0].mxu0
  %1384 = vmatprep.mubr.bf16.mxu0 %v963
  %1385 = vmatmul.mubr.bf16.gmra.mrb[0].mxu0 %v590
  %v1386 = vpop.f32.mrb[0].mxu0
  %v1387 = vadd.f32 %v1098, %v1386
  %v1388 = vpop.f32.mrb[0].mxu0
  %v1389 = vpop.f32.mrb[0].mxu0
  %v1390 = vadd.f32 %v1101, %v1389
  %v1391 = vpop.f32.mrb[0].mxu0
  %1392 = vmatprep.mubr.bf16.mxu0 %v966
  %1393 = vmatmul.mubr.bf16.gmra.mrb[0].mxu0 %v594
  %v1394 = vpop.f32.mrb[0].mxu0
  %v1395 = vadd.f32 %v1106, %v1394
  %v1396 = vpop.f32.mrb[0].mxu0
  %v1397 = vpop.f32.mrb[0].mxu0
  %v1398 = vadd.f32 %v1109, %v1397
  %v1399 = vpop.f32.mrb[0].mxu0
  %1400 = vmatprep.mubr.bf16.mxu0 %v969
  %1401 = vmatmul.mubr.bf16.gmra.mrb[0].mxu0 %v598
  %v1402 = vpop.f32.mrb[0].mxu0
  %v1403 = vadd.f32 %v1114, %v1402
  %v1404 = vpop.f32.mrb[0].mxu0
  %v1405 = vpop.f32.mrb[0].mxu0
  %v1406 = vadd.f32 %v1117, %v1405
  %v1407 = vpop.f32.mrb[0].mxu0
  %1408 = vmatprep.mubr.bf16.mxu0 %v972
  %1409 = vmatmul.mubr.bf16.gmra.mrb[0].mxu0 %v602
  %v1410 = vpop.f32.mrb[0].mxu0
  %v1411 = vadd.f32 %v1122, %v1410
  %v1412 = vpop.f32.mrb[0].mxu0
  %v1413 = vpop.f32.mrb[0].mxu0
  %v1414 = vadd.f32 %v1125, %v1413
  %v1415 = vpop.f32.mrb[0].mxu0
  %1416 = vmatprep.mubr.bf16.mxu0 %v975
  %1417 = vmatmul.mubr.bf16.gmra.mrb[0].mxu0 %v606
  %v1418 = vpop.f32.mrb[0].mxu0
  %v1419 = vadd.f32 %v1130, %v1418
  %v1420 = vpop.f32.mrb[0].mxu0
  %v1421 = vpop.f32.mrb[0].mxu0
  %v1422 = vadd.f32 %v1133, %v1421
  %v1423 = vpop.f32.mrb[0].mxu0
  %1424 = vmatprep.mubr.bf16.mxu0 %v978
  %1425 = vmatmul.mubr.bf16.gmra.mrb[0].mxu0 %v610
  %v1426 = vpop.f32.mrb[0].mxu0
  %v1427 = vadd.f32 %v1138, %v1426
  %v1428 = vpop.f32.mrb[0].mxu0
  %v1429 = vpop.f32.mrb[0].mxu0
  %v1430 = vadd.f32 %v1141, %v1429
  %v1431 = vpop.f32.mrb[0].mxu0
  %1432 = vmatprep.mubr.bf16.mxu0 %v981
  %1433 = vmatmul.mubr.bf16.gmra.mrb[0].mxu0 %v614
  %v1434 = vpop.f32.mrb[0].mxu0
  %v1435 = vadd.f32 %v1146, %v1434
  %v1436 = vpop.f32.mrb[0].mxu0
  %v1437 = vpop.f32.mrb[0].mxu0
  %v1438 = vadd.f32 %v1149, %v1437
  %v1439 = vpop.f32.mrb[0].mxu0
  %1440 = vmatprep.mubr.bf16.mxu0 %v984
  %1441 = vmatmul.mubr.bf16.gmra.mrb[0].mxu0 %v618
  %v1442 = vpop.f32.mrb[0].mxu0
  %v1443 = vadd.f32 %v1154, %v1442
  %v1444 = vpop.f32.mrb[0].mxu0
  %v1445 = vpop.f32.mrb[0].mxu0
  %v1446 = vadd.f32 %v1157, %v1445
  %v1447 = vpop.f32.mrb[0].mxu0
  %1448 = vmatprep.mubr.bf16.mxu0 %v987
  %1449 = vmatmul.mubr.bf16.gmra.mrb[0].mxu0 %v622
  %v1450 = vpop.f32.mrb[0].mxu0
  %v1451 = vadd.f32 %v1162, %v1450
  %v1452 = vpop.f32.mrb[0].mxu0
  %v1453 = vpop.f32.mrb[0].mxu0
  %v1454 = vadd.f32 %v1165, %v1453
  %v1455 = vpop.f32.mrb[0].mxu0
  %1456 = vmatprep.mubr.bf16.mxu0 %v990
  %1457 = vmatmul.mubr.bf16.gmra.mrb[0].mxu0 %v626
  %v1458 = vpop.f32.mrb[0].mxu0
  %v1459 = vadd.f32 %v1170, %v1458
  %v1460 = vpop.f32.mrb[0].mxu0
  %v1461 = vpop.f32.mrb[0].mxu0
  %v1462 = vadd.f32 %v1173, %v1461
  %v1463 = vpop.f32.mrb[0].mxu0
  %1464 = vmatprep.mubr.bf16.mxu0 %v993
  %1465 = vmatmul.mubr.bf16.gmra.mrb[0].mxu0 %v630
  %v1466 = vpop.f32.mrb[0].mxu0
  %v1467 = vadd.f32 %v1178, %v1466
  %v1468 = vpop.f32.mrb[0].mxu0
  %v1469 = vpop.f32.mrb[0].mxu0
  %v1470 = vadd.f32 %v1181, %v1469
  %v1471 = vpop.f32.mrb[0].mxu0
  %1472 = vmatprep.mubr.bf16.mxu0 %v996
  %1473 = vmatmul.mubr.bf16.gmra.mrb[0].mxu0 %v634
  %v1474 = vpop.f32.mrb[0].mxu0
  %v1475 = vadd.f32 %v1186, %v1474
  %v1476 = vpop.f32.mrb[0].mxu0
  %v1477 = vpop.f32.mrb[0].mxu0
  %v1478 = vadd.f32 %v1189, %v1477
  %v1479 = vpop.f32.mrb[0].mxu0
  %1480 = vmatprep.mubr.bf16.mxu0 %v999
  %1481 = vmatmul.mubr.bf16.gmra.mrb[0].mxu0 %v638
  %v1482 = vpop.f32.mrb[0].mxu0
  %v1483 = vadd.f32 %v1194, %v1482
  %v1484 = vpop.f32.mrb[0].mxu0
  %v1485 = vpop.f32.mrb[0].mxu0
  %v1486 = vadd.f32 %v1197, %v1485
  %v1487 = vpop.f32.mrb[0].mxu0
  %1488 = vmatprep.mubr.bf16.mxu0 %v1002
  %1489 = vmatmul.mubr.bf16.gmra.mrb[0].mxu0 %v642
  %v1490 = vpop.f32.mrb[0].mxu0
  %v1491 = vadd.f32 %v1202, %v1490
  %v1492 = vpop.f32.mrb[0].mxu0
  %v1493 = vpop.f32.mrb[0].mxu0
  %v1494 = vadd.f32 %v1205, %v1493
  %v1495 = vpop.f32.mrb[0].mxu0
  %1496 = vmatprep.mubr.bf16.mxu0 %v1005
  %1497 = vmatmul.mubr.bf16.gmra.mrb[0].mxu0 %v646
  %v1498 = vpop.f32.mrb[0].mxu0
  %v1499 = vadd.f32 %v1210, %v1498
  %v1500 = vpop.f32.mrb[0].mxu0
  %v1501 = vpop.f32.mrb[0].mxu0
  %v1502 = vadd.f32 %v1213, %v1501
  %v1503 = vpop.f32.mrb[0].mxu0
  %1504 = vmatprep.mubr.bf16.mxu0 %v1008
  %1505 = vmatmul.mubr.bf16.gmra.mrb[0].mxu0 %v650
  %v1506 = vpop.f32.mrb[0].mxu0
  %v1507 = vadd.f32 %v1218, %v1506
  %v1508 = vpop.f32.mrb[0].mxu0
  %v1509 = vpop.f32.mrb[0].mxu0
  %v1510 = vadd.f32 %v1221, %v1509
  %v1511 = vpop.f32.mrb[0].mxu0
  %1512 = vmatprep.mubr.bf16.mxu0 %v1011
  %1513 = vmatmul.mubr.bf16.gmra.mrb[0].mxu0 %v654
  %v1514 = vpop.f32.mrb[0].mxu0
  %v1515 = vadd.f32 %v1226, %v1514
  %v1516 = vpop.f32.mrb[0].mxu0
  %v1517 = vpop.f32.mrb[0].mxu0
  %v1518 = vadd.f32 %v1229, %v1517
  %v1519 = vpop.f32.mrb[0].mxu0
  %1520 = vmatprep.mubr.bf16.mxu0 %v1014
  %1521 = vmatmul.mubr.bf16.gmra.mrb[0].mxu0 %v658
  %v1522 = vpop.f32.mrb[0].mxu0
  %v1523 = vadd.f32 %v1234, %v1522
  %v1524 = vpop.f32.mrb[0].mxu0
  %v1525 = vpop.f32.mrb[0].mxu0
  %v1526 = vadd.f32 %v1237, %v1525
  %v1527 = vpop.f32.mrb[0].mxu0
  %1528 = vmatprep.mubr.bf16.mxu0 %v1017
  %1529 = vmatmul.mubr.bf16.gmra.mrb[0].mxu0 %v662
  %v1530 = vpop.f32.mrb[0].mxu0
  %v1531 = vadd.f32 %v1242, %v1530
  %v1532 = vpop.f32.mrb[0].mxu0
  %v1533 = vpop.f32.mrb[0].mxu0
  %v1534 = vadd.f32 %v1245, %v1533
  %v1535 = vpop.f32.mrb[0].mxu0
  %1536 = vmatprep.mubr.bf16.mxu0 %v1020
  %1537 = vmatmul.mubr.bf16.gmra.mrb[0].mxu0 %v666
  %v1538 = vpop.f32.mrb[0].mxu0
  %v1539 = vadd.f32 %v1250, %v1538
  %v1540 = vpop.f32.mrb[0].mxu0
  %v1541 = vpop.f32.mrb[0].mxu0
  %v1542 = vadd.f32 %v1253, %v1541
  %v1543 = vpop.f32.mrb[0].mxu0
  %1544 = vmatprep.mubr.bf16.mxu0 %v1023
  %1545 = vmatmul.mubr.bf16.gmra.mrb[0].mxu0 %v670
  %v1546 = vpop.f32.mrb[0].mxu0
  %v1547 = vadd.f32 %v1258, %v1546
  %v1548 = vpop.f32.mrb[0].mxu0
  %v1549 = vpop.f32.mrb[0].mxu0
  %v1550 = vadd.f32 %v1261, %v1549
  %v1551 = vpop.f32.mrb[0].mxu0
  %1552 = vmatprep.mubr.bf16.mxu0 %v1026
  %1553 = vmatmul.mubr.bf16.gmra.mrb[0].mxu0 %v674
  %v1554 = vpop.f32.mrb[0].mxu0
  %v1555 = vadd.f32 %v1266, %v1554
  %v1556 = vpop.f32.mrb[0].mxu0
  %v1557 = vpop.f32.mrb[0].mxu0
  %v1558 = vadd.f32 %v1269, %v1557
  %v1559 = vpop.f32.mrb[0].mxu0
  %1560 = vmatprep.mubr.bf16.mxu0 %v1029
  %1561 = vmatmul.mubr.bf16.gmra.mrb[0].mxu0 %v678
  %v1562 = vpop.f32.mrb[0].mxu0
  %v1563 = vadd.f32 %v1274, %v1562
  %v1564 = vpop.f32.mrb[0].mxu0
  %v1565 = vpop.f32.mrb[0].mxu0
  %v1566 = vadd.f32 %v1277, %v1565
  %v1567 = vpop.f32.mrb[0].mxu0
  %1568 = vmatprep.mubr.bf16.mxu0 %v1032
  %1569 = vmatmul.mubr.bf16.gmra.mrb[0].mxu0 %v682
  %v1570 = vpop.f32.mrb[0].mxu0
  %v1571 = vadd.f32 %v1282, %v1570
  %v1572 = vpop.f32.mrb[0].mxu0
  %v1573 = vpop.f32.mrb[0].mxu0
  %v1574 = vadd.f32 %v1285, %v1573
  %v1575 = vpop.f32.mrb[0].mxu0
  %1576 = vmatprep.mubr.bf16.mxu0 %v1035
  %1577 = vmatmul.mubr.bf16.gmra.mrb[0].mxu0 %v686
  %v1578 = vpop.f32.mrb[0].mxu0
  %v1579 = vadd.f32 %v1290, %v1578
  %v1580 = vpop.f32.mrb[0].mxu0
  %v1581 = vpop.f32.mrb[0].mxu0
  %v1582 = vadd.f32 %v1293, %v1581
  %v1583 = vpop.f32.mrb[0].mxu0
  %1584 = vmatprep.mubr.bf16.mxu0 %v1038
  %1585 = vmatmul.mubr.bf16.gmra.mrb[0].mxu0 %v690
  %v1586 = vpop.f32.mrb[0].mxu0
  %v1587 = vadd.f32 %v1298, %v1586
  %v1588 = vpop.f32.mrb[0].mxu0
  %v1589 = vpop.f32.mrb[0].mxu0
  %v1590 = vadd.f32 %v1301, %v1589
  %v1591 = vpop.f32.mrb[0].mxu0
  %1592 = vmatprep.mubr.bf16.mxu0 %v1041
  %1593 = vmatmul.mubr.bf16.gmra.mrb[0].mxu0 %v694
  %v1594 = vpop.f32.mrb[0].mxu0
  %v1595 = vadd.f32 %v1306, %v1594
  %v1596 = vpop.f32.mrb[0].mxu0
  %v1597 = vpop.f32.mrb[0].mxu0
  %v1598 = vadd.f32 %v1309, %v1597
  %v1599 = vpop.f32.mrb[0].mxu0
  %1600 = vmatprep.mubr.bf16.mxu0 %v1044
  %1601 = vmatmul.mubr.bf16.gmra.mrb[0].mxu0 %v698
  %v1602 = vpop.f32.mrb[0].mxu0
  %v1603 = vadd.f32 %v1314, %v1602
  %v1604 = vpop.f32.mrb[0].mxu0
  %v1605 = vpop.f32.mrb[0].mxu0
  %v1606 = vadd.f32 %v1317, %v1605
  %v1607 = vpop.f32.mrb[0].mxu0
  %1608 = vmatprep.mubr.bf16.mxu0 %v1047
  %1609 = vmatmul.mubr.bf16.gmra.mrb[0].mxu0 %v702
  %v1610 = vpop.f32.mrb[0].mxu0
  %v1611 = vadd.f32 %v1322, %v1610
  %v1612 = vpop.f32.mrb[0].mxu0
  %v1613 = vpop.f32.mrb[0].mxu0
  %v1614 = vadd.f32 %v1325, %v1613
  %v1615 = vpop.f32.mrb[0].mxu0
  %1616 = vmatprep.mubr.bf16.mxu0 %v1050
  %1617 = vmatmul.mubr.bf16.gmra.mrb[0].mxu0 %v706
  %v1618 = vpop.f32.mrb[0].mxu0
  %v1619 = vadd.f32 %v1330, %v1618
  %v1620 = vpop.f32.mrb[0].mxu0
  %v1621 = vpop.f32.mrb[0].mxu0
  %v1622 = vadd.f32 %v1333, %v1621
  %v1623 = vpop.f32.mrb[0].mxu0
  %1624 = vmatprep.mubr.bf16.mxu0 %v1053
  %1625 = vmatmul.mubr.bf16.gmra.mrb[0].mxu0 %v710
  %v1626 = vpop.f32.mrb[0].mxu0
  %v1627 = vadd.f32 %v1338, %v1626
  %v1628 = vpop.f32.mrb[0].mxu0
  %v1629 = vpop.f32.mrb[0].mxu0
  %v1630 = vadd.f32 %v1341, %v1629
  %v1631 = vpop.f32.mrb[0].mxu0
  %1632 = vdwg.mxu0
  %v1633 = vtanh.pop %v1379
  %v1634 = vtanh.pop %v1382
  %v1635 = vtanh.pop %v1387
  %v1636 = vtanh.pop %v1390
  %v1637 = vtanh.pop %v1395
  %v1638 = vtanh.pop %v1398
  %v1639 = vtanh.pop %v1403
  %v1640 = vtanh.pop %v1406
  %v1641 = vtanh.pop %v1411
  %v1642 = vtanh.pop %v1414
  %v1643 = vtanh.pop %v1419
  %v1644 = vtanh.pop %v1422
  %v1645 = vtanh.pop %v1427
  %v1646 = vtanh.pop %v1430
  %v1647 = vtanh.pop %v1435
  %v1648 = vtanh.pop %v1438
  %v1649 = vtanh.pop %v1443
  %v1650 = vtanh.pop %v1446
  %v1651 = vtanh.pop %v1451
  %v1652 = vtanh.pop %v1454
  %v1653 = vtanh.pop %v1459
  %v1654 = vtanh.pop %v1462
  %v1655 = vtanh.pop %v1467
  %v1656 = vtanh.pop %v1470
  %v1657 = vtanh.pop %v1475
  %v1658 = vtanh.pop %v1478
  %v1659 = vtanh.pop %v1483
  %v1660 = vtanh.pop %v1486
  %v1661 = vtanh.pop %v1491
  %v1662 = vtanh.pop %v1494
  %v1663 = vtanh.pop %v1499
  %v1664 = vtanh.pop %v1502
  %v1665 = vtanh.pop %v1507
  %v1666 = vtanh.pop %v1510
  %v1667 = vtanh.pop %v1515
  %v1668 = vtanh.pop %v1518
  %v1669 = vtanh.pop %v1523
  %v1670 = vtanh.pop %v1526
  %v1671 = vtanh.pop %v1531
  %v1672 = vtanh.pop %v1534
  %v1673 = vtanh.pop %v1539
  %v1674 = vtanh.pop %v1542
  %v1675 = vtanh.pop %v1547
  %v1676 = vtanh.pop %v1550
  %v1677 = vtanh.pop %v1555
  %v1678 = vtanh.pop %v1558
  %v1679 = vtanh.pop %v1563
  %v1680 = vtanh.pop %v1566
  %v1681 = vtanh.pop %v1571
  %v1682 = vtanh.pop %v1574
  %v1683 = vtanh.pop %v1579
  %v1684 = vtanh.pop %v1582
  %v1685 = vtanh.pop %v1587
  %v1686 = vtanh.pop %v1590
  %v1687 = vtanh.pop %v1595
  %v1688 = vtanh.pop %v1598
  %v1689 = vtanh.pop %v1603
  %v1690 = vtanh.pop %v1606
  %v1691 = vtanh.pop %v1611
  %v1692 = vtanh.pop %v1614
  %v1693 = vtanh.pop %v1619
  %v1694 = vtanh.pop %v1622
  %v1695 = vtanh.pop %v1627
  %v1696 = vtanh.pop %v1630
  %vm1697 = vcmask 23552
  %1698 = vst.msk [vmem:[%s3] sm:$0xff] %vm1697, %v1633
  %1699 = vst.msk [vmem:[%s3 + $0x8] sm:$0xff] %vm1697, %v1634
  %1700 = vst.msk [vmem:[%s3 + $0x10] sm:$0xff] %vm1697, %v1635
  %1701 = vst.msk [vmem:[%s3 + $0x18] sm:$0xff] %vm1697, %v1636
  %1702 = vst.msk [vmem:[%s3 + $0x20] sm:$0xff] %vm1697, %v1637
  %1703 = vst.msk [vmem:[%s3 + $0x28] sm:$0xff] %vm1697, %v1638
  %1704 = vst.msk [vmem:[%s3 + $0x30] sm:$0xff] %vm1697, %v1639
  %1705 = vst.msk [vmem:[%s3 + $0x38] sm:$0xff] %vm1697, %v1640
  %1706 = vst.msk [vmem:[%s3 + $0x40] sm:$0xff] %vm1697, %v1641
  %1707 = vst.msk [vmem:[%s3 + $0x48] sm:$0xff] %vm1697, %v1642
  %1708 = vst.msk [vmem:[%s3 + $0x50] sm:$0xff] %vm1697, %v1643
  %1709 = vst.msk [vmem:[%s3 + $0x58] sm:$0xff] %vm1697, %v1644
  %1710 = vst.msk [vmem:[%s3 + $0x60] sm:$0xff] %vm1697, %v1645
  %1711 = vst.msk [vmem:[%s3 + $0x68] sm:$0xff] %vm1697, %v1646
  %1712 = vst.msk [vmem:[%s3 + $0x70] sm:$0xff] %vm1697, %v1647
  %1713 = vst.msk [vmem:[%s3 + $0x78] sm:$0xff] %vm1697, %v1648
  %1714 = vst.msk [vmem:[%s3 + $0x80] sm:$0xff] %vm1697, %v1649
  %1715 = vst.msk [vmem:[%s3 + $0x88] sm:$0xff] %vm1697, %v1650
  %1716 = vst.msk [vmem:[%s3 + $0x90] sm:$0xff] %vm1697, %v1651
  %1717 = vst.msk [vmem:[%s3 + $0x98] sm:$0xff] %vm1697, %v1652
  %1718 = vst.msk [vmem:[%s3 + $0xa0] sm:$0xff] %vm1697, %v1653
  %1719 = vst.msk [vmem:[%s3 + $0xa8] sm:$0xff] %vm1697, %v1654
  %1720 = vst.msk [vmem:[%s3 + $0xb0] sm:$0xff] %vm1697, %v1655
  %1721 = vst.msk [vmem:[%s3 + $0xb8] sm:$0xff] %vm1697, %v1656
  %1722 = vst.msk [vmem:[%s3 + $0xc0] sm:$0xff] %vm1697, %v1657
  %1723 = vst.msk [vmem:[%s3 + $0xc8] sm:$0xff] %vm1697, %v1658
  %1724 = vst.msk [vmem:[%s3 + $0xd0] sm:$0xff] %vm1697, %v1659
  %1725 = vst.msk [vmem:[%s3 + $0xd8] sm:$0xff] %vm1697, %v1660
  %1726 = vst.msk [vmem:[%s3 + $0xe0] sm:$0xff] %vm1697, %v1661
  %1727 = vst.msk [vmem:[%s3 + $0xe8] sm:$0xff] %vm1697, %v1662
  %1728 = vst.msk [vmem:[%s3 + $0xf0] sm:$0xff] %vm1697, %v1663
  %1729 = vst.msk [vmem:[%s3 + $0xf8] sm:$0xff] %vm1697, %v1664
  %1730 = vst.msk [vmem:[%s3 + $0x100] sm:$0xff] %vm1697, %v1665
  %1731 = vst.msk [vmem:[%s3 + $0x108] sm:$0xff] %vm1697, %v1666
  %1732 = vst.msk [vmem:[%s3 + $0x110] sm:$0xff] %vm1697, %v1667
  %1733 = vst.msk [vmem:[%s3 + $0x118] sm:$0xff] %vm1697, %v1668
  %1734 = vst.msk [vmem:[%s3 + $0x120] sm:$0xff] %vm1697, %v1669
  %1735 = vst.msk [vmem:[%s3 + $0x128] sm:$0xff] %vm1697, %v1670
  %1736 = vst.msk [vmem:[%s3 + $0x130] sm:$0xff] %vm1697, %v1671
  %1737 = vst.msk [vmem:[%s3 + $0x138] sm:$0xff] %vm1697, %v1672
  %1738 = vst.msk [vmem:[%s3 + $0x140] sm:$0xff] %vm1697, %v1673
  %1739 = vst.msk [vmem:[%s3 + $0x148] sm:$0xff] %vm1697, %v1674
  %1740 = vst.msk [vmem:[%s3 + $0x150] sm:$0xff] %vm1697, %v1675
  %1741 = vst.msk [vmem:[%s3 + $0x158] sm:$0xff] %vm1697, %v1676
  %1742 = vst.msk [vmem:[%s3 + $0x160] sm:$0xff] %vm1697, %v1677
  %1743 = vst.msk [vmem:[%s3 + $0x168] sm:$0xff] %vm1697, %v1678
  %1744 = vst.msk [vmem:[%s3 + $0x170] sm:$0xff] %vm1697, %v1679
  %1745 = vst.msk [vmem:[%s3 + $0x178] sm:$0xff] %vm1697, %v1680
  %1746 = vst.msk [vmem:[%s3 + $0x180] sm:$0xff] %vm1697, %v1681
  %1747 = vst.msk [vmem:[%s3 + $0x188] sm:$0xff] %vm1697, %v1682
  %1748 = vst.msk [vmem:[%s3 + $0x190] sm:$0xff] %vm1697, %v1683
  %1749 = vst.msk [vmem:[%s3 + $0x198] sm:$0xff] %vm1697, %v1684
  %1750 = vst.msk [vmem:[%s3 + $0x1a0] sm:$0xff] %vm1697, %v1685
  %1751 = vst.msk [vmem:[%s3 + $0x1a8] sm:$0xff] %vm1697, %v1686
  %1752 = vst.msk [vmem:[%s3 + $0x1b0] sm:$0xff] %vm1697, %v1687
  %1753 = vst.msk [vmem:[%s3 + $0x1b8] sm:$0xff] %vm1697, %v1688
  %1754 = vst.msk [vmem:[%s3 + $0x1c0] sm:$0xff] %vm1697, %v1689
  %1755 = vst.msk [vmem:[%s3 + $0x1c8] sm:$0xff] %vm1697, %v1690
  %1756 = vst.msk [vmem:[%s3 + $0x1d0] sm:$0xff] %vm1697, %v1691
  %1757 = vst.msk [vmem:[%s3 + $0x1d8] sm:$0xff] %vm1697, %v1692
  %1758 = vst.msk [vmem:[%s3 + $0x1e0] sm:$0xff] %vm1697, %v1693
  %1759 = vst.msk [vmem:[%s3 + $0x1e8] sm:$0xff] %vm1697, %v1694
  %1760 = vst.msk [vmem:[%s3 + $0x1f0] sm:$0xff] %vm1697, %v1695
  %1761 = vst.msk [vmem:[%s3 + $0x1f8] sm:$0xff] %vm1697, %v1696
  // Predicated region
  $region14: #{g_net_forward.19} parent=0 // pred_check
    _
  $region15: #{g_net_forward.19} parent=0 // pred_check_branch
    %1763 = sbr.rel (0) target = $region17
  $region16: #{g_net_forward.19} parent=0 // pred_region
    _
  $region17: #{g_net_forward.19} parent=0 // pred_fallthru
    _
  // Predicated region
  $region18: #{g_net_forward.19} parent=0 // pred_check
    _
  $region19: #{g_net_forward.19} parent=0 // pred_check_branch
    %1765 = sbr.rel (0) target = $region21
  $region20: #{g_net_forward.19} parent=0 // pred_region
    _
  $region21: #{g_net_forward.19} parent=0 // pred_fallthru
    _

</llo_original>
